<compile_context>
chip_gen: v5e
topology: v5e:2x2
jax: 0.10.0
libtpu: 0.0.40
codegen_flags: <defaults>
</compile_context>

<pallas_src>
import jax
import jax.numpy as jnp
from jax.experimental import pallas as pl
from jax.experimental.pallas import tpu as pltpu


# --------------------------------- kernel ------------------------------------

def _cross_agg_kernel(xd_ref, xs_ref,
                      s_ref, sq_ref, r_ref,
                      af_ref, aq_ref, b_ref,
                      m101_ref, m101q_ref,
                      qp_ref, pp_ref, ur_ref, uc_ref,
                      aff_f, aff_h, aff_q,
                      o_ref):
    f32 = jnp.float32
    xd = xd_ref[0]                       # (H,  W*C)  full resolution, folded lanes
    xs = xs_ref[0]                       # (Hq, Wq*C) quarter resolution

    def mm(a, b):
        return jnp.dot(a, b, preferred_element_type=f32)

    def shifts(x, rows_ref):
        # row shift / row selection; zero padding and stride are baked into the matrix
        return [mm(rows_ref[dy], x) for dy in range(3)]

    def band(shifted, a_ref, idx=None):
        # sum_dy shifted[dy] @ A[dy]   (A applies the dx shift + channel mixing)
        acc = mm(shifted[0], a_ref[0] if idx is None else a_ref[idx, 0])
        for dy in (1, 2):
            acc = acc + mm(shifted[dy], a_ref[dy] if idx is None else a_ref[idx, dy])
        return acc

    def sigmoid(x):
        return pl.reciprocal(1.0 + jnp.exp(-x), approx=True)

    # ---------------- detail path (full resolution) ----------------
    # l13 = bn_1(depth_conv_1(x_detail)); l16 = bn_2(depth_conv_2(l13))
    l13 = aff_f[0] * band(shifts(xd, s_ref), af_ref, 0) + aff_f[1]
    l16 = aff_f[2] * band(shifts(l13, s_ref), af_ref, 1) + aff_f[3]
    # l17 = conv101(l16): 1x1 conv (no bias) + BN + ReLU
    l17 = jnp.maximum(aff_f[4] * mm(l16, m101_ref[...]) + aff_f[5], 0.0)

    # r12 = bn_4(conv2d312(x_detail)), stride 2 at true output resolution
    r12 = aff_h[0] * band(shifts(xd, r_ref), b_ref) + aff_h[1]
    # r13 = AvgPool2d(3, 2, 1)(r12)   (count_include_pad=True; 1/9 folded into Q)
    r13 = mm(mm(qp_ref[...], r12), pp_ref[...])

    # ---------------- semi path (quarter resolution) ----------------
    xs_sh = shifts(xs, sq_ref)
    # sigmoid(bn_3(conv2d311(x_semi)))  -- sigmoid commutes with nearest x4 upsample
    gate_l = sigmoid(aff_q[0] * band(xs_sh, aq_ref, 0) + aff_q[1])
    # r25 = sigmoid(conv2d101(bn_5(depth_conv_3(x_semi))));  r = r13 * r25
    r23 = aff_q[2] * band(xs_sh, aq_ref, 1) + aff_q[3]
    r_q = r13 * sigmoid(mm(r23, m101q_ref[...]) + aff_q[4])

    # x4 nearest-neighbour upsample of both quarter-res tensors, as matmuls
    gate_up = mm(mm(ur_ref[...], gate_l), uc_ref[...])
    r_up = mm(mm(ur_ref[...], r_q), uc_ref[...])

    # z = l17 * upsample(sigmoid(l22)) + upsample(r);  out = conv311(z) = ReLU(BN(3x3 conv))
    z = l17 * gate_up + r_up
    o_ref[0] = jnp.maximum(aff_f[6] * band(shifts(z, s_ref), af_ref, 2) + aff_f[7], 0.0)


# ------------------------------ pallas_call glue ------------------------------

_WEIGHT_KEYS = ("S_full", "S_q", "R_312", "A_full", "A_q", "B_312",
                "M_101", "M_101q", "Q_pool", "P_pool", "U_row", "U_col",
                "aff_full", "aff_half", "aff_quarter")


@jax.jit
def cross_agg_layer(x_detail, x_semi, params):
    """x_detail: (N,C,H,W); x_semi: (N,C,H//4,W//4)  (NCHW, like the PyTorch module)."""
    n, c, h, w = x_detail.shape
    hq, wq = h // 4, w // 4

    # NCHW -> NHWC -> folded lane layout (rows, W*C); contiguous reshape (free in XLA)
    xd = jnp.transpose(x_detail, (0, 2, 3, 1)).reshape(n, h, w * c)
    xs = jnp.transpose(x_semi, (0, 2, 3, 1)).reshape(n, hq, wq * c)
    weights = [params[k] for k in _WEIGHT_KEYS]

    def _const_spec(arr):
        nd = arr.ndim
        return pl.BlockSpec(arr.shape, lambda b, _nd=nd: (0,) * _nd)

    out_f = pl.pallas_call(
        _cross_agg_kernel,
        grid=(n,),
        in_specs=[pl.BlockSpec((1, h, w * c), lambda b: (b, 0, 0)),
                  pl.BlockSpec((1, hq, wq * c), lambda b: (b, 0, 0))]
                 + [_const_spec(a) for a in weights],
        out_specs=pl.BlockSpec((1, h, w * c), lambda b: (b, 0, 0)),
        out_shape=jax.ShapeDtypeStruct((n, h, w * c), jnp.float32),
        compiler_params=pltpu.CompilerParams(
            dimension_semantics=("parallel",),      # shard batch across v7x's 2 TCs
            vmem_limit_bytes=32 * 1024 * 1024,      # explicit guard (weights ~3.3 MiB)
        ),
    )(xd, xs, *weights)

    return jnp.transpose(out_f.reshape(n, h, w, c), (0, 3, 1, 2))   # back to NCHW


# ------------------------------ parameter setup -------------------------------

def init_raw_params(key, c):
    """PyTorch-layout weights + eval-mode BN folded to per-channel scale/shift."""
    keys = iter(jax.random.split(key, 64))

    def conv_w(cout, cin_per_group, k):
        bound = 1.0 / ((cin_per_group * k * k) ** 0.5)
        return jax.random.uniform(next(keys), (cout, cin_per_group, k, k),
                                  jnp.float32, -bound, bound)

    def conv_b(cin_per_group, k):
        bound = 1.0 / ((cin_per_group * k * k) ** 0.5)
        return jax.random.uniform(next(keys), (c,), jnp.float32, -bound, bound)

    def bn_fold():
        gamma = 1.0 + 0.1 * jax.random.normal(next(keys), (c,), jnp.float32)
        beta = 0.1 * jax.random.normal(next(keys), (c,), jnp.float32)
        mean = 0.1 * jax.random.normal(next(keys), (c,), jnp.float32)
        var = 1.0 + 0.1 * jnp.abs(jax.random.normal(next(keys), (c,), jnp.float32))
        scale = gamma * jax.lax.rsqrt(var + 1e-5)
        return scale, beta - mean * scale

    raw = {}
    for name in ("dw1", "dw2", "dw3"):                       # depthwise 3x3: (C,1,3,3)
        raw[name + "_w"] = conv_w(c, 1, 3)
        raw[name + "_b"] = conv_b(1, 3)
    raw["conv2d311_w"] = conv_w(c, c, 3); raw["conv2d311_b"] = conv_b(c, 3)
    raw["conv2d312_w"] = conv_w(c, c, 3); raw["conv2d312_b"] = conv_b(c, 3)
    raw["conv311_w"] = conv_w(c, c, 3)                       # BasicConv: no bias
    raw["conv101_w"] = conv_w(c, c, 1)                       # BasicConv: no bias
    raw["conv2d101_w"] = conv_w(c, c, 1); raw["conv2d101_b"] = conv_b(c, 1)
    for name in ("bn1", "bn2", "bn3", "bn4", "bn5", "bn101", "bn311"):
        s, o = bn_fold()
        raw[name + "_s"] = s
        raw[name + "_o"] = o
    return raw


def pack_params(raw, c, h, w):
    """Build the structured matrices for the folded (rows, W*C) lane layout."""
    f32 = jnp.float32
    hq, wq, hh, wh = h // 4, w // 4, h // 2, w // 2
    eye_c = jnp.eye(c, dtype=f32)

    def t_dense(wt):                      # (Cout,Cin,3,3) -> (3,3,Cin,Cout)
        return jnp.transpose(wt, (2, 3, 1, 0))

    def t_dw(wt):                         # (C,1,3,3) -> (3,3,C)
        return jnp.transpose(wt[:, 0], (1, 2, 0))

    def shift_cols(n, dx):                # T[ws,wd] = 1 iff ws == wd + dx - 1
        return jnp.eye(n, n, 1 - dx, dtype=f32)

    def band_dense(wk, n):                # (3, n*Cin, n*Cout)
        return jnp.stack([
            sum(jnp.kron(shift_cols(n, dx), wk[dy, dx]) for dx in range(3))
            for dy in range(3)])

    def band_dw(wk, n):                   # depthwise: diagonal channel blocks
        return jnp.stack([
            sum(jnp.kron(shift_cols(n, dx), jnp.diag(wk[dy, dx])) for dx in range(3))
            for dy in range(3)])

    def band_dense_s2(wk, n_in, n_out):   # stride-2 along W
        ws = jnp.arange(n_in)[:, None]
        wo = jnp.arange(n_out)[None, :]
        return jnp.stack([
            sum(jnp.kron((ws == 2 * wo + dx - 1).astype(f32), wk[dy, dx]) for dx in range(3))
            for dy in range(3)])

    def row_shift(n):                     # (3,n,n): S[dy] @ x picks row i + dy - 1
        return jnp.stack([jnp.eye(n, n, dy - 1, dtype=f32) for dy in range(3)])

    def row_sel_s2(n_out, n_in):          # (3,n_out,n_in): picks row 2*i + dy - 1
        i = jnp.arange(n_out)[:, None]
        r = jnp.arange(n_in)[None, :]
        return jnp.stack([(r == 2 * i + dy - 1).astype(f32) for dy in range(3)])

    p = {}
    # row operators
    p["S_full"] = row_shift(h)
    p["S_q"] = row_shift(hq)
    p["R_312"] = row_sel_s2(hh, h)
    # AvgPool2d(3,2,1), count_include_pad=True:  r13 = (Q @ r12) @ P,  1/9 in Q
    ii = jnp.arange(hq)[:, None]
    aa = jnp.arange(hh)[None, :]
    p["Q_pool"] = (((aa >= 2 * ii - 1) & (aa <= 2 * ii + 1)).astype(f32)) / 9.0
    bb = jnp.arange(wh)[:, None]
    jj = jnp.arange(wq)[None, :]
    p["P_pool"] = jnp.kron(((bb >= 2 * jj - 1) & (bb <= 2 * jj + 1)).astype(f32), eye_c)
    # nn.Upsample(scale_factor=4, nearest):  up = (U_row @ x_q) @ U_col
    hf = jnp.arange(h)[:, None]
    qh = jnp.arange(hq)[None, :]
    p["U_row"] = (qh == hf // 4).astype(f32)
    qw = jnp.arange(wq)[:, None]
    wf = jnp.arange(w)[None, :]
    p["U_col"] = jnp.kron((qw == wf // 4).astype(f32), eye_c)
    # banded conv matrices (folded W*C lanes)
    p["A_full"] = jnp.stack([band_dw(t_dw(raw["dw1_w"]), w),          # depth_conv_1
                             band_dw(t_dw(raw["dw2_w"]), w),          # depth_conv_2
                             band_dense(t_dense(raw["conv311_w"]), w)])  # conv311 (BasicConv)
    p["A_q"] = jnp.stack([band_dense(t_dense(raw["conv2d311_w"]), wq),   # conv2d311
                          band_dw(t_dw(raw["dw3_w"]), wq)])              # depth_conv_3
    p["B_312"] = band_dense_s2(t_dense(raw["conv2d312_w"]), w, wh)       # conv2d312 stride 2
    # 1x1 channel mixes as block-diagonal matrices
    p["M_101"] = jnp.kron(jnp.eye(w, dtype=f32), raw["conv101_w"][:, :, 0, 0].T)
    p["M_101q"] = jnp.kron(jnp.eye(wq, dtype=f32), raw["conv2d101_w"][:, :, 0, 0].T)

    # packed per-channel affine tables (conv biases folded into the following BN)
    def tile(v, n):
        return jnp.tile(v, n)

    p["aff_full"] = jnp.stack([
        tile(raw["bn1_s"], w), tile(raw["bn1_s"] * raw["dw1_b"] + raw["bn1_o"], w),
        tile(raw["bn2_s"], w), tile(raw["bn2_s"] * raw["dw2_b"] + raw["bn2_o"], w),
        tile(raw["bn101_s"], w), tile(raw["bn101_o"], w),
        tile(raw["bn311_s"], w), tile(raw["bn311_o"], w)])
    p["aff_half"] = jnp.stack([
        tile(raw["bn4_s"], wh),
        tile(raw["bn4_s"] * raw["conv2d312_b"] + raw["bn4_o"], wh)])
    p["aff_quarter"] = jnp.stack([
        tile(raw["bn3_s"], wq), tile(raw["bn3_s"] * raw["conv2d311_b"] + raw["bn3_o"], wq),
        tile(raw["bn5_s"], wq), tile(raw["bn5_s"] * raw["dw3_b"] + raw["bn5_o"], wq),
        tile(raw["conv2d101_b"], wq)])
    return p


if __name__ == "__main__":
    N, C, H, W = 2, 8, 32, 32
    key = jax.random.PRNGKey(0)
    kx, ks, kp = jax.random.split(key, 3)
    # PyTorch-style NCHW inputs: x_detail (N,C,H,W), x_semi (N,C,H/4,W/4)
    x_detail = jax.random.normal(kx, (N, C, H, W), jnp.float32)
    x_semi = jax.random.normal(ks, (N, C, H // 4, W // 4), jnp.float32)
    params = pack_params(init_raw_params(kp, C), C, H, W)

    out = cross_agg_layer(x_detail, x_semi, params)
    jax.block_until_ready(out)
    assert out.shape == (N, C, H, W), out.shape
    assert bool(jnp.all(jnp.isfinite(out)))
    print("KERNEL_OK")
</pallas_src>

<mosaic_0001>
module attributes {stable_mosaic.version = 11 : i64} {
  func.func @_cross_agg_kernel(%arg0: i32, %arg1: memref<1x32x256xf32, #tpu.memory_space<vmem>>, %arg2: memref<1x8x64xf32, #tpu.memory_space<vmem>>, %arg3: memref<3x32x32xf32, #tpu.memory_space<vmem>>, %arg4: memref<3x8x8xf32, #tpu.memory_space<vmem>>, %arg5: memref<3x16x32xf32, #tpu.memory_space<vmem>>, %arg6: memref<3x3x256x256xf32, #tpu.memory_space<vmem>>, %arg7: memref<2x3x64x64xf32, #tpu.memory_space<vmem>>, %arg8: memref<3x256x128xf32, #tpu.memory_space<vmem>>, %arg9: memref<256x256xf32, #tpu.memory_space<vmem>>, %arg10: memref<64x64xf32, #tpu.memory_space<vmem>>, %arg11: memref<8x16xf32, #tpu.memory_space<vmem>>, %arg12: memref<128x64xf32, #tpu.memory_space<vmem>>, %arg13: memref<32x8xf32, #tpu.memory_space<vmem>>, %arg14: memref<64x256xf32, #tpu.memory_space<vmem>>, %arg15: memref<8x256xf32, #tpu.memory_space<vmem>>, %arg16: memref<2x128xf32, #tpu.memory_space<vmem>>, %arg17: memref<5x64xf32, #tpu.memory_space<vmem>>, %arg18: memref<1x32x256xf32, #tpu.memory_space<vmem>>) attributes {dimension_semantics = [#tpu.dimension_semantics<parallel>], iteration_bounds = array<i64: 2>, scalar_prefetch = 0 : i64, scratch_operands = 0 : i64, tpu.core_type = #tpu.core_type<tc>, window_params = [{transform_indices = @transform_0, window_bounds = array<i64: 1, 32, 256>}, {transform_indices = @transform_1, window_bounds = array<i64: 1, 8, 64>}, {pipeline_mode = #tpu.pipeline_mode<synchronous>, transform_indices = @transform_2, window_bounds = array<i64: 3, 32, 32>}, {pipeline_mode = #tpu.pipeline_mode<synchronous>, transform_indices = @transform_3, window_bounds = array<i64: 3, 8, 8>}, {pipeline_mode = #tpu.pipeline_mode<synchronous>, transform_indices = @transform_4, window_bounds = array<i64: 3, 16, 32>}, {pipeline_mode = #tpu.pipeline_mode<synchronous>, transform_indices = @transform_5, window_bounds = array<i64: 3, 3, 256, 256>}, {pipeline_mode = #tpu.pipeline_mode<synchronous>, transform_indices = @transform_6, window_bounds = array<i64: 2, 3, 64, 64>}, {pipeline_mode = #tpu.pipeline_mode<synchronous>, transform_indices = @transform_7, window_bounds = array<i64: 3, 256, 128>}, {pipeline_mode = #tpu.pipeline_mode<synchronous>, transform_indices = @transform_8, window_bounds = array<i64: 256, 256>}, {pipeline_mode = #tpu.pipeline_mode<synchronous>, transform_indices = @transform_9, window_bounds = array<i64: 64, 64>}, {pipeline_mode = #tpu.pipeline_mode<synchronous>, transform_indices = @transform_10, window_bounds = array<i64: 8, 16>}, {pipeline_mode = #tpu.pipeline_mode<synchronous>, transform_indices = @transform_11, window_bounds = array<i64: 128, 64>}, {pipeline_mode = #tpu.pipeline_mode<synchronous>, transform_indices = @transform_12, window_bounds = array<i64: 32, 8>}, {pipeline_mode = #tpu.pipeline_mode<synchronous>, transform_indices = @transform_13, window_bounds = array<i64: 64, 256>}, {pipeline_mode = #tpu.pipeline_mode<synchronous>, transform_indices = @transform_14, window_bounds = array<i64: 8, 256>}, {pipeline_mode = #tpu.pipeline_mode<synchronous>, transform_indices = @transform_15, window_bounds = array<i64: 2, 128>}, {pipeline_mode = #tpu.pipeline_mode<synchronous>, transform_indices = @transform_16, window_bounds = array<i64: 5, 64>}, {transform_indices = @transform_17, window_bounds = array<i64: 1, 32, 256>}]} {
    %c0 = arith.constant 0 : index
    %c0_0 = arith.constant 0 : index
    %c0_1 = arith.constant 0 : index
    %0 = vector.load %arg1[%c0, %c0_0, %c0_1] : memref<1x32x256xf32, #tpu.memory_space<vmem>>, vector<1x32x256xf32>
    %1 = vector.shape_cast %0 : vector<1x32x256xf32> to vector<32x256xf32>
    %c0_2 = arith.constant 0 : index
    %c0_3 = arith.constant 0 : index
    %c0_4 = arith.constant 0 : index
    %2 = vector.load %arg2[%c0_2, %c0_3, %c0_4] : memref<1x8x64xf32, #tpu.memory_space<vmem>>, vector<1x8x64xf32>
    %3 = vector.shape_cast %2 : vector<1x8x64xf32> to vector<8x64xf32>
    %c0_5 = arith.constant 0 : index
    %c0_6 = arith.constant 0 : index
    %4 = vector.load %arg15[%c0_5, %c0_6] : memref<8x256xf32, #tpu.memory_space<vmem>>, vector<1x256xf32>
    %5 = vector.shape_cast %4 : vector<1x256xf32> to vector<256xf32>
    %c0_7 = arith.constant 0 : index
    %c0_8 = arith.constant 0 : index
    %c0_9 = arith.constant 0 : index
    %6 = vector.load %arg3[%c0_7, %c0_8, %c0_9] : memref<3x32x32xf32, #tpu.memory_space<vmem>>, vector<1x32x32xf32>
    %7 = vector.shape_cast %6 : vector<1x32x32xf32> to vector<32x32xf32>
    %cst = arith.constant dense<0.000000e+00> : vector<32x256xf32>
    %8 = tpu.matmul %7, %1, %cst {dimension_numbers = #tpu.dot_dimension_numbers<[1], [0], [0], [1], [0, 0, 1, 1], [], []>} : vector<32x32xf32>, vector<32x256xf32>, vector<32x256xf32> -> vector<32x256xf32>
    %c1 = arith.constant 1 : index
    %c0_10 = arith.constant 0 : index
    %c0_11 = arith.constant 0 : index
    %9 = vector.load %arg3[%c1, %c0_10, %c0_11] : memref<3x32x32xf32, #tpu.memory_space<vmem>>, vector<1x32x32xf32>
    %10 = vector.shape_cast %9 : vector<1x32x32xf32> to vector<32x32xf32>
    %cst_12 = arith.constant dense<0.000000e+00> : vector<32x256xf32>
    %11 = tpu.matmul %10, %1, %cst_12 {dimension_numbers = #tpu.dot_dimension_numbers<[1], [0], [0], [1], [0, 0, 1, 1], [], []>} : vector<32x32xf32>, vector<32x256xf32>, vector<32x256xf32> -> vector<32x256xf32>
    %c2 = arith.constant 2 : index
    %c0_13 = arith.constant 0 : index
    %c0_14 = arith.constant 0 : index
    %12 = vector.load %arg3[%c2, %c0_13, %c0_14] : memref<3x32x32xf32, #tpu.memory_space<vmem>>, vector<1x32x32xf32>
    %13 = vector.shape_cast %12 : vector<1x32x32xf32> to vector<32x32xf32>
    %cst_15 = arith.constant dense<0.000000e+00> : vector<32x256xf32>
    %14 = tpu.matmul %13, %1, %cst_15 {dimension_numbers = #tpu.dot_dimension_numbers<[1], [0], [0], [1], [0, 0, 1, 1], [], []>} : vector<32x32xf32>, vector<32x256xf32>, vector<32x256xf32> -> vector<32x256xf32>
    %c0_16 = arith.constant 0 : index
    %c0_17 = arith.constant 0 : index
    %c0_18 = arith.constant 0 : index
    %c0_19 = arith.constant 0 : index
    %15 = vector.load %arg6[%c0_16, %c0_17, %c0_18, %c0_19] : memref<3x3x256x256xf32, #tpu.memory_space<vmem>>, vector<1x1x256x256xf32>
    %16 = vector.shape_cast %15 : vector<1x1x256x256xf32> to vector<256x256xf32>
    %cst_20 = arith.constant dense<0.000000e+00> : vector<32x256xf32>
    %17 = tpu.matmul %8, %16, %cst_20 {dimension_numbers = #tpu.dot_dimension_numbers<[1], [0], [0], [1], [0, 0, 1, 1], [], []>} : vector<32x256xf32>, vector<256x256xf32>, vector<32x256xf32> -> vector<32x256xf32>
    %c0_21 = arith.constant 0 : index
    %c1_22 = arith.constant 1 : index
    %c0_23 = arith.constant 0 : index
    %c0_24 = arith.constant 0 : index
    %18 = vector.load %arg6[%c0_21, %c1_22, %c0_23, %c0_24] : memref<3x3x256x256xf32, #tpu.memory_space<vmem>>, vector<1x1x256x256xf32>
    %19 = vector.shape_cast %18 : vector<1x1x256x256xf32> to vector<256x256xf32>
    %cst_25 = arith.constant dense<0.000000e+00> : vector<32x256xf32>
    %20 = tpu.matmul %11, %19, %cst_25 {dimension_numbers = #tpu.dot_dimension_numbers<[1], [0], [0], [1], [0, 0, 1, 1], [], []>} : vector<32x256xf32>, vector<256x256xf32>, vector<32x256xf32> -> vector<32x256xf32>
    %21 = arith.addf %17, %20 : vector<32x256xf32>
    %c0_26 = arith.constant 0 : index
    %c2_27 = arith.constant 2 : index
    %c0_28 = arith.constant 0 : index
    %c0_29 = arith.constant 0 : index
    %22 = vector.load %arg6[%c0_26, %c2_27, %c0_28, %c0_29] : memref<3x3x256x256xf32, #tpu.memory_space<vmem>>, vector<1x1x256x256xf32>
    %23 = vector.shape_cast %22 : vector<1x1x256x256xf32> to vector<256x256xf32>
    %cst_30 = arith.constant dense<0.000000e+00> : vector<32x256xf32>
    %24 = tpu.matmul %14, %23, %cst_30 {dimension_numbers = #tpu.dot_dimension_numbers<[1], [0], [0], [1], [0, 0, 1, 1], [], []>} : vector<32x256xf32>, vector<256x256xf32>, vector<32x256xf32> -> vector<32x256xf32>
    %25 = arith.addf %21, %24 : vector<32x256xf32>
    %26 = vector.shape_cast %5 : vector<256xf32> to vector<1x256xf32>
    %27 = vector.broadcast %26 : vector<1x256xf32> to vector<32x256xf32>
    %28 = arith.mulf %27, %25 : vector<32x256xf32>
    %c1_31 = arith.constant 1 : index
    %c0_32 = arith.constant 0 : index
    %29 = vector.load %arg15[%c1_31, %c0_32] : memref<8x256xf32, #tpu.memory_space<vmem>>, vector<1x256xf32>
    %30 = vector.shape_cast %29 : vector<1x256xf32> to vector<256xf32>
    %31 = vector.shape_cast %30 : vector<256xf32> to vector<1x256xf32>
    %32 = vector.broadcast %31 : vector<1x256xf32> to vector<32x256xf32>
    %33 = arith.addf %28, %32 : vector<32x256xf32>
    %c2_33 = arith.constant 2 : index
    %c0_34 = arith.constant 0 : index
    %34 = vector.load %arg15[%c2_33, %c0_34] : memref<8x256xf32, #tpu.memory_space<vmem>>, vector<1x256xf32>
    %35 = vector.shape_cast %34 : vector<1x256xf32> to vector<256xf32>
    %c0_35 = arith.constant 0 : index
    %c0_36 = arith.constant 0 : index
    %c0_37 = arith.constant 0 : index
    %36 = vector.load %arg3[%c0_35, %c0_36, %c0_37] : memref<3x32x32xf32, #tpu.memory_space<vmem>>, vector<1x32x32xf32>
    %37 = vector.shape_cast %36 : vector<1x32x32xf32> to vector<32x32xf32>
    %cst_38 = arith.constant dense<0.000000e+00> : vector<32x256xf32>
    %38 = tpu.matmul %37, %33, %cst_38 {dimension_numbers = #tpu.dot_dimension_numbers<[1], [0], [0], [1], [0, 0, 1, 1], [], []>} : vector<32x32xf32>, vector<32x256xf32>, vector<32x256xf32> -> vector<32x256xf32>
    %c1_39 = arith.constant 1 : index
    %c0_40 = arith.constant 0 : index
    %c0_41 = arith.constant 0 : index
    %39 = vector.load %arg3[%c1_39, %c0_40, %c0_41] : memref<3x32x32xf32, #tpu.memory_space<vmem>>, vector<1x32x32xf32>
    %40 = vector.shape_cast %39 : vector<1x32x32xf32> to vector<32x32xf32>
    %cst_42 = arith.constant dense<0.000000e+00> : vector<32x256xf32>
    %41 = tpu.matmul %40, %33, %cst_42 {dimension_numbers = #tpu.dot_dimension_numbers<[1], [0], [0], [1], [0, 0, 1, 1], [], []>} : vector<32x32xf32>, vector<32x256xf32>, vector<32x256xf32> -> vector<32x256xf32>
    %c2_43 = arith.constant 2 : index
    %c0_44 = arith.constant 0 : index
    %c0_45 = arith.constant 0 : index
    %42 = vector.load %arg3[%c2_43, %c0_44, %c0_45] : memref<3x32x32xf32, #tpu.memory_space<vmem>>, vector<1x32x32xf32>
    %43 = vector.shape_cast %42 : vector<1x32x32xf32> to vector<32x32xf32>
    %cst_46 = arith.constant dense<0.000000e+00> : vector<32x256xf32>
    %44 = tpu.matmul %43, %33, %cst_46 {dimension_numbers = #tpu.dot_dimension_numbers<[1], [0], [0], [1], [0, 0, 1, 1], [], []>} : vector<32x32xf32>, vector<32x256xf32>, vector<32x256xf32> -> vector<32x256xf32>
    %c1_47 = arith.constant 1 : index
    %c0_48 = arith.constant 0 : index
    %c0_49 = arith.constant 0 : index
    %c0_50 = arith.constant 0 : index
    %45 = vector.load %arg6[%c1_47, %c0_48, %c0_49, %c0_50] : memref<3x3x256x256xf32, #tpu.memory_space<vmem>>, vector<1x1x256x256xf32>
    %46 = vector.shape_cast %45 : vector<1x1x256x256xf32> to vector<256x256xf32>
    %cst_51 = arith.constant dense<0.000000e+00> : vector<32x256xf32>
    %47 = tpu.matmul %38, %46, %cst_51 {dimension_numbers = #tpu.dot_dimension_numbers<[1], [0], [0], [1], [0, 0, 1, 1], [], []>} : vector<32x256xf32>, vector<256x256xf32>, vector<32x256xf32> -> vector<32x256xf32>
    %c1_52 = arith.constant 1 : index
    %c1_53 = arith.constant 1 : index
    %c0_54 = arith.constant 0 : index
    %c0_55 = arith.constant 0 : index
    %48 = vector.load %arg6[%c1_52, %c1_53, %c0_54, %c0_55] : memref<3x3x256x256xf32, #tpu.memory_space<vmem>>, vector<1x1x256x256xf32>
    %49 = vector.shape_cast %48 : vector<1x1x256x256xf32> to vector<256x256xf32>
    %cst_56 = arith.constant dense<0.000000e+00> : vector<32x256xf32>
    %50 = tpu.matmul %41, %49, %cst_56 {dimension_numbers = #tpu.dot_dimension_numbers<[1], [0], [0], [1], [0, 0, 1, 1], [], []>} : vector<32x256xf32>, vector<256x256xf32>, vector<32x256xf32> -> vector<32x256xf32>
    %51 = arith.addf %47, %50 : vector<32x256xf32>
    %c1_57 = arith.constant 1 : index
    %c2_58 = arith.constant 2 : index
    %c0_59 = arith.constant 0 : index
    %c0_60 = arith.constant 0 : index
    %52 = vector.load %arg6[%c1_57, %c2_58, %c0_59, %c0_60] : memref<3x3x256x256xf32, #tpu.memory_space<vmem>>, vector<1x1x256x256xf32>
    %53 = vector.shape_cast %52 : vector<1x1x256x256xf32> to vector<256x256xf32>
    %cst_61 = arith.constant dense<0.000000e+00> : vector<32x256xf32>
    %54 = tpu.matmul %44, %53, %cst_61 {dimension_numbers = #tpu.dot_dimension_numbers<[1], [0], [0], [1], [0, 0, 1, 1], [], []>} : vector<32x256xf32>, vector<256x256xf32>, vector<32x256xf32> -> vector<32x256xf32>
    %55 = arith.addf %51, %54 : vector<32x256xf32>
    %56 = vector.shape_cast %35 : vector<256xf32> to vector<1x256xf32>
    %57 = vector.broadcast %56 : vector<1x256xf32> to vector<32x256xf32>
    %58 = arith.mulf %57, %55 : vector<32x256xf32>
    %c3 = arith.constant 3 : index
    %c0_62 = arith.constant 0 : index
    %59 = vector.load %arg15[%c3, %c0_62] : memref<8x256xf32, #tpu.memory_space<vmem>>, vector<1x256xf32>
    %60 = vector.shape_cast %59 : vector<1x256xf32> to vector<256xf32>
    %61 = vector.shape_cast %60 : vector<256xf32> to vector<1x256xf32>
    %62 = vector.broadcast %61 : vector<1x256xf32> to vector<32x256xf32>
    %63 = arith.addf %58, %62 : vector<32x256xf32>
    %c4 = arith.constant 4 : index
    %c0_63 = arith.constant 0 : index
    %64 = vector.load %arg15[%c4, %c0_63] : memref<8x256xf32, #tpu.memory_space<vmem>>, vector<1x256xf32>
    %65 = vector.shape_cast %64 : vector<1x256xf32> to vector<256xf32>
    %c0_64 = arith.constant 0 : index
    %c0_65 = arith.constant 0 : index
    %66 = vector.load %arg9[%c0_64, %c0_65] : memref<256x256xf32, #tpu.memory_space<vmem>>, vector<256x256xf32>
    %cst_66 = arith.constant dense<0.000000e+00> : vector<32x256xf32>
    %67 = tpu.matmul %63, %66, %cst_66 {dimension_numbers = #tpu.dot_dimension_numbers<[1], [0], [0], [1], [0, 0, 1, 1], [], []>} : vector<32x256xf32>, vector<256x256xf32>, vector<32x256xf32> -> vector<32x256xf32>
    %68 = vector.shape_cast %65 : vector<256xf32> to vector<1x256xf32>
    %69 = vector.broadcast %68 : vector<1x256xf32> to vector<32x256xf32>
    %70 = arith.mulf %69, %67 : vector<32x256xf32>
    %c5 = arith.constant 5 : index
    %c0_67 = arith.constant 0 : index
    %71 = vector.load %arg15[%c5, %c0_67] : memref<8x256xf32, #tpu.memory_space<vmem>>, vector<1x256xf32>
    %72 = vector.shape_cast %71 : vector<1x256xf32> to vector<256xf32>
    %73 = vector.shape_cast %72 : vector<256xf32> to vector<1x256xf32>
    %74 = vector.broadcast %73 : vector<1x256xf32> to vector<32x256xf32>
    %75 = arith.addf %70, %74 : vector<32x256xf32>
    %cst_68 = arith.constant 0.000000e+00 : f32
    %76 = vector.broadcast %cst_68 : f32 to vector<32x256xf32>
    %77 = arith.maximumf %75, %76 : vector<32x256xf32>
    %c0_69 = arith.constant 0 : index
    %c0_70 = arith.constant 0 : index
    %78 = vector.load %arg16[%c0_69, %c0_70] : memref<2x128xf32, #tpu.memory_space<vmem>>, vector<1x128xf32>
    %79 = vector.shape_cast %78 : vector<1x128xf32> to vector<128xf32>
    %c0_71 = arith.constant 0 : index
    %c0_72 = arith.constant 0 : index
    %c0_73 = arith.constant 0 : index
    %80 = vector.load %arg5[%c0_71, %c0_72, %c0_73] : memref<3x16x32xf32, #tpu.memory_space<vmem>>, vector<1x16x32xf32>
    %81 = vector.shape_cast %80 : vector<1x16x32xf32> to vector<16x32xf32>
    %cst_74 = arith.constant dense<0.000000e+00> : vector<16x256xf32>
    %82 = tpu.matmul %81, %1, %cst_74 {dimension_numbers = #tpu.dot_dimension_numbers<[1], [0], [0], [1], [0, 0, 1, 1], [], []>} : vector<16x32xf32>, vector<32x256xf32>, vector<16x256xf32> -> vector<16x256xf32>
    %c1_75 = arith.constant 1 : index
    %c0_76 = arith.constant 0 : index
    %c0_77 = arith.constant 0 : index
    %83 = vector.load %arg5[%c1_75, %c0_76, %c0_77] : memref<3x16x32xf32, #tpu.memory_space<vmem>>, vector<1x16x32xf32>
    %84 = vector.shape_cast %83 : vector<1x16x32xf32> to vector<16x32xf32>
    %cst_78 = arith.constant dense<0.000000e+00> : vector<16x256xf32>
    %85 = tpu.matmul %84, %1, %cst_78 {dimension_numbers = #tpu.dot_dimension_numbers<[1], [0], [0], [1], [0, 0, 1, 1], [], []>} : vector<16x32xf32>, vector<32x256xf32>, vector<16x256xf32> -> vector<16x256xf32>
    %c2_79 = arith.constant 2 : index
    %c0_80 = arith.constant 0 : index
    %c0_81 = arith.constant 0 : index
    %86 = vector.load %arg5[%c2_79, %c0_80, %c0_81] : memref<3x16x32xf32, #tpu.memory_space<vmem>>, vector<1x16x32xf32>
    %87 = vector.shape_cast %86 : vector<1x16x32xf32> to vector<16x32xf32>
    %cst_82 = arith.constant dense<0.000000e+00> : vector<16x256xf32>
    %88 = tpu.matmul %87, %1, %cst_82 {dimension_numbers = #tpu.dot_dimension_numbers<[1], [0], [0], [1], [0, 0, 1, 1], [], []>} : vector<16x32xf32>, vector<32x256xf32>, vector<16x256xf32> -> vector<16x256xf32>
    %c0_83 = arith.constant 0 : index
    %c0_84 = arith.constant 0 : index
    %c0_85 = arith.constant 0 : index
    %89 = vector.load %arg8[%c0_83, %c0_84, %c0_85] : memref<3x256x128xf32, #tpu.memory_space<vmem>>, vector<1x256x128xf32>
    %90 = vector.shape_cast %89 : vector<1x256x128xf32> to vector<256x128xf32>
    %cst_86 = arith.constant dense<0.000000e+00> : vector<16x128xf32>
    %91 = tpu.matmul %82, %90, %cst_86 {dimension_numbers = #tpu.dot_dimension_numbers<[1], [0], [0], [1], [0, 0, 1, 1], [], []>} : vector<16x256xf32>, vector<256x128xf32>, vector<16x128xf32> -> vector<16x128xf32>
    %c1_87 = arith.constant 1 : index
    %c0_88 = arith.constant 0 : index
    %c0_89 = arith.constant 0 : index
    %92 = vector.load %arg8[%c1_87, %c0_88, %c0_89] : memref<3x256x128xf32, #tpu.memory_space<vmem>>, vector<1x256x128xf32>
    %93 = vector.shape_cast %92 : vector<1x256x128xf32> to vector<256x128xf32>
    %cst_90 = arith.constant dense<0.000000e+00> : vector<16x128xf32>
    %94 = tpu.matmul %85, %93, %cst_90 {dimension_numbers = #tpu.dot_dimension_numbers<[1], [0], [0], [1], [0, 0, 1, 1], [], []>} : vector<16x256xf32>, vector<256x128xf32>, vector<16x128xf32> -> vector<16x128xf32>
    %95 = arith.addf %91, %94 : vector<16x128xf32>
    %c2_91 = arith.constant 2 : index
    %c0_92 = arith.constant 0 : index
    %c0_93 = arith.constant 0 : index
    %96 = vector.load %arg8[%c2_91, %c0_92, %c0_93] : memref<3x256x128xf32, #tpu.memory_space<vmem>>, vector<1x256x128xf32>
    %97 = vector.shape_cast %96 : vector<1x256x128xf32> to vector<256x128xf32>
    %cst_94 = arith.constant dense<0.000000e+00> : vector<16x128xf32>
    %98 = tpu.matmul %88, %97, %cst_94 {dimension_numbers = #tpu.dot_dimension_numbers<[1], [0], [0], [1], [0, 0, 1, 1], [], []>} : vector<16x256xf32>, vector<256x128xf32>, vector<16x128xf32> -> vector<16x128xf32>
    %99 = arith.addf %95, %98 : vector<16x128xf32>
    %100 = vector.shape_cast %79 : vector<128xf32> to vector<1x128xf32>
    %101 = vector.broadcast %100 : vector<1x128xf32> to vector<16x128xf32>
    %102 = arith.mulf %101, %99 : vector<16x128xf32>
    %c1_95 = arith.constant 1 : index
    %c0_96 = arith.constant 0 : index
    %103 = vector.load %arg16[%c1_95, %c0_96] : memref<2x128xf32, #tpu.memory_space<vmem>>, vector<1x128xf32>
    %104 = vector.shape_cast %103 : vector<1x128xf32> to vector<128xf32>
    %105 = vector.shape_cast %104 : vector<128xf32> to vector<1x128xf32>
    %106 = vector.broadcast %105 : vector<1x128xf32> to vector<16x128xf32>
    %107 = arith.addf %102, %106 : vector<16x128xf32>
    %c0_97 = arith.constant 0 : index
    %c0_98 = arith.constant 0 : index
    %108 = vector.load %arg11[%c0_97, %c0_98] : memref<8x16xf32, #tpu.memory_space<vmem>>, vector<8x16xf32>
    %cst_99 = arith.constant dense<0.000000e+00> : vector<8x128xf32>
    %109 = tpu.matmul %108, %107, %cst_99 {dimension_numbers = #tpu.dot_dimension_numbers<[1], [0], [0], [1], [0, 0, 1, 1], [], []>} : vector<8x16xf32>, vector<16x128xf32>, vector<8x128xf32> -> vector<8x128xf32>
    %c0_100 = arith.constant 0 : index
    %c0_101 = arith.constant 0 : index
    %110 = vector.load %arg12[%c0_100, %c0_101] : memref<128x64xf32, #tpu.memory_space<vmem>>, vector<128x64xf32>
    %cst_102 = arith.constant dense<0.000000e+00> : vector<8x64xf32>
    %111 = tpu.matmul %109, %110, %cst_102 {dimension_numbers = #tpu.dot_dimension_numbers<[1], [0], [0], [1], [0, 0, 1, 1], [], []>} : vector<8x128xf32>, vector<128x64xf32>, vector<8x64xf32> -> vector<8x64xf32>
    %c0_103 = arith.constant 0 : index
    %c0_104 = arith.constant 0 : index
    %c0_105 = arith.constant 0 : index
    %112 = vector.load %arg4[%c0_103, %c0_104, %c0_105] : memref<3x8x8xf32, #tpu.memory_space<vmem>>, vector<1x8x8xf32>
    %113 = vector.shape_cast %112 : vector<1x8x8xf32> to vector<8x8xf32>
    %cst_106 = arith.constant dense<0.000000e+00> : vector<8x64xf32>
    %114 = tpu.matmul %113, %3, %cst_106 {dimension_numbers = #tpu.dot_dimension_numbers<[1], [0], [0], [1], [0, 0, 1, 1], [], []>} : vector<8x8xf32>, vector<8x64xf32>, vector<8x64xf32> -> vector<8x64xf32>
    %c1_107 = arith.constant 1 : index
    %c0_108 = arith.constant 0 : index
    %c0_109 = arith.constant 0 : index
    %115 = vector.load %arg4[%c1_107, %c0_108, %c0_109] : memref<3x8x8xf32, #tpu.memory_space<vmem>>, vector<1x8x8xf32>
    %116 = vector.shape_cast %115 : vector<1x8x8xf32> to vector<8x8xf32>
    %cst_110 = arith.constant dense<0.000000e+00> : vector<8x64xf32>
    %117 = tpu.matmul %116, %3, %cst_110 {dimension_numbers = #tpu.dot_dimension_numbers<[1], [0], [0], [1], [0, 0, 1, 1], [], []>} : vector<8x8xf32>, vector<8x64xf32>, vector<8x64xf32> -> vector<8x64xf32>
    %c2_111 = arith.constant 2 : index
    %c0_112 = arith.constant 0 : index
    %c0_113 = arith.constant 0 : index
    %118 = vector.load %arg4[%c2_111, %c0_112, %c0_113] : memref<3x8x8xf32, #tpu.memory_space<vmem>>, vector<1x8x8xf32>
    %119 = vector.shape_cast %118 : vector<1x8x8xf32> to vector<8x8xf32>
    %cst_114 = arith.constant dense<0.000000e+00> : vector<8x64xf32>
    %120 = tpu.matmul %119, %3, %cst_114 {dimension_numbers = #tpu.dot_dimension_numbers<[1], [0], [0], [1], [0, 0, 1, 1], [], []>} : vector<8x8xf32>, vector<8x64xf32>, vector<8x64xf32> -> vector<8x64xf32>
    %c0_115 = arith.constant 0 : index
    %c0_116 = arith.constant 0 : index
    %121 = vector.load %arg17[%c0_115, %c0_116] : memref<5x64xf32, #tpu.memory_space<vmem>>, vector<1x64xf32>
    %122 = vector.shape_cast %121 : vector<1x64xf32> to vector<64xf32>
    %c0_117 = arith.constant 0 : index
    %c0_118 = arith.constant 0 : index
    %c0_119 = arith.constant 0 : index
    %c0_120 = arith.constant 0 : index
    %123 = vector.load %arg7[%c0_117, %c0_118, %c0_119, %c0_120] : memref<2x3x64x64xf32, #tpu.memory_space<vmem>>, vector<1x1x64x64xf32>
    %124 = vector.shape_cast %123 : vector<1x1x64x64xf32> to vector<64x64xf32>
    %cst_121 = arith.constant dense<0.000000e+00> : vector<8x64xf32>
    %125 = tpu.matmul %114, %124, %cst_121 {dimension_numbers = #tpu.dot_dimension_numbers<[1], [0], [0], [1], [0, 0, 1, 1], [], []>} : vector<8x64xf32>, vector<64x64xf32>, vector<8x64xf32> -> vector<8x64xf32>
    %c0_122 = arith.constant 0 : index
    %c1_123 = arith.constant 1 : index
    %c0_124 = arith.constant 0 : index
    %c0_125 = arith.constant 0 : index
    %126 = vector.load %arg7[%c0_122, %c1_123, %c0_124, %c0_125] : memref<2x3x64x64xf32, #tpu.memory_space<vmem>>, vector<1x1x64x64xf32>
    %127 = vector.shape_cast %126 : vector<1x1x64x64xf32> to vector<64x64xf32>
    %cst_126 = arith.constant dense<0.000000e+00> : vector<8x64xf32>
    %128 = tpu.matmul %117, %127, %cst_126 {dimension_numbers = #tpu.dot_dimension_numbers<[1], [0], [0], [1], [0, 0, 1, 1], [], []>} : vector<8x64xf32>, vector<64x64xf32>, vector<8x64xf32> -> vector<8x64xf32>
    %129 = arith.addf %125, %128 : vector<8x64xf32>
    %c0_127 = arith.constant 0 : index
    %c2_128 = arith.constant 2 : index
    %c0_129 = arith.constant 0 : index
    %c0_130 = arith.constant 0 : index
    %130 = vector.load %arg7[%c0_127, %c2_128, %c0_129, %c0_130] : memref<2x3x64x64xf32, #tpu.memory_space<vmem>>, vector<1x1x64x64xf32>
    %131 = vector.shape_cast %130 : vector<1x1x64x64xf32> to vector<64x64xf32>
    %cst_131 = arith.constant dense<0.000000e+00> : vector<8x64xf32>
    %132 = tpu.matmul %120, %131, %cst_131 {dimension_numbers = #tpu.dot_dimension_numbers<[1], [0], [0], [1], [0, 0, 1, 1], [], []>} : vector<8x64xf32>, vector<64x64xf32>, vector<8x64xf32> -> vector<8x64xf32>
    %133 = arith.addf %129, %132 : vector<8x64xf32>
    %134 = vector.shape_cast %122 : vector<64xf32> to vector<1x64xf32>
    %135 = vector.broadcast %134 : vector<1x64xf32> to vector<8x64xf32>
    %136 = arith.mulf %135, %133 : vector<8x64xf32>
    %c1_132 = arith.constant 1 : index
    %c0_133 = arith.constant 0 : index
    %137 = vector.load %arg17[%c1_132, %c0_133] : memref<5x64xf32, #tpu.memory_space<vmem>>, vector<1x64xf32>
    %138 = vector.shape_cast %137 : vector<1x64xf32> to vector<64xf32>
    %139 = vector.shape_cast %138 : vector<64xf32> to vector<1x64xf32>
    %140 = vector.broadcast %139 : vector<1x64xf32> to vector<8x64xf32>
    %141 = arith.addf %136, %140 : vector<8x64xf32>
    %cst_134 = arith.constant 0.000000e+00 : f32
    %142 = vector.broadcast %cst_134 : f32 to vector<8x64xf32>
    %143 = arith.subf %142, %141 : vector<8x64xf32>
    %144 = math.exp %143 : vector<8x64xf32>
    %cst_135 = arith.constant 1.000000e+00 : f32
    %145 = vector.broadcast %cst_135 : f32 to vector<8x64xf32>
    %146 = arith.addf %145, %144 : vector<8x64xf32>
    %147 = tpu.reciprocal %146 {approx = true} : vector<8x64xf32> -> vector<8x64xf32>
    %c2_136 = arith.constant 2 : index
    %c0_137 = arith.constant 0 : index
    %148 = vector.load %arg17[%c2_136, %c0_137] : memref<5x64xf32, #tpu.memory_space<vmem>>, vector<1x64xf32>
    %149 = vector.shape_cast %148 : vector<1x64xf32> to vector<64xf32>
    %c1_138 = arith.constant 1 : index
    %c0_139 = arith.constant 0 : index
    %c0_140 = arith.constant 0 : index
    %c0_141 = arith.constant 0 : index
    %150 = vector.load %arg7[%c1_138, %c0_139, %c0_140, %c0_141] : memref<2x3x64x64xf32, #tpu.memory_space<vmem>>, vector<1x1x64x64xf32>
    %151 = vector.shape_cast %150 : vector<1x1x64x64xf32> to vector<64x64xf32>
    %cst_142 = arith.constant dense<0.000000e+00> : vector<8x64xf32>
    %152 = tpu.matmul %114, %151, %cst_142 {dimension_numbers = #tpu.dot_dimension_numbers<[1], [0], [0], [1], [0, 0, 1, 1], [], []>} : vector<8x64xf32>, vector<64x64xf32>, vector<8x64xf32> -> vector<8x64xf32>
    %c1_143 = arith.constant 1 : index
    %c1_144 = arith.constant 1 : index
    %c0_145 = arith.constant 0 : index
    %c0_146 = arith.constant 0 : index
    %153 = vector.load %arg7[%c1_143, %c1_144, %c0_145, %c0_146] : memref<2x3x64x64xf32, #tpu.memory_space<vmem>>, vector<1x1x64x64xf32>
    %154 = vector.shape_cast %153 : vector<1x1x64x64xf32> to vector<64x64xf32>
    %cst_147 = arith.constant dense<0.000000e+00> : vector<8x64xf32>
    %155 = tpu.matmul %117, %154, %cst_147 {dimension_numbers = #tpu.dot_dimension_numbers<[1], [0], [0], [1], [0, 0, 1, 1], [], []>} : vector<8x64xf32>, vector<64x64xf32>, vector<8x64xf32> -> vector<8x64xf32>
    %156 = arith.addf %152, %155 : vector<8x64xf32>
    %c1_148 = arith.constant 1 : index
    %c2_149 = arith.constant 2 : index
    %c0_150 = arith.constant 0 : index
    %c0_151 = arith.constant 0 : index
    %157 = vector.load %arg7[%c1_148, %c2_149, %c0_150, %c0_151] : memref<2x3x64x64xf32, #tpu.memory_space<vmem>>, vector<1x1x64x64xf32>
    %158 = vector.shape_cast %157 : vector<1x1x64x64xf32> to vector<64x64xf32>
    %cst_152 = arith.constant dense<0.000000e+00> : vector<8x64xf32>
    %159 = tpu.matmul %120, %158, %cst_152 {dimension_numbers = #tpu.dot_dimension_numbers<[1], [0], [0], [1], [0, 0, 1, 1], [], []>} : vector<8x64xf32>, vector<64x64xf32>, vector<8x64xf32> -> vector<8x64xf32>
    %160 = arith.addf %156, %159 : vector<8x64xf32>
    %161 = vector.shape_cast %149 : vector<64xf32> to vector<1x64xf32>
    %162 = vector.broadcast %161 : vector<1x64xf32> to vector<8x64xf32>
    %163 = arith.mulf %162, %160 : vector<8x64xf32>
    %c3_153 = arith.constant 3 : index
    %c0_154 = arith.constant 0 : index
    %164 = vector.load %arg17[%c3_153, %c0_154] : memref<5x64xf32, #tpu.memory_space<vmem>>, vector<1x64xf32>
    %165 = vector.shape_cast %164 : vector<1x64xf32> to vector<64xf32>
    %166 = vector.shape_cast %165 : vector<64xf32> to vector<1x64xf32>
    %167 = vector.broadcast %166 : vector<1x64xf32> to vector<8x64xf32>
    %168 = arith.addf %163, %167 : vector<8x64xf32>
    %c0_155 = arith.constant 0 : index
    %c0_156 = arith.constant 0 : index
    %169 = vector.load %arg10[%c0_155, %c0_156] : memref<64x64xf32, #tpu.memory_space<vmem>>, vector<64x64xf32>
    %cst_157 = arith.constant dense<0.000000e+00> : vector<8x64xf32>
    %170 = tpu.matmul %168, %169, %cst_157 {dimension_numbers = #tpu.dot_dimension_numbers<[1], [0], [0], [1], [0, 0, 1, 1], [], []>} : vector<8x64xf32>, vector<64x64xf32>, vector<8x64xf32> -> vector<8x64xf32>
    %c4_158 = arith.constant 4 : index
    %c0_159 = arith.constant 0 : index
    %171 = vector.load %arg17[%c4_158, %c0_159] : memref<5x64xf32, #tpu.memory_space<vmem>>, vector<1x64xf32>
    %172 = vector.shape_cast %171 : vector<1x64xf32> to vector<64xf32>
    %173 = vector.shape_cast %172 : vector<64xf32> to vector<1x64xf32>
    %174 = vector.broadcast %173 : vector<1x64xf32> to vector<8x64xf32>
    %175 = arith.addf %170, %174 : vector<8x64xf32>
    %cst_160 = arith.constant 0.000000e+00 : f32
    %176 = vector.broadcast %cst_160 : f32 to vector<8x64xf32>
    %177 = arith.subf %176, %175 : vector<8x64xf32>
    %178 = math.exp %177 : vector<8x64xf32>
    %cst_161 = arith.constant 1.000000e+00 : f32
    %179 = vector.broadcast %cst_161 : f32 to vector<8x64xf32>
    %180 = arith.addf %179, %178 : vector<8x64xf32>
    %181 = tpu.reciprocal %180 {approx = true} : vector<8x64xf32> -> vector<8x64xf32>
    %182 = arith.mulf %111, %181 : vector<8x64xf32>
    %c0_162 = arith.constant 0 : index
    %c0_163 = arith.constant 0 : index
    %183 = vector.load %arg13[%c0_162, %c0_163] : memref<32x8xf32, #tpu.memory_space<vmem>>, vector<32x8xf32>
    %cst_164 = arith.constant dense<0.000000e+00> : vector<32x64xf32>
    %184 = tpu.matmul %183, %147, %cst_164 {dimension_numbers = #tpu.dot_dimension_numbers<[1], [0], [0], [1], [0, 0, 1, 1], [], []>} : vector<32x8xf32>, vector<8x64xf32>, vector<32x64xf32> -> vector<32x64xf32>
    %c0_165 = arith.constant 0 : index
    %c0_166 = arith.constant 0 : index
    %185 = vector.load %arg14[%c0_165, %c0_166] : memref<64x256xf32, #tpu.memory_space<vmem>>, vector<64x256xf32>
    %cst_167 = arith.constant dense<0.000000e+00> : vector<32x256xf32>
    %186 = tpu.matmul %184, %185, %cst_167 {dimension_numbers = #tpu.dot_dimension_numbers<[1], [0], [0], [1], [0, 0, 1, 1], [], []>} : vector<32x64xf32>, vector<64x256xf32>, vector<32x256xf32> -> vector<32x256xf32>
    %c0_168 = arith.constant 0 : index
    %c0_169 = arith.constant 0 : index
    %187 = vector.load %arg13[%c0_168, %c0_169] : memref<32x8xf32, #tpu.memory_space<vmem>>, vector<32x8xf32>
    %cst_170 = arith.constant dense<0.000000e+00> : vector<32x64xf32>
    %188 = tpu.matmul %187, %182, %cst_170 {dimension_numbers = #tpu.dot_dimension_numbers<[1], [0], [0], [1], [0, 0, 1, 1], [], []>} : vector<32x8xf32>, vector<8x64xf32>, vector<32x64xf32> -> vector<32x64xf32>
    %c0_171 = arith.constant 0 : index
    %c0_172 = arith.constant 0 : index
    %189 = vector.load %arg14[%c0_171, %c0_172] : memref<64x256xf32, #tpu.memory_space<vmem>>, vector<64x256xf32>
    %cst_173 = arith.constant dense<0.000000e+00> : vector<32x256xf32>
    %190 = tpu.matmul %188, %189, %cst_173 {dimension_numbers = #tpu.dot_dimension_numbers<[1], [0], [0], [1], [0, 0, 1, 1], [], []>} : vector<32x64xf32>, vector<64x256xf32>, vector<32x256xf32> -> vector<32x256xf32>
    %191 = arith.mulf %77, %186 : vector<32x256xf32>
    %192 = arith.addf %191, %190 : vector<32x256xf32>
    %c6 = arith.constant 6 : index
    %c0_174 = arith.constant 0 : index
    %193 = vector.load %arg15[%c6, %c0_174] : memref<8x256xf32, #tpu.memory_space<vmem>>, vector<1x256xf32>
    %194 = vector.shape_cast %193 : vector<1x256xf32> to vector<256xf32>
    %c0_175 = arith.constant 0 : index
    %c0_176 = arith.constant 0 : index
    %c0_177 = arith.constant 0 : index
    %195 = vector.load %arg3[%c0_175, %c0_176, %c0_177] : memref<3x32x32xf32, #tpu.memory_space<vmem>>, vector<1x32x32xf32>
    %196 = vector.shape_cast %195 : vector<1x32x32xf32> to vector<32x32xf32>
    %cst_178 = arith.constant dense<0.000000e+00> : vector<32x256xf32>
    %197 = tpu.matmul %196, %192, %cst_178 {dimension_numbers = #tpu.dot_dimension_numbers<[1], [0], [0], [1], [0, 0, 1, 1], [], []>} : vector<32x32xf32>, vector<32x256xf32>, vector<32x256xf32> -> vector<32x256xf32>
    %c1_179 = arith.constant 1 : index
    %c0_180 = arith.constant 0 : index
    %c0_181 = arith.constant 0 : index
    %198 = vector.load %arg3[%c1_179, %c0_180, %c0_181] : memref<3x32x32xf32, #tpu.memory_space<vmem>>, vector<1x32x32xf32>
    %199 = vector.shape_cast %198 : vector<1x32x32xf32> to vector<32x32xf32>
    %cst_182 = arith.constant dense<0.000000e+00> : vector<32x256xf32>
    %200 = tpu.matmul %199, %192, %cst_182 {dimension_numbers = #tpu.dot_dimension_numbers<[1], [0], [0], [1], [0, 0, 1, 1], [], []>} : vector<32x32xf32>, vector<32x256xf32>, vector<32x256xf32> -> vector<32x256xf32>
    %c2_183 = arith.constant 2 : index
    %c0_184 = arith.constant 0 : index
    %c0_185 = arith.constant 0 : index
    %201 = vector.load %arg3[%c2_183, %c0_184, %c0_185] : memref<3x32x32xf32, #tpu.memory_space<vmem>>, vector<1x32x32xf32>
    %202 = vector.shape_cast %201 : vector<1x32x32xf32> to vector<32x32xf32>
    %cst_186 = arith.constant dense<0.000000e+00> : vector<32x256xf32>
    %203 = tpu.matmul %202, %192, %cst_186 {dimension_numbers = #tpu.dot_dimension_numbers<[1], [0], [0], [1], [0, 0, 1, 1], [], []>} : vector<32x32xf32>, vector<32x256xf32>, vector<32x256xf32> -> vector<32x256xf32>
    %c2_187 = arith.constant 2 : index
    %c0_188 = arith.constant 0 : index
    %c0_189 = arith.constant 0 : index
    %c0_190 = arith.constant 0 : index
    %204 = vector.load %arg6[%c2_187, %c0_188, %c0_189, %c0_190] : memref<3x3x256x256xf32, #tpu.memory_space<vmem>>, vector<1x1x256x256xf32>
    %205 = vector.shape_cast %204 : vector<1x1x256x256xf32> to vector<256x256xf32>
    %cst_191 = arith.constant dense<0.000000e+00> : vector<32x256xf32>
    %206 = tpu.matmul %197, %205, %cst_191 {dimension_numbers = #tpu.dot_dimension_numbers<[1], [0], [0], [1], [0, 0, 1, 1], [], []>} : vector<32x256xf32>, vector<256x256xf32>, vector<32x256xf32> -> vector<32x256xf32>
    %c2_192 = arith.constant 2 : index
    %c1_193 = arith.constant 1 : index
    %c0_194 = arith.constant 0 : index
    %c0_195 = arith.constant 0 : index
    %207 = vector.load %arg6[%c2_192, %c1_193, %c0_194, %c0_195] : memref<3x3x256x256xf32, #tpu.memory_space<vmem>>, vector<1x1x256x256xf32>
    %208 = vector.shape_cast %207 : vector<1x1x256x256xf32> to vector<256x256xf32>
    %cst_196 = arith.constant dense<0.000000e+00> : vector<32x256xf32>
    %209 = tpu.matmul %200, %208, %cst_196 {dimension_numbers = #tpu.dot_dimension_numbers<[1], [0], [0], [1], [0, 0, 1, 1], [], []>} : vector<32x256xf32>, vector<256x256xf32>, vector<32x256xf32> -> vector<32x256xf32>
    %210 = arith.addf %206, %209 : vector<32x256xf32>
    %c2_197 = arith.constant 2 : index
    %c2_198 = arith.constant 2 : index
    %c0_199 = arith.constant 0 : index
    %c0_200 = arith.constant 0 : index
    %211 = vector.load %arg6[%c2_197, %c2_198, %c0_199, %c0_200] : memref<3x3x256x256xf32, #tpu.memory_space<vmem>>, vector<1x1x256x256xf32>
    %212 = vector.shape_cast %211 : vector<1x1x256x256xf32> to vector<256x256xf32>
    %cst_201 = arith.constant dense<0.000000e+00> : vector<32x256xf32>
    %213 = tpu.matmul %203, %212, %cst_201 {dimension_numbers = #tpu.dot_dimension_numbers<[1], [0], [0], [1], [0, 0, 1, 1], [], []>} : vector<32x256xf32>, vector<256x256xf32>, vector<32x256xf32> -> vector<32x256xf32>
    %214 = arith.addf %210, %213 : vector<32x256xf32>
    %215 = vector.shape_cast %194 : vector<256xf32> to vector<1x256xf32>
    %216 = vector.broadcast %215 : vector<1x256xf32> to vector<32x256xf32>
    %217 = arith.mulf %216, %214 : vector<32x256xf32>
    %c7 = arith.constant 7 : index
    %c0_202 = arith.constant 0 : index
    %218 = vector.load %arg15[%c7, %c0_202] : memref<8x256xf32, #tpu.memory_space<vmem>>, vector<1x256xf32>
    %219 = vector.shape_cast %218 : vector<1x256xf32> to vector<256xf32>
    %220 = vector.shape_cast %219 : vector<256xf32> to vector<1x256xf32>
    %221 = vector.broadcast %220 : vector<1x256xf32> to vector<32x256xf32>
    %222 = arith.addf %217, %221 : vector<32x256xf32>
    %cst_203 = arith.constant 0.000000e+00 : f32
    %223 = vector.broadcast %cst_203 : f32 to vector<32x256xf32>
    %224 = arith.maximumf %222, %223 : vector<32x256xf32>
    %c0_204 = arith.constant 0 : index
    %c0_205 = arith.constant 0 : index
    %c0_206 = arith.constant 0 : index
    %225 = vector.load %arg18[%c0_204, %c0_205, %c0_206] : memref<1x32x256xf32, #tpu.memory_space<vmem>>, vector<1x32x256xf32>
    %226 = vector.shape_cast %225 : vector<1x32x256xf32> to vector<32x256xf32>
    %227 = vector.shape_cast %224 : vector<32x256xf32> to vector<1x32x256xf32>
    tpu.vector_store %arg18[%c0_204, %c0_205, %c0_206], %227 {strides = array<i32>} : memref<1x32x256xf32, #tpu.memory_space<vmem>>, vector<1x32x256xf32>,
    return
  }
  func.func @transform_0(%arg0: i32) -> (i32, i32, i32) {
    %c0_i32 = arith.constant 0 : i32
    %c0_i32_0 = arith.constant 0 : i32
    %c0_i32_1 = arith.constant 0 : i32
    return %arg0, %c0_i32, %c0_i32_0 : i32, i32, i32
  }
  func.func @transform_1(%arg0: i32) -> (i32, i32, i32) {
    %c0_i32 = arith.constant 0 : i32
    %c0_i32_0 = arith.constant 0 : i32
    %c0_i32_1 = arith.constant 0 : i32
    return %arg0, %c0_i32, %c0_i32_0 : i32, i32, i32
  }
  func.func @transform_2(%arg0: i32) -> (i32, i32, i32) {
    %c0_i32 = arith.constant 0 : i32
    %c0_i32_0 = arith.constant 0 : i32
    %c0_i32_1 = arith.constant 0 : i32
    %c0_i32_2 = arith.constant 0 : i32
    return %c0_i32, %c0_i32_0, %c0_i32_1 : i32, i32, i32
  }
  func.func @transform_3(%arg0: i32) -> (i32, i32, i32) {
    %c0_i32 = arith.constant 0 : i32
    %c0_i32_0 = arith.constant 0 : i32
    %c0_i32_1 = arith.constant 0 : i32
    %c0_i32_2 = arith.constant 0 : i32
    return %c0_i32, %c0_i32_0, %c0_i32_1 : i32, i32, i32
  }
  func.func @transform_4(%arg0: i32) -> (i32, i32, i32) {
    %c0_i32 = arith.constant 0 : i32
    %c0_i32_0 = arith.constant 0 : i32
    %c0_i32_1 = arith.constant 0 : i32
    %c0_i32_2 = arith.constant 0 : i32
    return %c0_i32, %c0_i32_0, %c0_i32_1 : i32, i32, i32
  }
  func.func @transform_5(%arg0: i32) -> (i32, i32, i32, i32) {
    %c0_i32 = arith.constant 0 : i32
    %c0_i32_0 = arith.constant 0 : i32
    %c0_i32_1 = arith.constant 0 : i32
    %c0_i32_2 = arith.constant 0 : i32
    %c0_i32_3 = arith.constant 0 : i32
    return %c0_i32, %c0_i32_0, %c0_i32_1, %c0_i32_2 : i32, i32, i32, i32
  }
  func.func @transform_6(%arg0: i32) -> (i32, i32, i32, i32) {
    %c0_i32 = arith.constant 0 : i32
    %c0_i32_0 = arith.constant 0 : i32
    %c0_i32_1 = arith.constant 0 : i32
    %c0_i32_2 = arith.constant 0 : i32
    %c0_i32_3 = arith.constant 0 : i32
    return %c0_i32, %c0_i32_0, %c0_i32_1, %c0_i32_2 : i32, i32, i32, i32
  }
  func.func @transform_7(%arg0: i32) -> (i32, i32, i32) {
    %c0_i32 = arith.constant 0 : i32
    %c0_i32_0 = arith.constant 0 : i32
    %c0_i32_1 = arith.constant 0 : i32
    %c0_i32_2 = arith.constant 0 : i32
    return %c0_i32, %c0_i32_0, %c0_i32_1 : i32, i32, i32
  }
  func.func @transform_8(%arg0: i32) -> (i32, i32) {
    %c0_i32 = arith.constant 0 : i32
    %c0_i32_0 = arith.constant 0 : i32
    %c0_i32_1 = arith.constant 0 : i32
    return %c0_i32, %c0_i32_0 : i32, i32
  }
  func.func @transform_9(%arg0: i32) -> (i32, i32) {
    %c0_i32 = arith.constant 0 : i32
    %c0_i32_0 = arith.constant 0 : i32
    %c0_i32_1 = arith.constant 0 : i32
    return %c0_i32, %c0_i32_0 : i32, i32
  }
  func.func @transform_10(%arg0: i32) -> (i32, i32) {
    %c0_i32 = arith.constant 0 : i32
    %c0_i32_0 = arith.constant 0 : i32
    %c0_i32_1 = arith.constant 0 : i32
    return %c0_i32, %c0_i32_0 : i32, i32
  }
  func.func @transform_11(%arg0: i32) -> (i32, i32) {
    %c0_i32 = arith.constant 0 : i32
    %c0_i32_0 = arith.constant 0 : i32
    %c0_i32_1 = arith.constant 0 : i32
    return %c0_i32, %c0_i32_0 : i32, i32
  }
  func.func @transform_12(%arg0: i32) -> (i32, i32) {
    %c0_i32 = arith.constant 0 : i32
    %c0_i32_0 = arith.constant 0 : i32
    %c0_i32_1 = arith.constant 0 : i32
    return %c0_i32, %c0_i32_0 : i32, i32
  }
  func.func @transform_13(%arg0: i32) -> (i32, i32) {
    %c0_i32 = arith.constant 0 : i32
    %c0_i32_0 = arith.constant 0 : i32
    %c0_i32_1 = arith.constant 0 : i32
    return %c0_i32, %c0_i32_0 : i32, i32
  }
  func.func @transform_14(%arg0: i32) -> (i32, i32) {
    %c0_i32 = arith.constant 0 : i32
    %c0_i32_0 = arith.constant 0 : i32
    %c0_i32_1 = arith.constant 0 : i32
    return %c0_i32, %c0_i32_0 : i32, i32
  }
  func.func @transform_15(%arg0: i32) -> (i32, i32) {
    %c0_i32 = arith.constant 0 : i32
    %c0_i32_0 = arith.constant 0 : i32
    %c0_i32_1 = arith.constant 0 : i32
    return %c0_i32, %c0_i32_0 : i32, i32
  }
  func.func @transform_16(%arg0: i32) -> (i32, i32) {
    %c0_i32 = arith.constant 0 : i32
    %c0_i32_0 = arith.constant 0 : i32
    %c0_i32_1 = arith.constant 0 : i32
    return %c0_i32, %c0_i32_0 : i32, i32
  }
  func.func @transform_17(%arg0: i32) -> (i32, i32, i32) {
    %c0_i32 = arith.constant 0 : i32
    %c0_i32_0 = arith.constant 0 : i32
    %c0_i32_1 = arith.constant 0 : i32
    return %arg0, %c0_i32, %c0_i32_0 : i32, i32, i32
  }
}

</mosaic_0001>

<llo_original>
// kernel: cross_agg_layer.1
$region0: #{cross_agg_layer.1}
  #allocation0 [shape = 'u32[]', space=smem, size = 0x4, offset = 0x4, fixed_abs, tag = 'smem constant byte address 0x4 - core index']
  #allocation1 [shape = 'u32[72,128]{1,0:T(1,128)}', space=vmem, size = 0x9000, scoped, tag = 'internal scratch']
  %s0 = inlined_call_operand.vmem [shape: f32[2,32,256], index: 0, kind: input, shape index: {}]
  %s1 = inlined_call_operand.vmem [shape: f32[2,8,64], index: 1, kind: input, shape index: {}]
  %s2 = inlined_call_operand.hbm [shape: f32[3,32,32], index: 2, kind: input, shape index: {}]
  %s3 = inlined_call_operand.hbm [shape: f32[3,8,8], index: 3, kind: input, shape index: {}]
  %s4 = inlined_call_operand.hbm [shape: f32[3,16,32], index: 4, kind: input, shape index: {}]
  %s5 = inlined_call_operand.hbm [shape: f32[3,3,256,256], index: 5, kind: input, shape index: {}]
  %s6 = inlined_call_operand.hbm [shape: f32[2,3,64,64], index: 6, kind: input, shape index: {}]
  %s7 = inlined_call_operand.hbm [shape: f32[3,256,128], index: 7, kind: input, shape index: {}]
  %s8 = inlined_call_operand.hbm [shape: f32[256,256], index: 8, kind: input, shape index: {}]
  %s9 = inlined_call_operand.hbm [shape: f32[64,64], index: 9, kind: input, shape index: {}]
  %s10 = inlined_call_operand.hbm [shape: f32[8,16], index: 10, kind: input, shape index: {}]
  %s11 = inlined_call_operand.vmem [shape: f32[128,64], index: 11, kind: input, shape index: {}]
  %s12 = inlined_call_operand.vmem [shape: f32[32,8], index: 12, kind: input, shape index: {}]
  %s13 = inlined_call_operand.hbm [shape: f32[64,256], index: 13, kind: input, shape index: {}]
  %s14 = inlined_call_operand.hbm [shape: f32[8,256], index: 14, kind: input, shape index: {}]
  %s15 = inlined_call_operand.hbm [shape: f32[2,128], index: 15, kind: input, shape index: {}]
  %s16 = inlined_call_operand.hbm [shape: f32[5,64], index: 16, kind: input, shape index: {}]
  %s17 = inlined_call_operand.vmem [shape: f32[2,32,256], index: 17, kind: output, shape index: {}]
  %s18 = sld [smem:[#allocation0]]
  $region153: #{cross_agg_layer.1} parent=0
    _
  %s20 = ssub.s32 1, %s18
  %s21 = scalar_select 0, %s20, %s18
  $region1: #{cross_agg_layer.1} parent=0
    #allocation2 [shape = 'u8[49152]{0}', space=vmem, size = 0xc000, scoped, tag = 'input window, operand 2, single buffered']
    #allocation3 [shape = 's32[2]{0}', space=sflag, size = 0x8, scoped, tag = 'scoped memory for cross_agg_layer.1']
    #allocation4 [shape = 'u8[12288]{0}', space=vmem, size = 0x3000, scoped, tag = 'input window, operand 3, single buffered']
    #allocation5 [shape = 's32[1]{0}', space=sflag, size = 0x4, scoped, tag = 'scoped memory for cross_agg_layer.1']
    #allocation6 [shape = 'u8[24576]{0}', space=vmem, size = 0x6000, scoped, tag = 'input window, operand 4, single buffered']
    #allocation7 [shape = 'u8[2359296]{0}', space=vmem, size = 0x240000, scoped, tag = 'input window, operand 5, single buffered']
    #allocation8 [shape = 's32[1]{0}', space=sflag, size = 0x4, scoped, tag = 'scoped memory for cross_agg_layer.1']
    #allocation9 [shape = 'u8[196608]{0}', space=vmem, size = 0x30000, scoped, tag = 'input window, operand 6, single buffered']
    #allocation10 [shape = 'u8[393216]{0}', space=vmem, size = 0x60000, scoped, tag = 'input window, operand 7, single buffered']
    #allocation11 [shape = 's32[1]{0}', space=sflag, size = 0x4, scoped, tag = 'scoped memory for cross_agg_layer.1']
    #allocation12 [shape = 'u8[262144]{0}', space=vmem, size = 0x40000, scoped, tag = 'input window, operand 8, single buffered']
    #allocation13 [shape = 'u8[32768]{0}', space=vmem, size = 0x8000, scoped, tag = 'input window, operand 9, single buffered']
    #allocation14 [shape = 's32[1]{0}', space=sflag, size = 0x4, scoped, tag = 'scoped memory for cross_agg_layer.1']
    #allocation15 [shape = 'u8[4096]{0}', space=vmem, size = 0x1000, scoped, tag = 'input window, operand 10, single buffered']
    #allocation16 [shape = 'u8[65536]{0}', space=vmem, size = 0x10000, scoped, tag = 'input window, operand 13, single buffered']
    #allocation17 [shape = 's32[1]{0}', space=sflag, size = 0x4, scoped, tag = 'scoped memory for cross_agg_layer.1']
    #allocation18 [shape = 'u8[8192]{0}', space=vmem, size = 0x2000, scoped, tag = 'input window, operand 14, single buffered']
    #allocation19 [shape = 'u8[1024]{0}', space=vmem, size = 0x400, scoped, tag = 'input window, operand 15, single buffered']
    #allocation20 [shape = 's32[1]{0}', space=sflag, size = 0x4, scoped, tag = 'scoped memory for cross_agg_layer.1']
    #allocation21 [shape = 'u8[4096]{0}', space=vmem, size = 0x1000, scoped, tag = 'input window, operand 16, single buffered']
    %22 = vsyncpa [#allocation3], 0
    %23 = vsyncpa [#allocation5], 0
    %24 = vsyncpa [#allocation8], 0
    %25 = vsyncpa [#allocation11], 0
    %26 = vsyncpa [#allocation14], 0
    %27 = vsyncpa [#allocation17], 0
    %28 = vsyncpa [#allocation20], 0
    loop: start=0, step=1, limit=4
    $region2: #{cross_agg_layer.1} parent=1 // loop_pre_header
      _
    $region3: #{cross_agg_layer.1} parent=1 // loop_header
      %s30 = sphi 0, %s34
      %p31 = scmp.ge.s32.totalorder %s30, 4
      %s40 = sphi 0, %s42
      %s43 = sphi 0, %s40
      %s44 = sphi 0, %s43
      %s60 = sphi 0, %s44
      %s66 = sphi 0, %s68
      %s69 = sphi 0, %s66
      %s70 = sphi 0, %s69
      %s86 = sphi 0, %s70
      %s90 = sphi 0, %s90
      %s92 = sphi 0, %s90
      %s93 = sphi 0, %s92
      %s107 = sphi 0, %s93
      %s111 = sphi 0, %s111
      %s113 = sphi 0, %s111
      %s114 = sphi 0, %s113
      %s128 = sphi 0, %s114
      %s132 = sphi 0, %s132
      %s134 = sphi 0, %s132
      %s135 = sphi 0, %s134
      %s149 = sphi 0, %s135
      %s153 = sphi 0, %s153
      %s155 = sphi 0, %s153
      %s156 = sphi 0, %s155
      %s170 = sphi 0, %s156
      %s174 = sphi 0, %s174
      %s176 = sphi 0, %s174
      %s177 = sphi 0, %s176
      %s191 = sphi 0, %s177
      %s195 = sphi 0, %s195
      %s197 = sphi 0, %s195
      %s198 = sphi 0, %s197
      %s212 = sphi 0, %s198
      %s216 = sphi 0, %s216
      %s218 = sphi 0, %s216
      %s219 = sphi 0, %s218
      %s233 = sphi 0, %s219
      %s237 = sphi 0, %s237
      %s239 = sphi 0, %s237
      %s240 = sphi 0, %s239
      %s254 = sphi 0, %s240
      %s258 = sphi 0, %s258
      %s260 = sphi 0, %s258
      %s261 = sphi 0, %s260
      %s275 = sphi 0, %s261
      %s279 = sphi 0, %s279
      %s281 = sphi 0, %s279
      %s282 = sphi 0, %s281
      %s296 = sphi 0, %s282
      %s300 = sphi 0, %s300
      %s302 = sphi 0, %s300
      %s303 = sphi 0, %s302
      %s317 = sphi 0, %s303
      %s321 = sphi 0, %s321
      %s323 = sphi 0, %s321
      %s324 = sphi 0, %s323
      %s338 = sphi 0, %s324
      %s342 = sphi 0, %s342
      %s344 = sphi 0, %s342
      %s345 = sphi 0, %s344
      %s359 = sphi 0, %s345
      %s363 = sphi 0, %s363
      %s365 = sphi 0, %s363
      %s366 = sphi 0, %s365
      %s380 = sphi 0, %s366
      %s384 = sphi 0, %s384
      %s386 = sphi 0, %s384
      %s387 = sphi 0, %s386
      %s401 = sphi 0, %s387
      %s407 = sphi 0, %s409
      %s410 = sphi 0, %s407
      %s411 = sphi 0, %s410
      %s427 = sphi 0, %s411
    $region4: #{cross_agg_layer.1} parent=1 // loop_header_branch
      %33 = sbr.rel (%p31) target = $region8
    $region5: #{cross_agg_layer.1} parent=1 // loop_body
      %s35 = ssub.s32 %s30, 1
      %s36 = ssub.s32 %s30, 2
      %s37 = sadd.s32 %s30, 1
      %s38 = ssub.s32 %s30, %s37
      %p39 = scmp.eq.s32.totalorder %s38, 0
      %s41 = sadd.s32 %s40, 1
      %s42 = scalar_select %p39, %s40, %s41
      %p45 = pneg %p39
      %p46 = scmp.eq.s32.totalorder %s30, 1
      %p47 = por %p45, %p46
      %p48 = scmp.ne.s32.totalorder %s40, %s43
      %p49 = scmp.eq.s32.totalorder %s30, 0
      %p50 = por %p48, %p49
      %p51 = scmp.ne.s32.totalorder %s40, %s43
      %p52 = scmp.eq.s32.totalorder %s35, 1
      %p53 = por %p51, %p52
      %p54 = scmp.ne.s32.totalorder %s43, %s44
      %p55 = scmp.eq.s32.totalorder %s35, 0
      %p56 = por %p54, %p55
      %p57 = scmp.ne.s32.totalorder %s43, %s44
      %p58 = scmp.eq.s32.totalorder %s36, 1
      %p59 = por %p57, %p58
      %p61 = scmp.ne.s32.totalorder %s44, %s60
      %p62 = scmp.eq.s32.totalorder %s36, 0
      %p63 = por %p61, %p62
      %s64 = ssub.s32 %s30, %s37
      %p65 = scmp.eq.s32.totalorder %s64, 0
      %s67 = sadd.s32 %s66, 1
      %s68 = scalar_select %p65, %s66, %s67
      %p71 = pneg %p65
      %p72 = scmp.eq.s32.totalorder %s30, 1
      %p73 = por %p71, %p72
      %p74 = scmp.ne.s32.totalorder %s66, %s69
      %p75 = scmp.eq.s32.totalorder %s30, 0
      %p76 = por %p74, %p75
      %p77 = scmp.ne.s32.totalorder %s66, %s69
      %p78 = scmp.eq.s32.totalorder %s35, 1
      %p79 = por %p77, %p78
      %p80 = scmp.ne.s32.totalorder %s69, %s70
      %p81 = scmp.eq.s32.totalorder %s35, 0
      %p82 = por %p80, %p81
      %p83 = scmp.ne.s32.totalorder %s69, %s70
      %p84 = scmp.eq.s32.totalorder %s36, 1
      %p85 = por %p83, %p84
      %p87 = scmp.ne.s32.totalorder %s70, %s86
      %p88 = scmp.eq.s32.totalorder %s36, 0
      %p89 = por %p87, %p88
      %s91 = sadd.s32 %s90, 1
      %p94 = scmp.eq.s32.totalorder %s30, 1
      %p95 = scmp.ne.s32.totalorder %s90, %s92
      %p96 = scmp.eq.s32.totalorder %s30, 0
      %p97 = por %p95, %p96
      %p98 = scmp.ne.s32.totalorder %s90, %s92
      %p99 = scmp.eq.s32.totalorder %s35, 1
      %p100 = por %p98, %p99
      %p101 = scmp.ne.s32.totalorder %s92, %s93
      %p102 = scmp.eq.s32.totalorder %s35, 0
      %p103 = por %p101, %p102
      %p104 = scmp.ne.s32.totalorder %s92, %s93
      %p105 = scmp.eq.s32.totalorder %s36, 1
      %p106 = por %p104, %p105
      %p108 = scmp.ne.s32.totalorder %s93, %s107
      %p109 = scmp.eq.s32.totalorder %s36, 0
      %p110 = por %p108, %p109
      %s112 = sadd.s32 %s111, 1
      %p115 = scmp.eq.s32.totalorder %s30, 1
      %p116 = scmp.ne.s32.totalorder %s111, %s113
      %p117 = scmp.eq.s32.totalorder %s30, 0
      %p118 = por %p116, %p117
      %p119 = scmp.ne.s32.totalorder %s111, %s113
      %p120 = scmp.eq.s32.totalorder %s35, 1
      %p121 = por %p119, %p120
      %p122 = scmp.ne.s32.totalorder %s113, %s114
      %p123 = scmp.eq.s32.totalorder %s35, 0
      %p124 = por %p122, %p123
      %p125 = scmp.ne.s32.totalorder %s113, %s114
      %p126 = scmp.eq.s32.totalorder %s36, 1
      %p127 = por %p125, %p126
      %p129 = scmp.ne.s32.totalorder %s114, %s128
      %p130 = scmp.eq.s32.totalorder %s36, 0
      %p131 = por %p129, %p130
      %s133 = sadd.s32 %s132, 1
      %p136 = scmp.eq.s32.totalorder %s30, 1
      %p137 = scmp.ne.s32.totalorder %s132, %s134
      %p138 = scmp.eq.s32.totalorder %s30, 0
      %p139 = por %p137, %p138
      %p140 = scmp.ne.s32.totalorder %s132, %s134
      %p141 = scmp.eq.s32.totalorder %s35, 1
      %p142 = por %p140, %p141
      %p143 = scmp.ne.s32.totalorder %s134, %s135
      %p144 = scmp.eq.s32.totalorder %s35, 0
      %p145 = por %p143, %p144
      %p146 = scmp.ne.s32.totalorder %s134, %s135
      %p147 = scmp.eq.s32.totalorder %s36, 1
      %p148 = por %p146, %p147
      %p150 = scmp.ne.s32.totalorder %s135, %s149
      %p151 = scmp.eq.s32.totalorder %s36, 0
      %p152 = por %p150, %p151
      %s154 = sadd.s32 %s153, 1
      %p157 = scmp.eq.s32.totalorder %s30, 1
      %p158 = scmp.ne.s32.totalorder %s153, %s155
      %p159 = scmp.eq.s32.totalorder %s30, 0
      %p160 = por %p158, %p159
      %p161 = scmp.ne.s32.totalorder %s153, %s155
      %p162 = scmp.eq.s32.totalorder %s35, 1
      %p163 = por %p161, %p162
      %p164 = scmp.ne.s32.totalorder %s155, %s156
      %p165 = scmp.eq.s32.totalorder %s35, 0
      %p166 = por %p164, %p165
      %p167 = scmp.ne.s32.totalorder %s155, %s156
      %p168 = scmp.eq.s32.totalorder %s36, 1
      %p169 = por %p167, %p168
      %p171 = scmp.ne.s32.totalorder %s156, %s170
      %p172 = scmp.eq.s32.totalorder %s36, 0
      %p173 = por %p171, %p172
      %s175 = sadd.s32 %s174, 1
      %p178 = scmp.eq.s32.totalorder %s30, 1
      %p179 = scmp.ne.s32.totalorder %s174, %s176
      %p180 = scmp.eq.s32.totalorder %s30, 0
      %p181 = por %p179, %p180
      %p182 = scmp.ne.s32.totalorder %s174, %s176
      %p183 = scmp.eq.s32.totalorder %s35, 1
      %p184 = por %p182, %p183
      %p185 = scmp.ne.s32.totalorder %s176, %s177
      %p186 = scmp.eq.s32.totalorder %s35, 0
      %p187 = por %p185, %p186
      %p188 = scmp.ne.s32.totalorder %s176, %s177
      %p189 = scmp.eq.s32.totalorder %s36, 1
      %p190 = por %p188, %p189
      %p192 = scmp.ne.s32.totalorder %s177, %s191
      %p193 = scmp.eq.s32.totalorder %s36, 0
      %p194 = por %p192, %p193
      %s196 = sadd.s32 %s195, 1
      %p199 = scmp.eq.s32.totalorder %s30, 1
      %p200 = scmp.ne.s32.totalorder %s195, %s197
      %p201 = scmp.eq.s32.totalorder %s30, 0
      %p202 = por %p200, %p201
      %p203 = scmp.ne.s32.totalorder %s195, %s197
      %p204 = scmp.eq.s32.totalorder %s35, 1
      %p205 = por %p203, %p204
      %p206 = scmp.ne.s32.totalorder %s197, %s198
      %p207 = scmp.eq.s32.totalorder %s35, 0
      %p208 = por %p206, %p207
      %p209 = scmp.ne.s32.totalorder %s197, %s198
      %p210 = scmp.eq.s32.totalorder %s36, 1
      %p211 = por %p209, %p210
      %p213 = scmp.ne.s32.totalorder %s198, %s212
      %p214 = scmp.eq.s32.totalorder %s36, 0
      %p215 = por %p213, %p214
      %s217 = sadd.s32 %s216, 1
      %p220 = scmp.eq.s32.totalorder %s30, 1
      %p221 = scmp.ne.s32.totalorder %s216, %s218
      %p222 = scmp.eq.s32.totalorder %s30, 0
      %p223 = por %p221, %p222
      %p224 = scmp.ne.s32.totalorder %s216, %s218
      %p225 = scmp.eq.s32.totalorder %s35, 1
      %p226 = por %p224, %p225
      %p227 = scmp.ne.s32.totalorder %s218, %s219
      %p228 = scmp.eq.s32.totalorder %s35, 0
      %p229 = por %p227, %p228
      %p230 = scmp.ne.s32.totalorder %s218, %s219
      %p231 = scmp.eq.s32.totalorder %s36, 1
      %p232 = por %p230, %p231
      %p234 = scmp.ne.s32.totalorder %s219, %s233
      %p235 = scmp.eq.s32.totalorder %s36, 0
      %p236 = por %p234, %p235
      %s238 = sadd.s32 %s237, 1
      %p241 = scmp.eq.s32.totalorder %s30, 1
      %p242 = scmp.ne.s32.totalorder %s237, %s239
      %p243 = scmp.eq.s32.totalorder %s30, 0
      %p244 = por %p242, %p243
      %p245 = scmp.ne.s32.totalorder %s237, %s239
      %p246 = scmp.eq.s32.totalorder %s35, 1
      %p247 = por %p245, %p246
      %p248 = scmp.ne.s32.totalorder %s239, %s240
      %p249 = scmp.eq.s32.totalorder %s35, 0
      %p250 = por %p248, %p249
      %p251 = scmp.ne.s32.totalorder %s239, %s240
      %p252 = scmp.eq.s32.totalorder %s36, 1
      %p253 = por %p251, %p252
      %p255 = scmp.ne.s32.totalorder %s240, %s254
      %p256 = scmp.eq.s32.totalorder %s36, 0
      %p257 = por %p255, %p256
      %s259 = sadd.s32 %s258, 1
      %p262 = scmp.eq.s32.totalorder %s30, 1
      %p263 = scmp.ne.s32.totalorder %s258, %s260
      %p264 = scmp.eq.s32.totalorder %s30, 0
      %p265 = por %p263, %p264
      %p266 = scmp.ne.s32.totalorder %s258, %s260
      %p267 = scmp.eq.s32.totalorder %s35, 1
      %p268 = por %p266, %p267
      %p269 = scmp.ne.s32.totalorder %s260, %s261
      %p270 = scmp.eq.s32.totalorder %s35, 0
      %p271 = por %p269, %p270
      %p272 = scmp.ne.s32.totalorder %s260, %s261
      %p273 = scmp.eq.s32.totalorder %s36, 1
      %p274 = por %p272, %p273
      %p276 = scmp.ne.s32.totalorder %s261, %s275
      %p277 = scmp.eq.s32.totalorder %s36, 0
      %p278 = por %p276, %p277
      %s280 = sadd.s32 %s279, 1
      %p283 = scmp.eq.s32.totalorder %s30, 1
      %p284 = scmp.ne.s32.totalorder %s279, %s281
      %p285 = scmp.eq.s32.totalorder %s30, 0
      %p286 = por %p284, %p285
      %p287 = scmp.ne.s32.totalorder %s279, %s281
      %p288 = scmp.eq.s32.totalorder %s35, 1
      %p289 = por %p287, %p288
      %p290 = scmp.ne.s32.totalorder %s281, %s282
      %p291 = scmp.eq.s32.totalorder %s35, 0
      %p292 = por %p290, %p291
      %p293 = scmp.ne.s32.totalorder %s281, %s282
      %p294 = scmp.eq.s32.totalorder %s36, 1
      %p295 = por %p293, %p294
      %p297 = scmp.ne.s32.totalorder %s282, %s296
      %p298 = scmp.eq.s32.totalorder %s36, 0
      %p299 = por %p297, %p298
      %s301 = sadd.s32 %s300, 1
      %p304 = scmp.eq.s32.totalorder %s30, 1
      %p305 = scmp.ne.s32.totalorder %s300, %s302
      %p306 = scmp.eq.s32.totalorder %s30, 0
      %p307 = por %p305, %p306
      %p308 = scmp.ne.s32.totalorder %s300, %s302
      %p309 = scmp.eq.s32.totalorder %s35, 1
      %p310 = por %p308, %p309
      %p311 = scmp.ne.s32.totalorder %s302, %s303
      %p312 = scmp.eq.s32.totalorder %s35, 0
      %p313 = por %p311, %p312
      %p314 = scmp.ne.s32.totalorder %s302, %s303
      %p315 = scmp.eq.s32.totalorder %s36, 1
      %p316 = por %p314, %p315
      %p318 = scmp.ne.s32.totalorder %s303, %s317
      %p319 = scmp.eq.s32.totalorder %s36, 0
      %p320 = por %p318, %p319
      %s322 = sadd.s32 %s321, 1
      %p325 = scmp.eq.s32.totalorder %s30, 1
      %p326 = scmp.ne.s32.totalorder %s321, %s323
      %p327 = scmp.eq.s32.totalorder %s30, 0
      %p328 = por %p326, %p327
      %p329 = scmp.ne.s32.totalorder %s321, %s323
      %p330 = scmp.eq.s32.totalorder %s35, 1
      %p331 = por %p329, %p330
      %p332 = scmp.ne.s32.totalorder %s323, %s324
      %p333 = scmp.eq.s32.totalorder %s35, 0
      %p334 = por %p332, %p333
      %p335 = scmp.ne.s32.totalorder %s323, %s324
      %p336 = scmp.eq.s32.totalorder %s36, 1
      %p337 = por %p335, %p336
      %p339 = scmp.ne.s32.totalorder %s324, %s338
      %p340 = scmp.eq.s32.totalorder %s36, 0
      %p341 = por %p339, %p340
      %s343 = sadd.s32 %s342, 1
      %p346 = scmp.eq.s32.totalorder %s30, 1
      %p347 = scmp.ne.s32.totalorder %s342, %s344
      %p348 = scmp.eq.s32.totalorder %s30, 0
      %p349 = por %p347, %p348
      %p350 = scmp.ne.s32.totalorder %s342, %s344
      %p351 = scmp.eq.s32.totalorder %s35, 1
      %p352 = por %p350, %p351
      %p353 = scmp.ne.s32.totalorder %s344, %s345
      %p354 = scmp.eq.s32.totalorder %s35, 0
      %p355 = por %p353, %p354
      %p356 = scmp.ne.s32.totalorder %s344, %s345
      %p357 = scmp.eq.s32.totalorder %s36, 1
      %p358 = por %p356, %p357
      %p360 = scmp.ne.s32.totalorder %s345, %s359
      %p361 = scmp.eq.s32.totalorder %s36, 0
      %p362 = por %p360, %p361
      %s364 = sadd.s32 %s363, 1
      %p367 = scmp.eq.s32.totalorder %s30, 1
      %p368 = scmp.ne.s32.totalorder %s363, %s365
      %p369 = scmp.eq.s32.totalorder %s30, 0
      %p370 = por %p368, %p369
      %p371 = scmp.ne.s32.totalorder %s363, %s365
      %p372 = scmp.eq.s32.totalorder %s35, 1
      %p373 = por %p371, %p372
      %p374 = scmp.ne.s32.totalorder %s365, %s366
      %p375 = scmp.eq.s32.totalorder %s35, 0
      %p376 = por %p374, %p375
      %p377 = scmp.ne.s32.totalorder %s365, %s366
      %p378 = scmp.eq.s32.totalorder %s36, 1
      %p379 = por %p377, %p378
      %p381 = scmp.ne.s32.totalorder %s366, %s380
      %p382 = scmp.eq.s32.totalorder %s36, 0
      %p383 = por %p381, %p382
      %s385 = sadd.s32 %s384, 1
      %p388 = scmp.eq.s32.totalorder %s30, 1
      %p389 = scmp.ne.s32.totalorder %s384, %s386
      %p390 = scmp.eq.s32.totalorder %s30, 0
      %p391 = por %p389, %p390
      %p392 = scmp.ne.s32.totalorder %s384, %s386
      %p393 = scmp.eq.s32.totalorder %s35, 1
      %p394 = por %p392, %p393
      %p395 = scmp.ne.s32.totalorder %s386, %s387
      %p396 = scmp.eq.s32.totalorder %s35, 0
      %p397 = por %p395, %p396
      %p398 = scmp.ne.s32.totalorder %s386, %s387
      %p399 = scmp.eq.s32.totalorder %s36, 1
      %p400 = por %p398, %p399
      %p402 = scmp.ne.s32.totalorder %s387, %s401
      %p403 = scmp.eq.s32.totalorder %s36, 0
      %p404 = por %p402, %p403
      %s405 = ssub.s32 %s30, %s37
      %p406 = scmp.eq.s32.totalorder %s405, 0
      %s408 = sadd.s32 %s407, 1
      %s409 = scalar_select %p406, %s407, %s408
      %p412 = pneg %p406
      %p413 = scmp.eq.s32.totalorder %s30, 1
      %p414 = por %p412, %p413
      %p415 = scmp.ne.s32.totalorder %s407, %s410
      %p416 = scmp.eq.s32.totalorder %s30, 0
      %p417 = por %p415, %p416
      %p418 = scmp.ne.s32.totalorder %s407, %s410
      %p419 = scmp.eq.s32.totalorder %s35, 1
      %p420 = por %p418, %p419
      %p421 = scmp.ne.s32.totalorder %s410, %s411
      %p422 = scmp.eq.s32.totalorder %s35, 0
      %p423 = por %p421, %p422
      %p424 = scmp.ne.s32.totalorder %s410, %s411
      %p425 = scmp.eq.s32.totalorder %s36, 1
      %p426 = por %p424, %p425
      %p428 = scmp.ne.s32.totalorder %s411, %s427
      %p429 = scmp.eq.s32.totalorder %s36, 0
      %p430 = por %p428, %p429
      %p431 = scmp.le.s32.totalorder 1, %s30
      %p432 = scmp.lt.s32.totalorder %s30, 3
      %p433 = pnand %p431, %p432
      %p434 = pneg %p433
      // Predicated region
      $region9: #{cross_agg_layer.1} parent=5 // pred_check
        _
      $region10: #{cross_agg_layer.1} parent=5 // pred_check_branch
        %436 = sbr.rel (%p433) target = $region12
      $region11: #{cross_agg_layer.1} parent=5 // pred_region
        %s437 = ssub.s32 %s30, 1
        // Predicated region
        $region13: #{cross_agg_layer.1} parent=11 // pred_check
          %p438 = pneg %p103
        $region14: #{cross_agg_layer.1} parent=11 // pred_check_branch
          %440 = sbr.rel (%p438) target = $region16
        $region15: #{cross_agg_layer.1} parent=11 // pred_region
          %442 = vsyncadd [#allocation3], 0
          %s443 = sshll.u32 %s2, 4
          %s444 = int_to_ptr.hbm [resolvable:$true] %s443
          %s445 = sshll.u32 [#allocation2], 4
          %s446 = int_to_ptr.vmem [resolvable:$true] %s445
          %451 = dma.hbm_to_vmem [thread:$0]  %s444, 1536, %s446, [#allocation3], 128, 128, 8
        $region16: #{cross_agg_layer.1} parent=11 // pred_fallthru
          _
        // Predicated region
        $region17: #{cross_agg_layer.1} parent=11 // pred_check
          %p452 = pneg %p124
        $region18: #{cross_agg_layer.1} parent=11 // pred_check_branch
          %454 = sbr.rel (%p452) target = $region20
        $region19: #{cross_agg_layer.1} parent=11 // pred_region
          %456 = vsyncadd [#allocation5], 0
          %s457 = sshll.u32 %s3, 4
          %s458 = int_to_ptr.hbm [resolvable:$true] %s457
          %s459 = sshll.u32 [#allocation4], 4
          %s460 = int_to_ptr.vmem [resolvable:$true] %s459
          %465 = dma.hbm_to_vmem [thread:$0]  %s458, 384, %s460, [#allocation5], 128, 128, 8
        $region20: #{cross_agg_layer.1} parent=11 // pred_fallthru
          _
        // Predicated region
        $region21: #{cross_agg_layer.1} parent=11 // pred_check
          %p466 = pneg %p145
        $region22: #{cross_agg_layer.1} parent=11 // pred_check_branch
          %468 = sbr.rel (%p466) target = $region24
        $region23: #{cross_agg_layer.1} parent=11 // pred_region
          %470 = vsyncadd [#allocation5], 0
          %s471 = sshll.u32 %s4, 4
          %s472 = int_to_ptr.hbm [resolvable:$true] %s471
          %s473 = sshll.u32 [#allocation6], 4
          %s474 = int_to_ptr.vmem [resolvable:$true] %s473
          %479 = dma.hbm_to_vmem [thread:$0]  %s472, 768, %s474, [#allocation5], 128, 128, 8
        $region24: #{cross_agg_layer.1} parent=11 // pred_fallthru
          _
        // Predicated region
        $region25: #{cross_agg_layer.1} parent=11 // pred_check
          %p480 = pneg %p166
        $region26: #{cross_agg_layer.1} parent=11 // pred_check_branch
          %482 = sbr.rel (%p480) target = $region28
        $region27: #{cross_agg_layer.1} parent=11 // pred_region
          %484 = vsyncadd [#allocation8], 0
          %s485 = sshll.u32 %s5, 4
          %s486 = int_to_ptr.hbm [resolvable:$true] %s485
          %s487 = sshll.u32 [#allocation7], 4
          %s488 = int_to_ptr.vmem [resolvable:$true] %s487
          %493 = dma.hbm_to_vmem [thread:$0]  %s486, 73728, %s488, [#allocation8], 256, 256, 16
        $region28: #{cross_agg_layer.1} parent=11 // pred_fallthru
          _
        // Predicated region
        $region29: #{cross_agg_layer.1} parent=11 // pred_check
          %p494 = pneg %p187
        $region30: #{cross_agg_layer.1} parent=11 // pred_check_branch
          %496 = sbr.rel (%p494) target = $region32
        $region31: #{cross_agg_layer.1} parent=11 // pred_region
          %498 = vsyncadd [#allocation8], 0
          %s499 = sshll.u32 %s6, 4
          %s500 = int_to_ptr.hbm [resolvable:$true] %s499
          %s501 = sshll.u32 [#allocation9], 4
          %s502 = int_to_ptr.vmem [resolvable:$true] %s501
          %507 = dma.hbm_to_vmem [thread:$0]  %s500, 6144, %s502, [#allocation8], 128, 128, 8
        $region32: #{cross_agg_layer.1} parent=11 // pred_fallthru
          _
        // Predicated region
        $region33: #{cross_agg_layer.1} parent=11 // pred_check
          %p508 = pneg %p208
        $region34: #{cross_agg_layer.1} parent=11 // pred_check_branch
          %510 = sbr.rel (%p508) target = $region36
        $region35: #{cross_agg_layer.1} parent=11 // pred_region
          %512 = vsyncadd [#allocation11], 0
          %s513 = sshll.u32 %s7, 4
          %s514 = int_to_ptr.hbm [resolvable:$true] %s513
          %s515 = sshll.u32 [#allocation10], 4
          %s516 = int_to_ptr.vmem [resolvable:$true] %s515
          %521 = dma.hbm_to_vmem [thread:$0]  %s514, 12288, %s516, [#allocation11], 128, 128, 8
        $region36: #{cross_agg_layer.1} parent=11 // pred_fallthru
          _
        // Predicated region
        $region37: #{cross_agg_layer.1} parent=11 // pred_check
          %p522 = pneg %p229
        $region38: #{cross_agg_layer.1} parent=11 // pred_check_branch
          %524 = sbr.rel (%p522) target = $region40
        $region39: #{cross_agg_layer.1} parent=11 // pred_region
          %526 = vsyncadd [#allocation11], 0
          %s527 = sshll.u32 %s8, 4
          %s528 = int_to_ptr.hbm [resolvable:$true] %s527
          %s529 = sshll.u32 [#allocation12], 4
          %s530 = int_to_ptr.vmem [resolvable:$true] %s529
          %535 = dma.hbm_to_vmem [thread:$0]  %s528, 8192, %s530, [#allocation11], 256, 256, 16
        $region40: #{cross_agg_layer.1} parent=11 // pred_fallthru
          _
        // Predicated region
        $region41: #{cross_agg_layer.1} parent=11 // pred_check
          %p536 = pneg %p250
        $region42: #{cross_agg_layer.1} parent=11 // pred_check_branch
          %538 = sbr.rel (%p536) target = $region44
        $region43: #{cross_agg_layer.1} parent=11 // pred_region
          %540 = vsyncadd [#allocation14], 0
          %s541 = sshll.u32 %s9, 4
          %s542 = int_to_ptr.hbm [resolvable:$true] %s541
          %s543 = sshll.u32 [#allocation13], 4
          %s544 = int_to_ptr.vmem [resolvable:$true] %s543
          %549 = dma.hbm_to_vmem [thread:$0]  %s542, 1024, %s544, [#allocation14], 128, 128, 8
        $region44: #{cross_agg_layer.1} parent=11 // pred_fallthru
          _
        // Predicated region
        $region45: #{cross_agg_layer.1} parent=11 // pred_check
          %p550 = pneg %p271
        $region46: #{cross_agg_layer.1} parent=11 // pred_check_branch
          %552 = sbr.rel (%p550) target = $region48
        $region47: #{cross_agg_layer.1} parent=11 // pred_region
          %554 = vsyncadd [#allocation14], 0
          %s556 = sshll.u32 %s10, 4
          %s557 = int_to_ptr.hbm [resolvable:$true] %s556
          %s558 = sshll.u32 [#allocation15], 4
          %s559 = int_to_ptr.vmem [resolvable:$true] %s558
          %561 = dma.hbm_to_vmem [thread:$0]  %s557, 128, %s559, [#allocation14]
        $region48: #{cross_agg_layer.1} parent=11 // pred_fallthru
          _
        // Predicated region
        $region49: #{cross_agg_layer.1} parent=11 // pred_check
          %p562 = pneg %p292
        $region50: #{cross_agg_layer.1} parent=11 // pred_check_branch
          %564 = sbr.rel (%p562) target = $region52
        $region51: #{cross_agg_layer.1} parent=11 // pred_region
          _
        $region52: #{cross_agg_layer.1} parent=11 // pred_fallthru
          _
        // Predicated region
        $region53: #{cross_agg_layer.1} parent=11 // pred_check
          %p565 = pneg %p313
        $region54: #{cross_agg_layer.1} parent=11 // pred_check_branch
          %567 = sbr.rel (%p565) target = $region56
        $region55: #{cross_agg_layer.1} parent=11 // pred_region
          _
        $region56: #{cross_agg_layer.1} parent=11 // pred_fallthru
          _
        // Predicated region
        $region57: #{cross_agg_layer.1} parent=11 // pred_check
          %p568 = pneg %p334
        $region58: #{cross_agg_layer.1} parent=11 // pred_check_branch
          %570 = sbr.rel (%p568) target = $region60
        $region59: #{cross_agg_layer.1} parent=11 // pred_region
          %572 = vsyncadd [#allocation17], 0
          %s573 = sshll.u32 %s13, 4
          %s574 = int_to_ptr.hbm [resolvable:$true] %s573
          %s575 = sshll.u32 [#allocation16], 4
          %s576 = int_to_ptr.vmem [resolvable:$true] %s575
          %581 = dma.hbm_to_vmem [thread:$0]  %s574, 2048, %s576, [#allocation17], 256, 256, 16
        $region60: #{cross_agg_layer.1} parent=11 // pred_fallthru
          _
        // Predicated region
        $region61: #{cross_agg_layer.1} parent=11 // pred_check
          %p582 = pneg %p355
        $region62: #{cross_agg_layer.1} parent=11 // pred_check_branch
          %584 = sbr.rel (%p582) target = $region64
        $region63: #{cross_agg_layer.1} parent=11 // pred_region
          %586 = vsyncadd [#allocation17], 0
          %s588 = sshll.u32 %s14, 4
          %s589 = int_to_ptr.hbm [resolvable:$true] %s588
          %s590 = sshll.u32 [#allocation18], 4
          %s591 = int_to_ptr.vmem [resolvable:$true] %s590
          %593 = dma.hbm_to_vmem [thread:$0]  %s589, 256, %s591, [#allocation17]
        $region64: #{cross_agg_layer.1} parent=11 // pred_fallthru
          _
        // Predicated region
        $region65: #{cross_agg_layer.1} parent=11 // pred_check
          %p594 = pneg %p376
        $region66: #{cross_agg_layer.1} parent=11 // pred_check_branch
          %596 = sbr.rel (%p594) target = $region68
        $region67: #{cross_agg_layer.1} parent=11 // pred_region
          %598 = vsyncadd [#allocation20], 0
          %s600 = sshll.u32 %s15, 4
          %s601 = int_to_ptr.hbm [resolvable:$true] %s600
          %s602 = sshll.u32 [#allocation19], 4
          %s603 = int_to_ptr.vmem [resolvable:$true] %s602
          %605 = dma.hbm_to_vmem [thread:$0]  %s601, 32, %s603, [#allocation20]
        $region68: #{cross_agg_layer.1} parent=11 // pred_fallthru
          _
        // Predicated region
        $region69: #{cross_agg_layer.1} parent=11 // pred_check
          %p606 = pneg %p397
        $region70: #{cross_agg_layer.1} parent=11 // pred_check_branch
          %608 = sbr.rel (%p606) target = $region72
        $region71: #{cross_agg_layer.1} parent=11 // pred_region
          %610 = vsyncadd [#allocation20], 0
          %s612 = sshll.u32 %s16, 4
          %s613 = int_to_ptr.hbm [resolvable:$true] %s612
          %s614 = sshll.u32 [#allocation21], 4
          %s615 = int_to_ptr.vmem [resolvable:$true] %s614
          %617 = dma.hbm_to_vmem [thread:$0]  %s613, 128, %s615, [#allocation20]
        $region72: #{cross_agg_layer.1} parent=11 // pred_fallthru
          _
      $region12: #{cross_agg_layer.1} parent=5 // pred_fallthru
        _
      %p618 = scmp.lt.s32.totalorder %s30, 2
      // Predicated region
      $region73: #{cross_agg_layer.1} parent=5 // pred_check
        %p619 = pneg %p618
      $region74: #{cross_agg_layer.1} parent=5 // pred_check_branch
        %621 = sbr.rel (%p619) target = $region76
      $region75: #{cross_agg_layer.1} parent=5 // pred_region
        // Predicated region
        $region77: #{cross_agg_layer.1} parent=75 // pred_check
          %p622 = pneg %p50
        $region78: #{cross_agg_layer.1} parent=75 // pred_check_branch
          %624 = sbr.rel (%p622) target = $region80
        $region79: #{cross_agg_layer.1} parent=75 // pred_region
          %p625 = scmp.lt.s32.totalorder %s30, 1
          %s626 = scalar_select %p625, %s30, 1
          %s627 = smul.addr %s626, 8
          %s628 = smul.addr %s627, 8
          %s629 = scalar_lea.vmem %s0, %s628
        $region80: #{cross_agg_layer.1} parent=75 // pred_fallthru
          _
        // Predicated region
        $region81: #{cross_agg_layer.1} parent=75 // pred_check
          %p630 = pneg %p76
        $region82: #{cross_agg_layer.1} parent=75 // pred_check_branch
          %632 = sbr.rel (%p630) target = $region84
        $region83: #{cross_agg_layer.1} parent=75 // pred_region
          %p633 = scmp.lt.s32.totalorder %s30, 1
          %s634 = scalar_select %p633, %s30, 1
          %s635 = smul.addr %s634, 8
          %s636 = scalar_lea.vmem %s1, %s635
        $region84: #{cross_agg_layer.1} parent=75 // pred_fallthru
          _
      $region76: #{cross_agg_layer.1} parent=5 // pred_fallthru
        _
      %p637 = scmp.le.s32.totalorder 1, %s30
      %p638 = scmp.lt.s32.totalorder %s30, 3
      %p639 = pnand %p637, %p638
      %p640 = pneg %p639
      // Predicated region
      $region85: #{cross_agg_layer.1} parent=5 // pred_check
        _
      $region86: #{cross_agg_layer.1} parent=5 // pred_check_branch
        %642 = sbr.rel (%p639) target = $region88
      $region87: #{cross_agg_layer.1} parent=5 // pred_region
        %s643 = ssub.s32 %s30, 1
        // Predicated region
        $region89: #{cross_agg_layer.1} parent=87 // pred_check
          %p644 = pneg %p103
        $region90: #{cross_agg_layer.1} parent=87 // pred_check_branch
          %646 = sbr.rel (%p644) target = $region92
        $region91: #{cross_agg_layer.1} parent=87 // pred_region
          %648 = dma.done [#allocation3], 1536
        $region92: #{cross_agg_layer.1} parent=87 // pred_fallthru
          _
        // Predicated region
        $region93: #{cross_agg_layer.1} parent=87 // pred_check
          %p649 = pneg %p124
        $region94: #{cross_agg_layer.1} parent=87 // pred_check_branch
          %651 = sbr.rel (%p649) target = $region96
        $region95: #{cross_agg_layer.1} parent=87 // pred_region
          %653 = dma.done [#allocation5], 384
        $region96: #{cross_agg_layer.1} parent=87 // pred_fallthru
          _
        // Predicated region
        $region97: #{cross_agg_layer.1} parent=87 // pred_check
          %p654 = pneg %p145
        $region98: #{cross_agg_layer.1} parent=87 // pred_check_branch
          %656 = sbr.rel (%p654) target = $region100
        $region99: #{cross_agg_layer.1} parent=87 // pred_region
          %658 = dma.done [#allocation5], 768
        $region100: #{cross_agg_layer.1} parent=87 // pred_fallthru
          _
        // Predicated region
        $region101: #{cross_agg_layer.1} parent=87 // pred_check
          %p659 = pneg %p166
        $region102: #{cross_agg_layer.1} parent=87 // pred_check_branch
          %661 = sbr.rel (%p659) target = $region104
        $region103: #{cross_agg_layer.1} parent=87 // pred_region
          %663 = dma.done [#allocation8], 73728
        $region104: #{cross_agg_layer.1} parent=87 // pred_fallthru
          _
        // Predicated region
        $region105: #{cross_agg_layer.1} parent=87 // pred_check
          %p664 = pneg %p187
        $region106: #{cross_agg_layer.1} parent=87 // pred_check_branch
          %666 = sbr.rel (%p664) target = $region108
        $region107: #{cross_agg_layer.1} parent=87 // pred_region
          %668 = dma.done [#allocation8], 6144
        $region108: #{cross_agg_layer.1} parent=87 // pred_fallthru
          _
        // Predicated region
        $region109: #{cross_agg_layer.1} parent=87 // pred_check
          %p669 = pneg %p208
        $region110: #{cross_agg_layer.1} parent=87 // pred_check_branch
          %671 = sbr.rel (%p669) target = $region112
        $region111: #{cross_agg_layer.1} parent=87 // pred_region
          %673 = dma.done [#allocation11], 12288
        $region112: #{cross_agg_layer.1} parent=87 // pred_fallthru
          _
        // Predicated region
        $region113: #{cross_agg_layer.1} parent=87 // pred_check
          %p674 = pneg %p229
        $region114: #{cross_agg_layer.1} parent=87 // pred_check_branch
          %676 = sbr.rel (%p674) target = $region116
        $region115: #{cross_agg_layer.1} parent=87 // pred_region
          %678 = dma.done [#allocation11], 8192
        $region116: #{cross_agg_layer.1} parent=87 // pred_fallthru
          _
        // Predicated region
        $region117: #{cross_agg_layer.1} parent=87 // pred_check
          %p679 = pneg %p250
        $region118: #{cross_agg_layer.1} parent=87 // pred_check_branch
          %681 = sbr.rel (%p679) target = $region120
        $region119: #{cross_agg_layer.1} parent=87 // pred_region
          %683 = dma.done [#allocation14], 1024
        $region120: #{cross_agg_layer.1} parent=87 // pred_fallthru
          _
        // Predicated region
        $region121: #{cross_agg_layer.1} parent=87 // pred_check
          %p684 = pneg %p271
        $region122: #{cross_agg_layer.1} parent=87 // pred_check_branch
          %686 = sbr.rel (%p684) target = $region124
        $region123: #{cross_agg_layer.1} parent=87 // pred_region
          %688 = dma.done [#allocation14], 128
        $region124: #{cross_agg_layer.1} parent=87 // pred_fallthru
          _
        // Predicated region
        $region125: #{cross_agg_layer.1} parent=87 // pred_check
          %p689 = pneg %p334
        $region126: #{cross_agg_layer.1} parent=87 // pred_check_branch
          %691 = sbr.rel (%p689) target = $region128
        $region127: #{cross_agg_layer.1} parent=87 // pred_region
          %693 = dma.done [#allocation17], 2048
        $region128: #{cross_agg_layer.1} parent=87 // pred_fallthru
          _
        // Predicated region
        $region129: #{cross_agg_layer.1} parent=87 // pred_check
          %p694 = pneg %p355
        $region130: #{cross_agg_layer.1} parent=87 // pred_check_branch
          %696 = sbr.rel (%p694) target = $region132
        $region131: #{cross_agg_layer.1} parent=87 // pred_region
          %698 = dma.done [#allocation17], 256
        $region132: #{cross_agg_layer.1} parent=87 // pred_fallthru
          _
        // Predicated region
        $region133: #{cross_agg_layer.1} parent=87 // pred_check
          %p699 = pneg %p376
        $region134: #{cross_agg_layer.1} parent=87 // pred_check_branch
          %701 = sbr.rel (%p699) target = $region136
        $region135: #{cross_agg_layer.1} parent=87 // pred_region
          %703 = dma.done [#allocation20], 32
        $region136: #{cross_agg_layer.1} parent=87 // pred_fallthru
          _
        // Predicated region
        $region137: #{cross_agg_layer.1} parent=87 // pred_check
          %p704 = pneg %p397
        $region138: #{cross_agg_layer.1} parent=87 // pred_check_branch
          %706 = sbr.rel (%p704) target = $region140
        $region139: #{cross_agg_layer.1} parent=87 // pred_region
          %708 = dma.done [#allocation20], 128
        $region140: #{cross_agg_layer.1} parent=87 // pred_fallthru
          _
        %p709 = scmp.lt.s32.totalorder %s35, 1
        %s710 = scalar_select %p709, %s35, 1
        %s711 = smul.addr %s710, 8
        %s712 = smul.addr %s711, 8
        %s713 = scalar_lea.vmem %s0, %s712
        %p714 = pneg %p56
        %p715 = pneg %p53
        %p716 = scmp.lt.s32.totalorder %s35, 1
        %s717 = scalar_select %p716, %s35, 1
        %s718 = smul.addr %s717, 8
        %s719 = scalar_lea.vmem %s1, %s718
        %p720 = pneg %p82
        %p721 = pneg %p79
        %p722 = pneg %p103
        %p723 = pneg %p100
        %p724 = pneg %p124
        %p725 = pneg %p121
        %p726 = pneg %p145
        %p727 = pneg %p142
        %p728 = pneg %p166
        %p729 = pneg %p163
        %p730 = pneg %p187
        %p731 = pneg %p184
        %p732 = pneg %p208
        %p733 = pneg %p205
        %p734 = pneg %p229
        %p735 = pneg %p226
        %p736 = pneg %p250
        %p737 = pneg %p247
        %p738 = pneg %p271
        %p739 = pneg %p268
        %p740 = pneg %p292
        %p741 = pneg %p289
        %p742 = pneg %p313
        %p743 = pneg %p310
        %p744 = pneg %p334
        %p745 = pneg %p331
        %p746 = pneg %p355
        %p747 = pneg %p352
        %p748 = pneg %p376
        %p749 = pneg %p373
        %p750 = pneg %p397
        %p751 = pneg %p394
        %p752 = pneg %p423
        %p753 = pneg %p420
        %p754 = scmp.lt.s32.totalorder %s35, 1
        %s755 = scalar_select %p754, %s35, 1
        %s756 = smul.addr %s755, 8
        %s757 = smul.addr %s756, 8
        %s758 = scalar_lea.vmem %s17, %s757
        %p759 = scmp.lt.s32.totalorder %s35, 1
        %s760 = scalar_select %p759, %s35, 1
        %s761 = smul.addr %s760, 8
        %s762 = smul.addr %s761, 8
        %s763 = scalar_lea.vmem %s0, %s762
        %p764 = scmp.lt.s32.totalorder %s35, 1
        %s765 = scalar_select %p764, %s35, 1
        %s766 = smul.addr %s765, 8
        %s767 = scalar_lea.vmem %s1, %s766
        %p768 = scmp.lt.s32.totalorder %s35, 1
        %s769 = scalar_select %p768, %s35, 1
        %s770 = smul.addr %s769, 8
        %s771 = smul.addr %s770, 8
        %s772 = scalar_lea.vmem %s17, %s771
        %v773 = vld [vmem:[%s763] sm:$0xff]
        %v774 = vld [vmem:[%s763 + $0x8] sm:$0xff]
        %v775 = vld [vmem:[%s763 + $0x10] sm:$0xff]
        %v776 = vld [vmem:[%s763 + $0x18] sm:$0xff]
        %v777 = vld [vmem:[%s763 + $0x20] sm:$0xff]
        %v778 = vld [vmem:[%s763 + $0x28] sm:$0xff]
        %v779 = vld [vmem:[%s763 + $0x30] sm:$0xff]
        %v780 = vld [vmem:[%s763 + $0x38] sm:$0xff]
        %v781 = vld [vmem:[%s767] sm:$0xff]
        %v782 = vld [vmem:[#allocation18] ss:$8 sm:$0x3]
        %v783 = vld [vmem:[#allocation2] sm:$0xff]
        %v784 = vld [vmem:[#allocation2 + $0x8] sm:$0xff]
        %v785 = vld [vmem:[#allocation2 + $0x10] sm:$0xff]
        %v786 = vld [vmem:[#allocation2 + $0x18] sm:$0xff]
        %vm787 = vcmask 261120
        %v789 = vsel %vm787, %v783, 0
        %v792 = vsel %vm787, %v784, 0
        %v795 = vsel %vm787, %v785, 0
        %v798 = vsel %vm787, %v786, 0
        %800 = vmatpush.msra.mxu0 0.0
        %801 = vmatpush.msra.mxu0 0.0
        %802 = vmatpush.msra.mxu0 0.0
        %803 = vmatpush.msra.mxu0 0.0
        %804 = vmatpush.msra.mxu0 0.0
        %805 = vmatpush.msra.mxu0 0.0
        %806 = vmatpush.msra.mxu0 0.0
        %807 = vmatpush.msra.mxu0 0.0
        %808 = vmatpush.msra.mxu0 0.0
        %809 = vmatpush.msra.mxu0 0.0
        %810 = vmatpush.msra.mxu0 0.0
        %811 = vmatpush.msra.mxu0 0.0
        %812 = vmatpush.msra.mxu0 %v779
        %813 = vmatpush.msra.mxu0 %v777
        %814 = vmatpush.msra.mxu0 %v775
        %815 = vmatpush.msra.mxu0 %v773
        %816 = vmatmul.f32.gmra.mxu0 %v789
        %v817 = vpop.f32.mrf.mxu0
        %v818 = vadd.f32 0.0, %v817
        %819 = vmatmul.f32.gmra.mxu0 %v792
        %v820 = vpop.f32.mrf.mxu0
        %v821 = vadd.f32 0.0, %v820
        %822 = vmatmul.f32.gmra.mxu0 %v795
        %v823 = vpop.f32.mrf.mxu0
        %v824 = vadd.f32 0.0, %v823
        %825 = vmatmul.f32.gmra.mxu0 %v798
        %v826 = vpop.f32.mrf.mxu0
        %v827 = vadd.f32 0.0, %v826
        %828 = vdwg.mxu0
        %829 = vmatpush.msra.mxu0 0.0
        %830 = vmatpush.msra.mxu0 0.0
        %831 = vmatpush.msra.mxu0 0.0
        %832 = vmatpush.msra.mxu0 0.0
        %833 = vmatpush.msra.mxu0 0.0
        %834 = vmatpush.msra.mxu0 0.0
        %835 = vmatpush.msra.mxu0 0.0
        %836 = vmatpush.msra.mxu0 0.0
        %837 = vmatpush.msra.mxu0 0.0
        %838 = vmatpush.msra.mxu0 0.0
        %839 = vmatpush.msra.mxu0 0.0
        %840 = vmatpush.msra.mxu0 0.0
        %841 = vmatpush.msra.mxu0 %v780
        %842 = vmatpush.msra.mxu0 %v778
        %843 = vmatpush.msra.mxu0 %v776
        %844 = vmatpush.msra.mxu0 %v774
        %845 = vmatmul.f32.gmra.mxu0 %v789
        %v846 = vpop.f32.mrf.mxu0
        %v847 = vadd.f32 0.0, %v846
        %848 = vmatmul.f32.gmra.mxu0 %v792
        %v849 = vpop.f32.mrf.mxu0
        %v850 = vadd.f32 0.0, %v849
        %851 = vmatmul.f32.gmra.mxu0 %v795
        %v852 = vpop.f32.mrf.mxu0
        %v853 = vadd.f32 0.0, %v852
        %854 = vmatmul.f32.gmra.mxu0 %v798
        %v855 = vpop.f32.mrf.mxu0
        %v856 = vadd.f32 0.0, %v855
        %857 = vdwg.mxu0
        %s858 = scalar_lea.vmem [#allocation2], 32
        %v859 = vld [vmem:[%s858] sm:$0xff]
        %v860 = vld [vmem:[%s858 + $0x8] sm:$0xff]
        %v861 = vld [vmem:[%s858 + $0x10] sm:$0xff]
        %v862 = vld [vmem:[%s858 + $0x18] sm:$0xff]
        %v864 = vsel %vm787, %v859, 0
        %v867 = vsel %vm787, %v860, 0
        %v870 = vsel %vm787, %v861, 0
        %v873 = vsel %vm787, %v862, 0
        %875 = vmatpush.msra.mxu0 0.0
        %876 = vmatpush.msra.mxu0 0.0
        %877 = vmatpush.msra.mxu0 0.0
        %878 = vmatpush.msra.mxu0 0.0
        %879 = vmatpush.msra.mxu0 0.0
        %880 = vmatpush.msra.mxu0 0.0
        %881 = vmatpush.msra.mxu0 0.0
        %882 = vmatpush.msra.mxu0 0.0
        %883 = vmatpush.msra.mxu0 0.0
        %884 = vmatpush.msra.mxu0 0.0
        %885 = vmatpush.msra.mxu0 0.0
        %886 = vmatpush.msra.mxu0 0.0
        %887 = vmatpush.msra.mxu0 %v779
        %888 = vmatpush.msra.mxu0 %v777
        %889 = vmatpush.msra.mxu0 %v775
        %890 = vmatpush.msra.mxu0 %v773
        %891 = vmatmul.f32.gmra.mxu0 %v864
        %v892 = vpop.f32.mrf.mxu0
        %v893 = vadd.f32 0.0, %v892
        %894 = vmatmul.f32.gmra.mxu0 %v867
        %v895 = vpop.f32.mrf.mxu0
        %v896 = vadd.f32 0.0, %v895
        %897 = vmatmul.f32.gmra.mxu0 %v870
        %v898 = vpop.f32.mrf.mxu0
        %v899 = vadd.f32 0.0, %v898
        %900 = vmatmul.f32.gmra.mxu0 %v873
        %v901 = vpop.f32.mrf.mxu0
        %v902 = vadd.f32 0.0, %v901
        %903 = vdwg.mxu0
        %904 = vmatpush.msra.mxu0 0.0
        %905 = vmatpush.msra.mxu0 0.0
        %906 = vmatpush.msra.mxu0 0.0
        %907 = vmatpush.msra.mxu0 0.0
        %908 = vmatpush.msra.mxu0 0.0
        %909 = vmatpush.msra.mxu0 0.0
        %910 = vmatpush.msra.mxu0 0.0
        %911 = vmatpush.msra.mxu0 0.0
        %912 = vmatpush.msra.mxu0 0.0
        %913 = vmatpush.msra.mxu0 0.0
        %914 = vmatpush.msra.mxu0 0.0
        %915 = vmatpush.msra.mxu0 0.0
        %916 = vmatpush.msra.mxu0 %v780
        %917 = vmatpush.msra.mxu0 %v778
        %918 = vmatpush.msra.mxu0 %v776
        %919 = vmatpush.msra.mxu0 %v774
        %920 = vmatmul.f32.gmra.mxu0 %v864
        %v921 = vpop.f32.mrf.mxu0
        %v922 = vadd.f32 0.0, %v921
        %923 = vmatmul.f32.gmra.mxu0 %v867
        %v924 = vpop.f32.mrf.mxu0
        %v925 = vadd.f32 0.0, %v924
        %926 = vmatmul.f32.gmra.mxu0 %v870
        %v927 = vpop.f32.mrf.mxu0
        %v928 = vadd.f32 0.0, %v927
        %929 = vmatmul.f32.gmra.mxu0 %v873
        %v930 = vpop.f32.mrf.mxu0
        %v931 = vadd.f32 0.0, %v930
        %932 = vdwg.mxu0
        %s933 = scalar_lea.vmem [#allocation2], 64
        %v934 = vld [vmem:[%s933] sm:$0xff]
        %v935 = vld [vmem:[%s933 + $0x8] sm:$0xff]
        %v936 = vld [vmem:[%s933 + $0x10] sm:$0xff]
        %v937 = vld [vmem:[%s933 + $0x18] sm:$0xff]
        %v939 = vsel %vm787, %v934, 0
        %v942 = vsel %vm787, %v935, 0
        %v945 = vsel %vm787, %v936, 0
        %v948 = vsel %vm787, %v937, 0
        %950 = vmatpush.msra.mxu0 0.0
        %951 = vmatpush.msra.mxu0 0.0
        %952 = vmatpush.msra.mxu0 0.0
        %953 = vmatpush.msra.mxu0 0.0
        %954 = vmatpush.msra.mxu0 0.0
        %955 = vmatpush.msra.mxu0 0.0
        %956 = vmatpush.msra.mxu0 0.0
        %957 = vmatpush.msra.mxu0 0.0
        %958 = vmatpush.msra.mxu0 0.0
        %959 = vmatpush.msra.mxu0 0.0
        %960 = vmatpush.msra.mxu0 0.0
        %961 = vmatpush.msra.mxu0 0.0
        %962 = vmatpush.msra.mxu0 %v779
        %963 = vmatpush.msra.mxu0 %v777
        %964 = vmatpush.msra.mxu0 %v775
        %965 = vmatpush.msra.mxu0 %v773
        %966 = vmatmul.f32.gmra.mxu0 %v939
        %v967 = vpop.f32.mrf.mxu0
        %v968 = vadd.f32 0.0, %v967
        %969 = vmatmul.f32.gmra.mxu0 %v942
        %v970 = vpop.f32.mrf.mxu0
        %v971 = vadd.f32 0.0, %v970
        %972 = vmatmul.f32.gmra.mxu0 %v945
        %v973 = vpop.f32.mrf.mxu0
        %v974 = vadd.f32 0.0, %v973
        %975 = vmatmul.f32.gmra.mxu0 %v948
        %v976 = vpop.f32.mrf.mxu0
        %v977 = vadd.f32 0.0, %v976
        %978 = vdwg.mxu0
        %979 = vmatpush.msra.mxu0 0.0
        %980 = vmatpush.msra.mxu0 0.0
        %981 = vmatpush.msra.mxu0 0.0
        %982 = vmatpush.msra.mxu0 0.0
        %983 = vmatpush.msra.mxu0 0.0
        %984 = vmatpush.msra.mxu0 0.0
        %985 = vmatpush.msra.mxu0 0.0
        %986 = vmatpush.msra.mxu0 0.0
        %987 = vmatpush.msra.mxu0 0.0
        %988 = vmatpush.msra.mxu0 0.0
        %989 = vmatpush.msra.mxu0 0.0
        %990 = vmatpush.msra.mxu0 0.0
        %991 = vmatpush.msra.mxu0 %v780
        %992 = vmatpush.msra.mxu0 %v778
        %993 = vmatpush.msra.mxu0 %v776
        %994 = vmatpush.msra.mxu0 %v774
        %995 = vmatmul.f32.gmra.mxu0 %v939
        %v996 = vpop.f32.mrf.mxu0
        %v997 = vadd.f32 0.0, %v996
        %998 = vmatmul.f32.gmra.mxu0 %v942
        %v999 = vpop.f32.mrf.mxu0
        %v1000 = vadd.f32 0.0, %v999
        %1001 = vmatmul.f32.gmra.mxu0 %v945
        %v1002 = vpop.f32.mrf.mxu0
        %v1003 = vadd.f32 0.0, %v1002
        %1004 = vmatmul.f32.gmra.mxu0 %v948
        %v1005 = vpop.f32.mrf.mxu0
        %v1006 = vadd.f32 0.0, %v1005
        %1007 = vdwg.mxu0
        %v1008 = vld [vmem:[#allocation7] sm:$0xff]
        %v1009 = vld [vmem:[#allocation7 + $0x8] sm:$0xff]
        %v1010 = vld [vmem:[#allocation7 + $0x10] sm:$0xff]
        %v1011 = vld [vmem:[#allocation7 + $0x18] sm:$0xff]
        %v1012 = vld [vmem:[#allocation7 + $0x20] sm:$0xff]
        %v1013 = vld [vmem:[#allocation7 + $0x28] sm:$0xff]
        %v1014 = vld [vmem:[#allocation7 + $0x30] sm:$0xff]
        %v1015 = vld [vmem:[#allocation7 + $0x38] sm:$0xff]
        %v1016 = vld [vmem:[#allocation7 + $0x40] sm:$0xff]
        %v1017 = vld [vmem:[#allocation7 + $0x48] sm:$0xff]
        %v1018 = vld [vmem:[#allocation7 + $0x50] sm:$0xff]
        %v1019 = vld [vmem:[#allocation7 + $0x58] sm:$0xff]
        %v1020 = vld [vmem:[#allocation7 + $0x60] sm:$0xff]
        %v1021 = vld [vmem:[#allocation7 + $0x68] sm:$0xff]
        %v1022 = vld [vmem:[#allocation7 + $0x70] sm:$0xff]
        %v1023 = vld [vmem:[#allocation7 + $0x78] sm:$0xff]
        %v1024 = vld [vmem:[#allocation7 + $0x80] sm:$0xff]
        %v1025 = vld [vmem:[#allocation7 + $0x88] sm:$0xff]
        %v1026 = vld [vmem:[#allocation7 + $0x90] sm:$0xff]
        %v1027 = vld [vmem:[#allocation7 + $0x98] sm:$0xff]
        %v1028 = vld [vmem:[#allocation7 + $0xa0] sm:$0xff]
        %v1029 = vld [vmem:[#allocation7 + $0xa8] sm:$0xff]
        %v1030 = vld [vmem:[#allocation7 + $0xb0] sm:$0xff]
        %v1031 = vld [vmem:[#allocation7 + $0xb8] sm:$0xff]
        %v1032 = vld [vmem:[#allocation7 + $0xc0] sm:$0xff]
        %v1033 = vld [vmem:[#allocation7 + $0xc8] sm:$0xff]
        %v1034 = vld [vmem:[#allocation7 + $0xd0] sm:$0xff]
        %v1035 = vld [vmem:[#allocation7 + $0xd8] sm:$0xff]
        %v1036 = vld [vmem:[#allocation7 + $0xe0] sm:$0xff]
        %v1037 = vld [vmem:[#allocation7 + $0xe8] sm:$0xff]
        %v1038 = vld [vmem:[#allocation7 + $0xf0] sm:$0xff]
        %v1039 = vld [vmem:[#allocation7 + $0xf8] sm:$0xff]
        %v1040 = vld [vmem:[#allocation7 + $0x100] sm:$0xff]
        %v1041 = vld [vmem:[#allocation7 + $0x108] sm:$0xff]
        %v1042 = vld [vmem:[#allocation7 + $0x110] sm:$0xff]
        %v1043 = vld [vmem:[#allocation7 + $0x118] sm:$0xff]
        %v1044 = vld [vmem:[#allocation7 + $0x120] sm:$0xff]
        %v1045 = vld [vmem:[#allocation7 + $0x128] sm:$0xff]
        %v1046 = vld [vmem:[#allocation7 + $0x130] sm:$0xff]
        %v1047 = vld [vmem:[#allocation7 + $0x138] sm:$0xff]
        %v1048 = vld [vmem:[#allocation7 + $0x140] sm:$0xff]
        %v1049 = vld [vmem:[#allocation7 + $0x148] sm:$0xff]
        %v1050 = vld [vmem:[#allocation7 + $0x150] sm:$0xff]
        %v1051 = vld [vmem:[#allocation7 + $0x158] sm:$0xff]
        %v1052 = vld [vmem:[#allocation7 + $0x160] sm:$0xff]
        %v1053 = vld [vmem:[#allocation7 + $0x168] sm:$0xff]
        %v1054 = vld [vmem:[#allocation7 + $0x170] sm:$0xff]
        %v1055 = vld [vmem:[#allocation7 + $0x178] sm:$0xff]
        %v1056 = vld [vmem:[#allocation7 + $0x180] sm:$0xff]
        %v1057 = vld [vmem:[#allocation7 + $0x188] sm:$0xff]
        %v1058 = vld [vmem:[#allocation7 + $0x190] sm:$0xff]
        %v1059 = vld [vmem:[#allocation7 + $0x198] sm:$0xff]
        %v1060 = vld [vmem:[#allocation7 + $0x1a0] sm:$0xff]
        %v1061 = vld [vmem:[#allocation7 + $0x1a8] sm:$0xff]
        %v1062 = vld [vmem:[#allocation7 + $0x1b0] sm:$0xff]
        %v1063 = vld [vmem:[#allocation7 + $0x1b8] sm:$0xff]
        %v1064 = vld [vmem:[#allocation7 + $0x1c0] sm:$0xff]
        %v1065 = vld [vmem:[#allocation7 + $0x1c8] sm:$0xff]
        %v1066 = vld [vmem:[#allocation7 + $0x1d0] sm:$0xff]
        %v1067 = vld [vmem:[#allocation7 + $0x1d8] sm:$0xff]
        %v1068 = vld [vmem:[#allocation7 + $0x1e0] sm:$0xff]
        %v1069 = vld [vmem:[#allocation7 + $0x1e8] sm:$0xff]
        %v1070 = vld [vmem:[#allocation7 + $0x1f0] sm:$0xff]
        %v1071 = vld [vmem:[#allocation7 + $0x1f8] sm:$0xff]
        %s1072 = scalar_lea.vmem [#allocation7], 512
        %v1073 = vld [vmem:[%s1072] sm:$0xff]
        %v1074 = vld [vmem:[%s1072 + $0x8] sm:$0xff]
        %v1075 = vld [vmem:[%s1072 + $0x10] sm:$0xff]
        %v1076 = vld [vmem:[%s1072 + $0x18] sm:$0xff]
        %v1077 = vld [vmem:[%s1072 + $0x20] sm:$0xff]
        %v1078 = vld [vmem:[%s1072 + $0x28] sm:$0xff]
        %v1079 = vld [vmem:[%s1072 + $0x30] sm:$0xff]
        %v1080 = vld [vmem:[%s1072 + $0x38] sm:$0xff]
        %v1081 = vld [vmem:[%s1072 + $0x40] sm:$0xff]
        %v1082 = vld [vmem:[%s1072 + $0x48] sm:$0xff]
        %v1083 = vld [vmem:[%s1072 + $0x50] sm:$0xff]
        %v1084 = vld [vmem:[%s1072 + $0x58] sm:$0xff]
        %v1085 = vld [vmem:[%s1072 + $0x60] sm:$0xff]
        %v1086 = vld [vmem:[%s1072 + $0x68] sm:$0xff]
        %v1087 = vld [vmem:[%s1072 + $0x70] sm:$0xff]
        %v1088 = vld [vmem:[%s1072 + $0x78] sm:$0xff]
        %v1089 = vld [vmem:[%s1072 + $0x80] sm:$0xff]
        %v1090 = vld [vmem:[%s1072 + $0x88] sm:$0xff]
        %v1091 = vld [vmem:[%s1072 + $0x90] sm:$0xff]
        %v1092 = vld [vmem:[%s1072 + $0x98] sm:$0xff]
        %v1093 = vld [vmem:[%s1072 + $0xa0] sm:$0xff]
        %v1094 = vld [vmem:[%s1072 + $0xa8] sm:$0xff]
        %v1095 = vld [vmem:[%s1072 + $0xb0] sm:$0xff]
        %v1096 = vld [vmem:[%s1072 + $0xb8] sm:$0xff]
        %v1097 = vld [vmem:[%s1072 + $0xc0] sm:$0xff]
        %v1098 = vld [vmem:[%s1072 + $0xc8] sm:$0xff]
        %v1099 = vld [vmem:[%s1072 + $0xd0] sm:$0xff]
        %v1100 = vld [vmem:[%s1072 + $0xd8] sm:$0xff]
        %v1101 = vld [vmem:[%s1072 + $0xe0] sm:$0xff]
        %v1102 = vld [vmem:[%s1072 + $0xe8] sm:$0xff]
        %v1103 = vld [vmem:[%s1072 + $0xf0] sm:$0xff]
        %v1104 = vld [vmem:[%s1072 + $0xf8] sm:$0xff]
        %v1105 = vld [vmem:[%s1072 + $0x100] sm:$0xff]
        %v1106 = vld [vmem:[%s1072 + $0x108] sm:$0xff]
        %v1107 = vld [vmem:[%s1072 + $0x110] sm:$0xff]
        %v1108 = vld [vmem:[%s1072 + $0x118] sm:$0xff]
        %v1109 = vld [vmem:[%s1072 + $0x120] sm:$0xff]
        %v1110 = vld [vmem:[%s1072 + $0x128] sm:$0xff]
        %v1111 = vld [vmem:[%s1072 + $0x130] sm:$0xff]
        %v1112 = vld [vmem:[%s1072 + $0x138] sm:$0xff]
        %v1113 = vld [vmem:[%s1072 + $0x140] sm:$0xff]
        %v1114 = vld [vmem:[%s1072 + $0x148] sm:$0xff]
        %v1115 = vld [vmem:[%s1072 + $0x150] sm:$0xff]
        %v1116 = vld [vmem:[%s1072 + $0x158] sm:$0xff]
        %v1117 = vld [vmem:[%s1072 + $0x160] sm:$0xff]
        %v1118 = vld [vmem:[%s1072 + $0x168] sm:$0xff]
        %v1119 = vld [vmem:[%s1072 + $0x170] sm:$0xff]
        %v1120 = vld [vmem:[%s1072 + $0x178] sm:$0xff]
        %v1121 = vld [vmem:[%s1072 + $0x180] sm:$0xff]
        %v1122 = vld [vmem:[%s1072 + $0x188] sm:$0xff]
        %v1123 = vld [vmem:[%s1072 + $0x190] sm:$0xff]
        %v1124 = vld [vmem:[%s1072 + $0x198] sm:$0xff]
        %v1125 = vld [vmem:[%s1072 + $0x1a0] sm:$0xff]
        %v1126 = vld [vmem:[%s1072 + $0x1a8] sm:$0xff]
        %v1127 = vld [vmem:[%s1072 + $0x1b0] sm:$0xff]
        %v1128 = vld [vmem:[%s1072 + $0x1b8] sm:$0xff]
        %v1129 = vld [vmem:[%s1072 + $0x1c0] sm:$0xff]
        %v1130 = vld [vmem:[%s1072 + $0x1c8] sm:$0xff]
        %v1131 = vld [vmem:[%s1072 + $0x1d0] sm:$0xff]
        %v1132 = vld [vmem:[%s1072 + $0x1d8] sm:$0xff]
        %v1133 = vld [vmem:[%s1072 + $0x1e0] sm:$0xff]
        %v1134 = vld [vmem:[%s1072 + $0x1e8] sm:$0xff]
        %v1135 = vld [vmem:[%s1072 + $0x1f0] sm:$0xff]
        %v1136 = vld [vmem:[%s1072 + $0x1f8] sm:$0xff]
        %1137 = vmatpush.msra.mxu0 %v1103
        %1138 = vmatpush.msra.mxu0 %v1101
        %1139 = vmatpush.msra.mxu0 %v1099
        %1140 = vmatpush.msra.mxu0 %v1097
        %1141 = vmatpush.msra.mxu0 %v1095
        %1142 = vmatpush.msra.mxu0 %v1093
        %1143 = vmatpush.msra.mxu0 %v1091
        %1144 = vmatpush.msra.mxu0 %v1089
        %1145 = vmatpush.msra.mxu0 %v1087
        %1146 = vmatpush.msra.mxu0 %v1085
        %1147 = vmatpush.msra.mxu0 %v1083
        %1148 = vmatpush.msra.mxu0 %v1081
        %1149 = vmatpush.msra.mxu0 %v1079
        %1150 = vmatpush.msra.mxu0 %v1077
        %1151 = vmatpush.msra.mxu0 %v1075
        %1152 = vmatpush.msra.mxu0 %v1073
        %1153 = vmatmul.f32.gmra.mxu0 %v893
        %v1154 = vpop.f32.mrf.mxu0
        %v1155 = vadd.f32 0.0, %v1154
        %1156 = vmatmul.f32.gmra.mxu0 %v896
        %v1157 = vpop.f32.mrf.mxu0
        %v1158 = vadd.f32 0.0, %v1157
        %1159 = vmatmul.f32.gmra.mxu0 %v899
        %v1160 = vpop.f32.mrf.mxu0
        %v1161 = vadd.f32 0.0, %v1160
        %1162 = vmatmul.f32.gmra.mxu0 %v902
        %v1163 = vpop.f32.mrf.mxu0
        %v1164 = vadd.f32 0.0, %v1163
        %1165 = vdwg.mxu0
        %1166 = vmatpush.msra.mxu0 %v1135
        %1167 = vmatpush.msra.mxu0 %v1133
        %1168 = vmatpush.msra.mxu0 %v1131
        %1169 = vmatpush.msra.mxu0 %v1129
        %1170 = vmatpush.msra.mxu0 %v1127
        %1171 = vmatpush.msra.mxu0 %v1125
        %1172 = vmatpush.msra.mxu0 %v1123
        %1173 = vmatpush.msra.mxu0 %v1121
        %1174 = vmatpush.msra.mxu0 %v1119
        %1175 = vmatpush.msra.mxu0 %v1117
        %1176 = vmatpush.msra.mxu0 %v1115
        %1177 = vmatpush.msra.mxu0 %v1113
        %1178 = vmatpush.msra.mxu0 %v1111
        %1179 = vmatpush.msra.mxu0 %v1109
        %1180 = vmatpush.msra.mxu0 %v1107
        %1181 = vmatpush.msra.mxu0 %v1105
        %1182 = vmatmul.f32.gmra.mxu0 %v922
        %v1183 = vpop.f32.mrf.mxu0
        %v1184 = vadd.f32 %v1155, %v1183
        %1185 = vmatmul.f32.gmra.mxu0 %v925
        %v1186 = vpop.f32.mrf.mxu0
        %v1187 = vadd.f32 %v1158, %v1186
        %1188 = vmatmul.f32.gmra.mxu0 %v928
        %v1189 = vpop.f32.mrf.mxu0
        %v1190 = vadd.f32 %v1161, %v1189
        %1191 = vmatmul.f32.gmra.mxu0 %v931
        %v1192 = vpop.f32.mrf.mxu0
        %v1193 = vadd.f32 %v1164, %v1192
        %1194 = vdwg.mxu0
        %1195 = vmatpush.msra.mxu0 %v1104
        %1196 = vmatpush.msra.mxu0 %v1102
        %1197 = vmatpush.msra.mxu0 %v1100
        %1198 = vmatpush.msra.mxu0 %v1098
        %1199 = vmatpush.msra.mxu0 %v1096
        %1200 = vmatpush.msra.mxu0 %v1094
        %1201 = vmatpush.msra.mxu0 %v1092
        %1202 = vmatpush.msra.mxu0 %v1090
        %1203 = vmatpush.msra.mxu0 %v1088
        %1204 = vmatpush.msra.mxu0 %v1086
        %1205 = vmatpush.msra.mxu0 %v1084
        %1206 = vmatpush.msra.mxu0 %v1082
        %1207 = vmatpush.msra.mxu0 %v1080
        %1208 = vmatpush.msra.mxu0 %v1078
        %1209 = vmatpush.msra.mxu0 %v1076
        %1210 = vmatpush.msra.mxu0 %v1074
        %1211 = vmatmul.f32.gmra.mxu0 %v893
        %v1212 = vpop.f32.mrf.mxu0
        %v1213 = vadd.f32 0.0, %v1212
        %1214 = vmatmul.f32.gmra.mxu0 %v896
        %v1215 = vpop.f32.mrf.mxu0
        %v1216 = vadd.f32 0.0, %v1215
        %1217 = vmatmul.f32.gmra.mxu0 %v899
        %v1218 = vpop.f32.mrf.mxu0
        %v1219 = vadd.f32 0.0, %v1218
        %1220 = vmatmul.f32.gmra.mxu0 %v902
        %v1221 = vpop.f32.mrf.mxu0
        %v1222 = vadd.f32 0.0, %v1221
        %1223 = vdwg.mxu0
        %1224 = vmatpush.msra.mxu0 %v1136
        %1225 = vmatpush.msra.mxu0 %v1134
        %1226 = vmatpush.msra.mxu0 %v1132
        %1227 = vmatpush.msra.mxu0 %v1130
        %1228 = vmatpush.msra.mxu0 %v1128
        %1229 = vmatpush.msra.mxu0 %v1126
        %1230 = vmatpush.msra.mxu0 %v1124
        %1231 = vmatpush.msra.mxu0 %v1122
        %1232 = vmatpush.msra.mxu0 %v1120
        %1233 = vmatpush.msra.mxu0 %v1118
        %1234 = vmatpush.msra.mxu0 %v1116
        %1235 = vmatpush.msra.mxu0 %v1114
        %1236 = vmatpush.msra.mxu0 %v1112
        %1237 = vmatpush.msra.mxu0 %v1110
        %1238 = vmatpush.msra.mxu0 %v1108
        %1239 = vmatpush.msra.mxu0 %v1106
        %1240 = vmatmul.f32.gmra.mxu0 %v922
        %v1241 = vpop.f32.mrf.mxu0
        %v1242 = vadd.f32 %v1213, %v1241
        %1243 = vmatmul.f32.gmra.mxu0 %v925
        %v1244 = vpop.f32.mrf.mxu0
        %v1245 = vadd.f32 %v1216, %v1244
        %1246 = vmatmul.f32.gmra.mxu0 %v928
        %v1247 = vpop.f32.mrf.mxu0
        %v1248 = vadd.f32 %v1219, %v1247
        %1249 = vmatmul.f32.gmra.mxu0 %v931
        %v1250 = vpop.f32.mrf.mxu0
        %v1251 = vadd.f32 %v1222, %v1250
        %1252 = vdwg.mxu0
        %1253 = vmatpush.msra.mxu0 %v1038
        %1254 = vmatpush.msra.mxu0 %v1036
        %1255 = vmatpush.msra.mxu0 %v1034
        %1256 = vmatpush.msra.mxu0 %v1032
        %1257 = vmatpush.msra.mxu0 %v1030
        %1258 = vmatpush.msra.mxu0 %v1028
        %1259 = vmatpush.msra.mxu0 %v1026
        %1260 = vmatpush.msra.mxu0 %v1024
        %1261 = vmatpush.msra.mxu0 %v1022
        %1262 = vmatpush.msra.mxu0 %v1020
        %1263 = vmatpush.msra.mxu0 %v1018
        %1264 = vmatpush.msra.mxu0 %v1016
        %1265 = vmatpush.msra.mxu0 %v1014
        %1266 = vmatpush.msra.mxu0 %v1012
        %1267 = vmatpush.msra.mxu0 %v1010
        %1268 = vmatpush.msra.mxu0 %v1008
        %1269 = vmatmul.f32.gmra.mxu0 %v818
        %v1270 = vpop.f32.mrf.mxu0
        %v1271 = vadd.f32 %v1184, %v1270
        %1272 = vmatmul.f32.gmra.mxu0 %v821
        %v1273 = vpop.f32.mrf.mxu0
        %v1274 = vadd.f32 %v1187, %v1273
        %1275 = vmatmul.f32.gmra.mxu0 %v824
        %v1276 = vpop.f32.mrf.mxu0
        %v1277 = vadd.f32 %v1190, %v1276
        %1278 = vmatmul.f32.gmra.mxu0 %v827
        %v1279 = vpop.f32.mrf.mxu0
        %v1280 = vadd.f32 %v1193, %v1279
        %1281 = vdwg.mxu0
        %1282 = vmatpush.msra.mxu0 %v1070
        %1283 = vmatpush.msra.mxu0 %v1068
        %1284 = vmatpush.msra.mxu0 %v1066
        %1285 = vmatpush.msra.mxu0 %v1064
        %1286 = vmatpush.msra.mxu0 %v1062
        %1287 = vmatpush.msra.mxu0 %v1060
        %1288 = vmatpush.msra.mxu0 %v1058
        %1289 = vmatpush.msra.mxu0 %v1056
        %1290 = vmatpush.msra.mxu0 %v1054
        %1291 = vmatpush.msra.mxu0 %v1052
        %1292 = vmatpush.msra.mxu0 %v1050
        %1293 = vmatpush.msra.mxu0 %v1048
        %1294 = vmatpush.msra.mxu0 %v1046
        %1295 = vmatpush.msra.mxu0 %v1044
        %1296 = vmatpush.msra.mxu0 %v1042
        %1297 = vmatpush.msra.mxu0 %v1040
        %1298 = vmatmul.f32.gmra.mxu0 %v847
        %v1299 = vpop.f32.mrf.mxu0
        %v1300 = vadd.f32 %v1271, %v1299
        %1301 = vmatmul.f32.gmra.mxu0 %v850
        %v1302 = vpop.f32.mrf.mxu0
        %v1303 = vadd.f32 %v1274, %v1302
        %1304 = vmatmul.f32.gmra.mxu0 %v853
        %v1305 = vpop.f32.mrf.mxu0
        %v1306 = vadd.f32 %v1277, %v1305
        %1307 = vmatmul.f32.gmra.mxu0 %v856
        %v1308 = vpop.f32.mrf.mxu0
        %v1309 = vadd.f32 %v1280, %v1308
        %1310 = vdwg.mxu0
        %1311 = vmatpush.msra.mxu0 %v1039
        %1312 = vmatpush.msra.mxu0 %v1037
        %1313 = vmatpush.msra.mxu0 %v1035
        %1314 = vmatpush.msra.mxu0 %v1033
        %1315 = vmatpush.msra.mxu0 %v1031
        %1316 = vmatpush.msra.mxu0 %v1029
        %1317 = vmatpush.msra.mxu0 %v1027
        %1318 = vmatpush.msra.mxu0 %v1025
        %1319 = vmatpush.msra.mxu0 %v1023
        %1320 = vmatpush.msra.mxu0 %v1021
        %1321 = vmatpush.msra.mxu0 %v1019
        %1322 = vmatpush.msra.mxu0 %v1017
        %1323 = vmatpush.msra.mxu0 %v1015
        %1324 = vmatpush.msra.mxu0 %v1013
        %1325 = vmatpush.msra.mxu0 %v1011
        %1326 = vmatpush.msra.mxu0 %v1009
        %1327 = vmatmul.f32.gmra.mxu0 %v818
        %v1328 = vpop.f32.mrf.mxu0
        %v1329 = vadd.f32 %v1242, %v1328
        %1330 = vmatmul.f32.gmra.mxu0 %v821
        %v1331 = vpop.f32.mrf.mxu0
        %v1332 = vadd.f32 %v1245, %v1331
        %1333 = vmatmul.f32.gmra.mxu0 %v824
        %v1334 = vpop.f32.mrf.mxu0
        %v1335 = vadd.f32 %v1248, %v1334
        %1336 = vmatmul.f32.gmra.mxu0 %v827
        %v1337 = vpop.f32.mrf.mxu0
        %v1338 = vadd.f32 %v1251, %v1337
        %1339 = vdwg.mxu0
        %1340 = vmatpush.msra.mxu0 %v1071
        %1341 = vmatpush.msra.mxu0 %v1069
        %1342 = vmatpush.msra.mxu0 %v1067
        %1343 = vmatpush.msra.mxu0 %v1065
        %1344 = vmatpush.msra.mxu0 %v1063
        %1345 = vmatpush.msra.mxu0 %v1061
        %1346 = vmatpush.msra.mxu0 %v1059
        %1347 = vmatpush.msra.mxu0 %v1057
        %1348 = vmatpush.msra.mxu0 %v1055
        %1349 = vmatpush.msra.mxu0 %v1053
        %1350 = vmatpush.msra.mxu0 %v1051
        %1351 = vmatpush.msra.mxu0 %v1049
        %1352 = vmatpush.msra.mxu0 %v1047
        %1353 = vmatpush.msra.mxu0 %v1045
        %1354 = vmatpush.msra.mxu0 %v1043
        %1355 = vmatpush.msra.mxu0 %v1041
        %1356 = vmatmul.f32.gmra.mxu0 %v847
        %v1357 = vpop.f32.mrf.mxu0
        %v1358 = vadd.f32 %v1329, %v1357
        %1359 = vmatmul.f32.gmra.mxu0 %v850
        %v1360 = vpop.f32.mrf.mxu0
        %v1361 = vadd.f32 %v1332, %v1360
        %1362 = vmatmul.f32.gmra.mxu0 %v853
        %v1363 = vpop.f32.mrf.mxu0
        %v1364 = vadd.f32 %v1335, %v1363
        %1365 = vmatmul.f32.gmra.mxu0 %v856
        %v1366 = vpop.f32.mrf.mxu0
        %v1367 = vadd.f32 %v1338, %v1366
        %1368 = vdwg.mxu0
        %s1369 = scalar_lea.vmem [#allocation7], 1024
        %v1370 = vld [vmem:[%s1369] sm:$0xff]
        %v1371 = vld [vmem:[%s1369 + $0x8] sm:$0xff]
        %v1372 = vld [vmem:[%s1369 + $0x10] sm:$0xff]
        %v1373 = vld [vmem:[%s1369 + $0x18] sm:$0xff]
        %v1374 = vld [vmem:[%s1369 + $0x20] sm:$0xff]
        %v1375 = vld [vmem:[%s1369 + $0x28] sm:$0xff]
        %v1376 = vld [vmem:[%s1369 + $0x30] sm:$0xff]
        %v1377 = vld [vmem:[%s1369 + $0x38] sm:$0xff]
        %v1378 = vld [vmem:[%s1369 + $0x40] sm:$0xff]
        %v1379 = vld [vmem:[%s1369 + $0x48] sm:$0xff]
        %v1380 = vld [vmem:[%s1369 + $0x50] sm:$0xff]
        %v1381 = vld [vmem:[%s1369 + $0x58] sm:$0xff]
        %v1382 = vld [vmem:[%s1369 + $0x60] sm:$0xff]
        %v1383 = vld [vmem:[%s1369 + $0x68] sm:$0xff]
        %v1384 = vld [vmem:[%s1369 + $0x70] sm:$0xff]
        %v1385 = vld [vmem:[%s1369 + $0x78] sm:$0xff]
        %v1386 = vld [vmem:[%s1369 + $0x80] sm:$0xff]
        %v1387 = vld [vmem:[%s1369 + $0x88] sm:$0xff]
        %v1388 = vld [vmem:[%s1369 + $0x90] sm:$0xff]
        %v1389 = vld [vmem:[%s1369 + $0x98] sm:$0xff]
        %v1390 = vld [vmem:[%s1369 + $0xa0] sm:$0xff]
        %v1391 = vld [vmem:[%s1369 + $0xa8] sm:$0xff]
        %v1392 = vld [vmem:[%s1369 + $0xb0] sm:$0xff]
        %v1393 = vld [vmem:[%s1369 + $0xb8] sm:$0xff]
        %v1394 = vld [vmem:[%s1369 + $0xc0] sm:$0xff]
        %v1395 = vld [vmem:[%s1369 + $0xc8] sm:$0xff]
        %v1396 = vld [vmem:[%s1369 + $0xd0] sm:$0xff]
        %v1397 = vld [vmem:[%s1369 + $0xd8] sm:$0xff]
        %v1398 = vld [vmem:[%s1369 + $0xe0] sm:$0xff]
        %v1399 = vld [vmem:[%s1369 + $0xe8] sm:$0xff]
        %v1400 = vld [vmem:[%s1369 + $0xf0] sm:$0xff]
        %v1401 = vld [vmem:[%s1369 + $0xf8] sm:$0xff]
        %v1402 = vld [vmem:[%s1369 + $0x100] sm:$0xff]
        %v1403 = vld [vmem:[%s1369 + $0x108] sm:$0xff]
        %v1404 = vld [vmem:[%s1369 + $0x110] sm:$0xff]
        %v1405 = vld [vmem:[%s1369 + $0x118] sm:$0xff]
        %v1406 = vld [vmem:[%s1369 + $0x120] sm:$0xff]
        %v1407 = vld [vmem:[%s1369 + $0x128] sm:$0xff]
        %v1408 = vld [vmem:[%s1369 + $0x130] sm:$0xff]
        %v1409 = vld [vmem:[%s1369 + $0x138] sm:$0xff]
        %v1410 = vld [vmem:[%s1369 + $0x140] sm:$0xff]
        %v1411 = vld [vmem:[%s1369 + $0x148] sm:$0xff]
        %v1412 = vld [vmem:[%s1369 + $0x150] sm:$0xff]
        %v1413 = vld [vmem:[%s1369 + $0x158] sm:$0xff]
        %v1414 = vld [vmem:[%s1369 + $0x160] sm:$0xff]
        %v1415 = vld [vmem:[%s1369 + $0x168] sm:$0xff]
        %v1416 = vld [vmem:[%s1369 + $0x170] sm:$0xff]
        %v1417 = vld [vmem:[%s1369 + $0x178] sm:$0xff]
        %v1418 = vld [vmem:[%s1369 + $0x180] sm:$0xff]
        %v1419 = vld [vmem:[%s1369 + $0x188] sm:$0xff]
        %v1420 = vld [vmem:[%s1369 + $0x190] sm:$0xff]
        %v1421 = vld [vmem:[%s1369 + $0x198] sm:$0xff]
        %v1422 = vld [vmem:[%s1369 + $0x1a0] sm:$0xff]
        %v1423 = vld [vmem:[%s1369 + $0x1a8] sm:$0xff]
        %v1424 = vld [vmem:[%s1369 + $0x1b0] sm:$0xff]
        %v1425 = vld [vmem:[%s1369 + $0x1b8] sm:$0xff]
        %v1426 = vld [vmem:[%s1369 + $0x1c0] sm:$0xff]
        %v1427 = vld [vmem:[%s1369 + $0x1c8] sm:$0xff]
        %v1428 = vld [vmem:[%s1369 + $0x1d0] sm:$0xff]
        %v1429 = vld [vmem:[%s1369 + $0x1d8] sm:$0xff]
        %v1430 = vld [vmem:[%s1369 + $0x1e0] sm:$0xff]
        %v1431 = vld [vmem:[%s1369 + $0x1e8] sm:$0xff]
        %v1432 = vld [vmem:[%s1369 + $0x1f0] sm:$0xff]
        %v1433 = vld [vmem:[%s1369 + $0x1f8] sm:$0xff]
        %1434 = vmatpush.msra.mxu0 %v1400
        %1435 = vmatpush.msra.mxu0 %v1398
        %1436 = vmatpush.msra.mxu0 %v1396
        %1437 = vmatpush.msra.mxu0 %v1394
        %1438 = vmatpush.msra.mxu0 %v1392
        %1439 = vmatpush.msra.mxu0 %v1390
        %1440 = vmatpush.msra.mxu0 %v1388
        %1441 = vmatpush.msra.mxu0 %v1386
        %1442 = vmatpush.msra.mxu0 %v1384
        %1443 = vmatpush.msra.mxu0 %v1382
        %1444 = vmatpush.msra.mxu0 %v1380
        %1445 = vmatpush.msra.mxu0 %v1378
        %1446 = vmatpush.msra.mxu0 %v1376
        %1447 = vmatpush.msra.mxu0 %v1374
        %1448 = vmatpush.msra.mxu0 %v1372
        %1449 = vmatpush.msra.mxu0 %v1370
        %1450 = vmatmul.f32.gmra.mxu0 %v968
        %v1451 = vpop.f32.mrf.mxu0
        %v1452 = vadd.f32 0.0, %v1451
        %1453 = vmatmul.f32.gmra.mxu0 %v971
        %v1454 = vpop.f32.mrf.mxu0
        %v1455 = vadd.f32 0.0, %v1454
        %1456 = vmatmul.f32.gmra.mxu0 %v974
        %v1457 = vpop.f32.mrf.mxu0
        %v1458 = vadd.f32 0.0, %v1457
        %1459 = vmatmul.f32.gmra.mxu0 %v977
        %v1460 = vpop.f32.mrf.mxu0
        %v1461 = vadd.f32 0.0, %v1460
        %1462 = vdwg.mxu0
        %1463 = vmatpush.msra.mxu0 %v1432
        %1464 = vmatpush.msra.mxu0 %v1430
        %1465 = vmatpush.msra.mxu0 %v1428
        %1466 = vmatpush.msra.mxu0 %v1426
        %1467 = vmatpush.msra.mxu0 %v1424
        %1468 = vmatpush.msra.mxu0 %v1422
        %1469 = vmatpush.msra.mxu0 %v1420
        %1470 = vmatpush.msra.mxu0 %v1418
        %1471 = vmatpush.msra.mxu0 %v1416
        %1472 = vmatpush.msra.mxu0 %v1414
        %1473 = vmatpush.msra.mxu0 %v1412
        %1474 = vmatpush.msra.mxu0 %v1410
        %1475 = vmatpush.msra.mxu0 %v1408
        %1476 = vmatpush.msra.mxu0 %v1406
        %1477 = vmatpush.msra.mxu0 %v1404
        %1478 = vmatpush.msra.mxu0 %v1402
        %1479 = vmatmul.f32.gmra.mxu0 %v997
        %v1480 = vpop.f32.mrf.mxu0
        %v1481 = vadd.f32 %v1452, %v1480
        %1482 = vmatmul.f32.gmra.mxu0 %v1000
        %v1483 = vpop.f32.mrf.mxu0
        %v1484 = vadd.f32 %v1455, %v1483
        %1485 = vmatmul.f32.gmra.mxu0 %v1003
        %v1486 = vpop.f32.mrf.mxu0
        %v1487 = vadd.f32 %v1458, %v1486
        %1488 = vmatmul.f32.gmra.mxu0 %v1006
        %v1489 = vpop.f32.mrf.mxu0
        %v1490 = vadd.f32 %v1461, %v1489
        %1491 = vdwg.mxu0
        %1492 = vmatpush.msra.mxu0 %v1401
        %1493 = vmatpush.msra.mxu0 %v1399
        %1494 = vmatpush.msra.mxu0 %v1397
        %1495 = vmatpush.msra.mxu0 %v1395
        %1496 = vmatpush.msra.mxu0 %v1393
        %1497 = vmatpush.msra.mxu0 %v1391
        %1498 = vmatpush.msra.mxu0 %v1389
        %1499 = vmatpush.msra.mxu0 %v1387
        %1500 = vmatpush.msra.mxu0 %v1385
        %1501 = vmatpush.msra.mxu0 %v1383
        %1502 = vmatpush.msra.mxu0 %v1381
        %1503 = vmatpush.msra.mxu0 %v1379
        %1504 = vmatpush.msra.mxu0 %v1377
        %1505 = vmatpush.msra.mxu0 %v1375
        %1506 = vmatpush.msra.mxu0 %v1373
        %1507 = vmatpush.msra.mxu0 %v1371
        %1508 = vmatmul.f32.gmra.mxu0 %v968
        %v1509 = vpop.f32.mrf.mxu0
        %v1510 = vadd.f32 0.0, %v1509
        %1511 = vmatmul.f32.gmra.mxu0 %v971
        %v1512 = vpop.f32.mrf.mxu0
        %v1513 = vadd.f32 0.0, %v1512
        %1514 = vmatmul.f32.gmra.mxu0 %v974
        %v1515 = vpop.f32.mrf.mxu0
        %v1516 = vadd.f32 0.0, %v1515
        %1517 = vmatmul.f32.gmra.mxu0 %v977
        %v1518 = vpop.f32.mrf.mxu0
        %v1519 = vadd.f32 0.0, %v1518
        %1520 = vdwg.mxu0
        %1521 = vmatpush.msra.mxu0 %v1433
        %1522 = vmatpush.msra.mxu0 %v1431
        %1523 = vmatpush.msra.mxu0 %v1429
        %1524 = vmatpush.msra.mxu0 %v1427
        %1525 = vmatpush.msra.mxu0 %v1425
        %1526 = vmatpush.msra.mxu0 %v1423
        %1527 = vmatpush.msra.mxu0 %v1421
        %1528 = vmatpush.msra.mxu0 %v1419
        %1529 = vmatpush.msra.mxu0 %v1417
        %1530 = vmatpush.msra.mxu0 %v1415
        %1531 = vmatpush.msra.mxu0 %v1413
        %1532 = vmatpush.msra.mxu0 %v1411
        %1533 = vmatpush.msra.mxu0 %v1409
        %1534 = vmatpush.msra.mxu0 %v1407
        %1535 = vmatpush.msra.mxu0 %v1405
        %1536 = vmatpush.msra.mxu0 %v1403
        %1537 = vmatmul.f32.gmra.mxu0 %v997
        %v1538 = vpop.f32.mrf.mxu0
        %v1539 = vadd.f32 %v1510, %v1538
        %1540 = vmatmul.f32.gmra.mxu0 %v1000
        %v1541 = vpop.f32.mrf.mxu0
        %v1542 = vadd.f32 %v1513, %v1541
        %1543 = vmatmul.f32.gmra.mxu0 %v1003
        %v1544 = vpop.f32.mrf.mxu0
        %v1545 = vadd.f32 %v1516, %v1544
        %1546 = vmatmul.f32.gmra.mxu0 %v1006
        %v1547 = vpop.f32.mrf.mxu0
        %v1548 = vadd.f32 %v1519, %v1547
        %1549 = vdwg.mxu0
        %v1550 = vadd.f32 %v1300, %v1481
        %v1551 = vadd.f32 %v1358, %v1539
        %v1552 = vadd.f32 %v1303, %v1484
        %v1553 = vadd.f32 %v1361, %v1542
        %v1554 = vadd.f32 %v1306, %v1487
        %v1555 = vadd.f32 %v1364, %v1545
        %v1556 = vadd.f32 %v1309, %v1490
        %v1557 = vadd.f32 %v1367, %v1548
        %v1559 = vperm.slane %v782, 0
        %v1560 = vperm.slane %v782, 1
        %v1563 = vmul.f32 %v1559, %v1550
        %v1564 = vmul.f32 %v1560, %v1551
        %v1565 = vmul.f32 %v1559, %v1552
        %v1566 = vmul.f32 %v1560, %v1553
        %v1567 = vmul.f32 %v1559, %v1554
        %v1568 = vmul.f32 %v1560, %v1555
        %v1569 = vmul.f32 %v1559, %v1556
        %v1570 = vmul.f32 %v1560, %v1557
        %s1571 = scalar_lea.vmem [#allocation18], 1
        %v1572 = vld [vmem:[%s1571] ss:$8 sm:$0x3]
        %v1574 = vperm.slane %v1572, 0
        %v1575 = vperm.slane %v1572, 1
        %v1578 = vadd.f32 %v1563, %v1574
        %v1579 = vadd.f32 %v1564, %v1575
        %v1580 = vadd.f32 %v1565, %v1574
        %v1581 = vadd.f32 %v1566, %v1575
        %v1582 = vadd.f32 %v1567, %v1574
        %v1583 = vadd.f32 %v1568, %v1575
        %v1584 = vadd.f32 %v1569, %v1574
        %v1585 = vadd.f32 %v1570, %v1575
        %s1586 = scalar_lea.vmem [#allocation18], 2
        %v1587 = vld [vmem:[%s1586] ss:$8 sm:$0x3]
        %1588 = vmatpush.msra.mxu0 0.0
        %1589 = vmatpush.msra.mxu0 0.0
        %1590 = vmatpush.msra.mxu0 0.0
        %1591 = vmatpush.msra.mxu0 0.0
        %1592 = vmatpush.msra.mxu0 0.0
        %1593 = vmatpush.msra.mxu0 0.0
        %1594 = vmatpush.msra.mxu0 0.0
        %1595 = vmatpush.msra.mxu0 0.0
        %1596 = vmatpush.msra.mxu0 0.0
        %1597 = vmatpush.msra.mxu0 0.0
        %1598 = vmatpush.msra.mxu0 0.0
        %1599 = vmatpush.msra.mxu0 0.0
        %1600 = vmatpush.msra.mxu0 %v1584
        %1601 = vmatpush.msra.mxu0 %v1582
        %1602 = vmatpush.msra.mxu0 %v1580
        %1603 = vmatpush.msra.mxu0 %v1578
        %1604 = vmatmul.f32.gmra.mxu0 %v789
        %v1605 = vpop.f32.mrf.mxu0
        %v1606 = vadd.f32 0.0, %v1605
        %1607 = vmatmul.f32.gmra.mxu0 %v792
        %v1608 = vpop.f32.mrf.mxu0
        %v1609 = vadd.f32 0.0, %v1608
        %1610 = vmatmul.f32.gmra.mxu0 %v795
        %v1611 = vpop.f32.mrf.mxu0
        %v1612 = vadd.f32 0.0, %v1611
        %1613 = vmatmul.f32.gmra.mxu0 %v798
        %v1614 = vpop.f32.mrf.mxu0
        %v1615 = vadd.f32 0.0, %v1614
        %1616 = vdwg.mxu0
        %1617 = vmatpush.msra.mxu0 0.0
        %1618 = vmatpush.msra.mxu0 0.0
        %1619 = vmatpush.msra.mxu0 0.0
        %1620 = vmatpush.msra.mxu0 0.0
        %1621 = vmatpush.msra.mxu0 0.0
        %1622 = vmatpush.msra.mxu0 0.0
        %1623 = vmatpush.msra.mxu0 0.0
        %1624 = vmatpush.msra.mxu0 0.0
        %1625 = vmatpush.msra.mxu0 0.0
        %1626 = vmatpush.msra.mxu0 0.0
        %1627 = vmatpush.msra.mxu0 0.0
        %1628 = vmatpush.msra.mxu0 0.0
        %1629 = vmatpush.msra.mxu0 %v1585
        %1630 = vmatpush.msra.mxu0 %v1583
        %1631 = vmatpush.msra.mxu0 %v1581
        %1632 = vmatpush.msra.mxu0 %v1579
        %1633 = vmatmul.f32.gmra.mxu0 %v789
        %v1634 = vpop.f32.mrf.mxu0
        %v1635 = vadd.f32 0.0, %v1634
        %1636 = vmatmul.f32.gmra.mxu0 %v792
        %v1637 = vpop.f32.mrf.mxu0
        %v1638 = vadd.f32 0.0, %v1637
        %1639 = vmatmul.f32.gmra.mxu0 %v795
        %v1640 = vpop.f32.mrf.mxu0
        %v1641 = vadd.f32 0.0, %v1640
        %1642 = vmatmul.f32.gmra.mxu0 %v798
        %v1643 = vpop.f32.mrf.mxu0
        %v1644 = vadd.f32 0.0, %v1643
        %1645 = vdwg.mxu0
        %1646 = vmatpush.msra.mxu0 0.0
        %1647 = vmatpush.msra.mxu0 0.0
        %1648 = vmatpush.msra.mxu0 0.0
        %1649 = vmatpush.msra.mxu0 0.0
        %1650 = vmatpush.msra.mxu0 0.0
        %1651 = vmatpush.msra.mxu0 0.0
        %1652 = vmatpush.msra.mxu0 0.0
        %1653 = vmatpush.msra.mxu0 0.0
        %1654 = vmatpush.msra.mxu0 0.0
        %1655 = vmatpush.msra.mxu0 0.0
        %1656 = vmatpush.msra.mxu0 0.0
        %1657 = vmatpush.msra.mxu0 0.0
        %1658 = vmatpush.msra.mxu0 %v1584
        %1659 = vmatpush.msra.mxu0 %v1582
        %1660 = vmatpush.msra.mxu0 %v1580
        %1661 = vmatpush.msra.mxu0 %v1578
        %1662 = vmatmul.f32.gmra.mxu0 %v864
        %v1663 = vpop.f32.mrf.mxu0
        %v1664 = vadd.f32 0.0, %v1663
        %1665 = vmatmul.f32.gmra.mxu0 %v867
        %v1666 = vpop.f32.mrf.mxu0
        %v1667 = vadd.f32 0.0, %v1666
        %1668 = vmatmul.f32.gmra.mxu0 %v870
        %v1669 = vpop.f32.mrf.mxu0
        %v1670 = vadd.f32 0.0, %v1669
        %1671 = vmatmul.f32.gmra.mxu0 %v873
        %v1672 = vpop.f32.mrf.mxu0
        %v1673 = vadd.f32 0.0, %v1672
        %1674 = vdwg.mxu0
        %1675 = vmatpush.msra.mxu0 0.0
        %1676 = vmatpush.msra.mxu0 0.0
        %1677 = vmatpush.msra.mxu0 0.0
        %1678 = vmatpush.msra.mxu0 0.0
        %1679 = vmatpush.msra.mxu0 0.0
        %1680 = vmatpush.msra.mxu0 0.0
        %1681 = vmatpush.msra.mxu0 0.0
        %1682 = vmatpush.msra.mxu0 0.0
        %1683 = vmatpush.msra.mxu0 0.0
        %1684 = vmatpush.msra.mxu0 0.0
        %1685 = vmatpush.msra.mxu0 0.0
        %1686 = vmatpush.msra.mxu0 0.0
        %1687 = vmatpush.msra.mxu0 %v1585
        %1688 = vmatpush.msra.mxu0 %v1583
        %1689 = vmatpush.msra.mxu0 %v1581
        %1690 = vmatpush.msra.mxu0 %v1579
        %1691 = vmatmul.f32.gmra.mxu0 %v864
        %v1692 = vpop.f32.mrf.mxu0
        %v1693 = vadd.f32 0.0, %v1692
        %1694 = vmatmul.f32.gmra.mxu0 %v867
        %v1695 = vpop.f32.mrf.mxu0
        %v1696 = vadd.f32 0.0, %v1695
        %1697 = vmatmul.f32.gmra.mxu0 %v870
        %v1698 = vpop.f32.mrf.mxu0
        %v1699 = vadd.f32 0.0, %v1698
        %1700 = vmatmul.f32.gmra.mxu0 %v873
        %v1701 = vpop.f32.mrf.mxu0
        %v1702 = vadd.f32 0.0, %v1701
        %1703 = vdwg.mxu0
        %1704 = vmatpush.msra.mxu0 0.0
        %1705 = vmatpush.msra.mxu0 0.0
        %1706 = vmatpush.msra.mxu0 0.0
        %1707 = vmatpush.msra.mxu0 0.0
        %1708 = vmatpush.msra.mxu0 0.0
        %1709 = vmatpush.msra.mxu0 0.0
        %1710 = vmatpush.msra.mxu0 0.0
        %1711 = vmatpush.msra.mxu0 0.0
        %1712 = vmatpush.msra.mxu0 0.0
        %1713 = vmatpush.msra.mxu0 0.0
        %1714 = vmatpush.msra.mxu0 0.0
        %1715 = vmatpush.msra.mxu0 0.0
        %1716 = vmatpush.msra.mxu0 %v1584
        %1717 = vmatpush.msra.mxu0 %v1582
        %1718 = vmatpush.msra.mxu0 %v1580
        %1719 = vmatpush.msra.mxu0 %v1578
        %1720 = vmatmul.f32.gmra.mxu0 %v939
        %v1721 = vpop.f32.mrf.mxu0
        %v1722 = vadd.f32 0.0, %v1721
        %1723 = vmatmul.f32.gmra.mxu0 %v942
        %v1724 = vpop.f32.mrf.mxu0
        %v1725 = vadd.f32 0.0, %v1724
        %1726 = vmatmul.f32.gmra.mxu0 %v945
        %v1727 = vpop.f32.mrf.mxu0
        %v1728 = vadd.f32 0.0, %v1727
        %1729 = vmatmul.f32.gmra.mxu0 %v948
        %v1730 = vpop.f32.mrf.mxu0
        %v1731 = vadd.f32 0.0, %v1730
        %1732 = vdwg.mxu0
        %1733 = vmatpush.msra.mxu0 0.0
        %1734 = vmatpush.msra.mxu0 0.0
        %1735 = vmatpush.msra.mxu0 0.0
        %1736 = vmatpush.msra.mxu0 0.0
        %1737 = vmatpush.msra.mxu0 0.0
        %1738 = vmatpush.msra.mxu0 0.0
        %1739 = vmatpush.msra.mxu0 0.0
        %1740 = vmatpush.msra.mxu0 0.0
        %1741 = vmatpush.msra.mxu0 0.0
        %1742 = vmatpush.msra.mxu0 0.0
        %1743 = vmatpush.msra.mxu0 0.0
        %1744 = vmatpush.msra.mxu0 0.0
        %1745 = vmatpush.msra.mxu0 %v1585
        %1746 = vmatpush.msra.mxu0 %v1583
        %1747 = vmatpush.msra.mxu0 %v1581
        %1748 = vmatpush.msra.mxu0 %v1579
        %1749 = vmatmul.f32.gmra.mxu0 %v939
        %v1750 = vpop.f32.mrf.mxu0
        %v1751 = vadd.f32 0.0, %v1750
        %1752 = vmatmul.f32.gmra.mxu0 %v942
        %v1753 = vpop.f32.mrf.mxu0
        %v1754 = vadd.f32 0.0, %v1753
        %1755 = vmatmul.f32.gmra.mxu0 %v945
        %v1756 = vpop.f32.mrf.mxu0
        %v1757 = vadd.f32 0.0, %v1756
        %1758 = vmatmul.f32.gmra.mxu0 %v948
        %v1759 = vpop.f32.mrf.mxu0
        %v1760 = vadd.f32 0.0, %v1759
        %1761 = vdwg.mxu0
        %s1762 = scalar_lea.vmem [#allocation7], 1536
        %v1763 = vld [vmem:[%s1762] sm:$0xff]
        %v1764 = vld [vmem:[%s1762 + $0x8] sm:$0xff]
        %v1765 = vld [vmem:[%s1762 + $0x10] sm:$0xff]
        %v1766 = vld [vmem:[%s1762 + $0x18] sm:$0xff]
        %v1767 = vld [vmem:[%s1762 + $0x20] sm:$0xff]
        %v1768 = vld [vmem:[%s1762 + $0x28] sm:$0xff]
        %v1769 = vld [vmem:[%s1762 + $0x30] sm:$0xff]
        %v1770 = vld [vmem:[%s1762 + $0x38] sm:$0xff]
        %v1771 = vld [vmem:[%s1762 + $0x40] sm:$0xff]
        %v1772 = vld [vmem:[%s1762 + $0x48] sm:$0xff]
        %v1773 = vld [vmem:[%s1762 + $0x50] sm:$0xff]
        %v1774 = vld [vmem:[%s1762 + $0x58] sm:$0xff]
        %v1775 = vld [vmem:[%s1762 + $0x60] sm:$0xff]
        %v1776 = vld [vmem:[%s1762 + $0x68] sm:$0xff]
        %v1777 = vld [vmem:[%s1762 + $0x70] sm:$0xff]
        %v1778 = vld [vmem:[%s1762 + $0x78] sm:$0xff]
        %v1779 = vld [vmem:[%s1762 + $0x80] sm:$0xff]
        %v1780 = vld [vmem:[%s1762 + $0x88] sm:$0xff]
        %v1781 = vld [vmem:[%s1762 + $0x90] sm:$0xff]
        %v1782 = vld [vmem:[%s1762 + $0x98] sm:$0xff]
        %v1783 = vld [vmem:[%s1762 + $0xa0] sm:$0xff]
        %v1784 = vld [vmem:[%s1762 + $0xa8] sm:$0xff]
        %v1785 = vld [vmem:[%s1762 + $0xb0] sm:$0xff]
        %v1786 = vld [vmem:[%s1762 + $0xb8] sm:$0xff]
        %v1787 = vld [vmem:[%s1762 + $0xc0] sm:$0xff]
        %v1788 = vld [vmem:[%s1762 + $0xc8] sm:$0xff]
        %v1789 = vld [vmem:[%s1762 + $0xd0] sm:$0xff]
        %v1790 = vld [vmem:[%s1762 + $0xd8] sm:$0xff]
        %v1791 = vld [vmem:[%s1762 + $0xe0] sm:$0xff]
        %v1792 = vld [vmem:[%s1762 + $0xe8] sm:$0xff]
        %v1793 = vld [vmem:[%s1762 + $0xf0] sm:$0xff]
        %v1794 = vld [vmem:[%s1762 + $0xf8] sm:$0xff]
        %v1795 = vld [vmem:[%s1762 + $0x100] sm:$0xff]
        %v1796 = vld [vmem:[%s1762 + $0x108] sm:$0xff]
        %v1797 = vld [vmem:[%s1762 + $0x110] sm:$0xff]
        %v1798 = vld [vmem:[%s1762 + $0x118] sm:$0xff]
        %v1799 = vld [vmem:[%s1762 + $0x120] sm:$0xff]
        %v1800 = vld [vmem:[%s1762 + $0x128] sm:$0xff]
        %v1801 = vld [vmem:[%s1762 + $0x130] sm:$0xff]
        %v1802 = vld [vmem:[%s1762 + $0x138] sm:$0xff]
        %v1803 = vld [vmem:[%s1762 + $0x140] sm:$0xff]
        %v1804 = vld [vmem:[%s1762 + $0x148] sm:$0xff]
        %v1805 = vld [vmem:[%s1762 + $0x150] sm:$0xff]
        %v1806 = vld [vmem:[%s1762 + $0x158] sm:$0xff]
        %v1807 = vld [vmem:[%s1762 + $0x160] sm:$0xff]
        %v1808 = vld [vmem:[%s1762 + $0x168] sm:$0xff]
        %v1809 = vld [vmem:[%s1762 + $0x170] sm:$0xff]
        %v1810 = vld [vmem:[%s1762 + $0x178] sm:$0xff]
        %v1811 = vld [vmem:[%s1762 + $0x180] sm:$0xff]
        %v1812 = vld [vmem:[%s1762 + $0x188] sm:$0xff]
        %v1813 = vld [vmem:[%s1762 + $0x190] sm:$0xff]
        %v1814 = vld [vmem:[%s1762 + $0x198] sm:$0xff]
        %v1815 = vld [vmem:[%s1762 + $0x1a0] sm:$0xff]
        %v1816 = vld [vmem:[%s1762 + $0x1a8] sm:$0xff]
        %v1817 = vld [vmem:[%s1762 + $0x1b0] sm:$0xff]
        %v1818 = vld [vmem:[%s1762 + $0x1b8] sm:$0xff]
        %v1819 = vld [vmem:[%s1762 + $0x1c0] sm:$0xff]
        %v1820 = vld [vmem:[%s1762 + $0x1c8] sm:$0xff]
        %v1821 = vld [vmem:[%s1762 + $0x1d0] sm:$0xff]
        %v1822 = vld [vmem:[%s1762 + $0x1d8] sm:$0xff]
        %v1823 = vld [vmem:[%s1762 + $0x1e0] sm:$0xff]
        %v1824 = vld [vmem:[%s1762 + $0x1e8] sm:$0xff]
        %v1825 = vld [vmem:[%s1762 + $0x1f0] sm:$0xff]
        %v1826 = vld [vmem:[%s1762 + $0x1f8] sm:$0xff]
        %s1827 = scalar_lea.vmem [#allocation7], 2048
        %v1828 = vld [vmem:[%s1827] sm:$0xff]
        %v1829 = vld [vmem:[%s1827 + $0x8] sm:$0xff]
        %v1830 = vld [vmem:[%s1827 + $0x10] sm:$0xff]
        %v1831 = vld [vmem:[%s1827 + $0x18] sm:$0xff]
        %v1832 = vld [vmem:[%s1827 + $0x20] sm:$0xff]
        %v1833 = vld [vmem:[%s1827 + $0x28] sm:$0xff]
        %v1834 = vld [vmem:[%s1827 + $0x30] sm:$0xff]
        %v1835 = vld [vmem:[%s1827 + $0x38] sm:$0xff]
        %v1836 = vld [vmem:[%s1827 + $0x40] sm:$0xff]
        %v1837 = vld [vmem:[%s1827 + $0x48] sm:$0xff]
        %v1838 = vld [vmem:[%s1827 + $0x50] sm:$0xff]
        %v1839 = vld [vmem:[%s1827 + $0x58] sm:$0xff]
        %v1840 = vld [vmem:[%s1827 + $0x60] sm:$0xff]
        %v1841 = vld [vmem:[%s1827 + $0x68] sm:$0xff]
        %v1842 = vld [vmem:[%s1827 + $0x70] sm:$0xff]
        %v1843 = vld [vmem:[%s1827 + $0x78] sm:$0xff]
        %v1844 = vld [vmem:[%s1827 + $0x80] sm:$0xff]
        %v1845 = vld [vmem:[%s1827 + $0x88] sm:$0xff]
        %v1846 = vld [vmem:[%s1827 + $0x90] sm:$0xff]
        %v1847 = vld [vmem:[%s1827 + $0x98] sm:$0xff]
        %v1848 = vld [vmem:[%s1827 + $0xa0] sm:$0xff]
        %v1849 = vld [vmem:[%s1827 + $0xa8] sm:$0xff]
        %v1850 = vld [vmem:[%s1827 + $0xb0] sm:$0xff]
        %v1851 = vld [vmem:[%s1827 + $0xb8] sm:$0xff]
        %v1852 = vld [vmem:[%s1827 + $0xc0] sm:$0xff]
        %v1853 = vld [vmem:[%s1827 + $0xc8] sm:$0xff]
        %v1854 = vld [vmem:[%s1827 + $0xd0] sm:$0xff]
        %v1855 = vld [vmem:[%s1827 + $0xd8] sm:$0xff]
        %v1856 = vld [vmem:[%s1827 + $0xe0] sm:$0xff]
        %v1857 = vld [vmem:[%s1827 + $0xe8] sm:$0xff]
        %v1858 = vld [vmem:[%s1827 + $0xf0] sm:$0xff]
        %v1859 = vld [vmem:[%s1827 + $0xf8] sm:$0xff]
        %v1860 = vld [vmem:[%s1827 + $0x100] sm:$0xff]
        %v1861 = vld [vmem:[%s1827 + $0x108] sm:$0xff]
        %v1862 = vld [vmem:[%s1827 + $0x110] sm:$0xff]
        %v1863 = vld [vmem:[%s1827 + $0x118] sm:$0xff]
        %v1864 = vld [vmem:[%s1827 + $0x120] sm:$0xff]
        %v1865 = vld [vmem:[%s1827 + $0x128] sm:$0xff]
        %v1866 = vld [vmem:[%s1827 + $0x130] sm:$0xff]
        %v1867 = vld [vmem:[%s1827 + $0x138] sm:$0xff]
        %v1868 = vld [vmem:[%s1827 + $0x140] sm:$0xff]
        %v1869 = vld [vmem:[%s1827 + $0x148] sm:$0xff]
        %v1870 = vld [vmem:[%s1827 + $0x150] sm:$0xff]
        %v1871 = vld [vmem:[%s1827 + $0x158] sm:$0xff]
        %v1872 = vld [vmem:[%s1827 + $0x160] sm:$0xff]
        %v1873 = vld [vmem:[%s1827 + $0x168] sm:$0xff]
        %v1874 = vld [vmem:[%s1827 + $0x170] sm:$0xff]
        %v1875 = vld [vmem:[%s1827 + $0x178] sm:$0xff]
        %v1876 = vld [vmem:[%s1827 + $0x180] sm:$0xff]
        %v1877 = vld [vmem:[%s1827 + $0x188] sm:$0xff]
        %v1878 = vld [vmem:[%s1827 + $0x190] sm:$0xff]
        %v1879 = vld [vmem:[%s1827 + $0x198] sm:$0xff]
        %v1880 = vld [vmem:[%s1827 + $0x1a0] sm:$0xff]
        %v1881 = vld [vmem:[%s1827 + $0x1a8] sm:$0xff]
        %v1882 = vld [vmem:[%s1827 + $0x1b0] sm:$0xff]
        %v1883 = vld [vmem:[%s1827 + $0x1b8] sm:$0xff]
        %v1884 = vld [vmem:[%s1827 + $0x1c0] sm:$0xff]
        %v1885 = vld [vmem:[%s1827 + $0x1c8] sm:$0xff]
        %v1886 = vld [vmem:[%s1827 + $0x1d0] sm:$0xff]
        %v1887 = vld [vmem:[%s1827 + $0x1d8] sm:$0xff]
        %v1888 = vld [vmem:[%s1827 + $0x1e0] sm:$0xff]
        %v1889 = vld [vmem:[%s1827 + $0x1e8] sm:$0xff]
        %v1890 = vld [vmem:[%s1827 + $0x1f0] sm:$0xff]
        %v1891 = vld [vmem:[%s1827 + $0x1f8] sm:$0xff]
        %1892 = vmatpush.msra.mxu0 %v1858
        %1893 = vmatpush.msra.mxu0 %v1856
        %1894 = vmatpush.msra.mxu0 %v1854
        %1895 = vmatpush.msra.mxu0 %v1852
        %1896 = vmatpush.msra.mxu0 %v1850
        %1897 = vmatpush.msra.mxu0 %v1848
        %1898 = vmatpush.msra.mxu0 %v1846
        %1899 = vmatpush.msra.mxu0 %v1844
        %1900 = vmatpush.msra.mxu0 %v1842
        %1901 = vmatpush.msra.mxu0 %v1840
        %1902 = vmatpush.msra.mxu0 %v1838
        %1903 = vmatpush.msra.mxu0 %v1836
        %1904 = vmatpush.msra.mxu0 %v1834
        %1905 = vmatpush.msra.mxu0 %v1832
        %1906 = vmatpush.msra.mxu0 %v1830
        %1907 = vmatpush.msra.mxu0 %v1828
        %1908 = vmatmul.f32.gmra.mxu0 %v1664
        %v1909 = vpop.f32.mrf.mxu0
        %v1910 = vadd.f32 0.0, %v1909
        %1911 = vmatmul.f32.gmra.mxu0 %v1667
        %v1912 = vpop.f32.mrf.mxu0
        %v1913 = vadd.f32 0.0, %v1912
        %1914 = vmatmul.f32.gmra.mxu0 %v1670
        %v1915 = vpop.f32.mrf.mxu0
        %v1916 = vadd.f32 0.0, %v1915
        %1917 = vmatmul.f32.gmra.mxu0 %v1673
        %v1918 = vpop.f32.mrf.mxu0
        %v1919 = vadd.f32 0.0, %v1918
        %1920 = vdwg.mxu0
        %1921 = vmatpush.msra.mxu0 %v1890
        %1922 = vmatpush.msra.mxu0 %v1888
        %1923 = vmatpush.msra.mxu0 %v1886
        %1924 = vmatpush.msra.mxu0 %v1884
        %1925 = vmatpush.msra.mxu0 %v1882
        %1926 = vmatpush.msra.mxu0 %v1880
        %1927 = vmatpush.msra.mxu0 %v1878
        %1928 = vmatpush.msra.mxu0 %v1876
        %1929 = vmatpush.msra.mxu0 %v1874
        %1930 = vmatpush.msra.mxu0 %v1872
        %1931 = vmatpush.msra.mxu0 %v1870
        %1932 = vmatpush.msra.mxu0 %v1868
        %1933 = vmatpush.msra.mxu0 %v1866
        %1934 = vmatpush.msra.mxu0 %v1864
        %1935 = vmatpush.msra.mxu0 %v1862
        %1936 = vmatpush.msra.mxu0 %v1860
        %1937 = vmatmul.f32.gmra.mxu0 %v1693
        %v1938 = vpop.f32.mrf.mxu0
        %v1939 = vadd.f32 %v1910, %v1938
        %1940 = vmatmul.f32.gmra.mxu0 %v1696
        %v1941 = vpop.f32.mrf.mxu0
        %v1942 = vadd.f32 %v1913, %v1941
        %1943 = vmatmul.f32.gmra.mxu0 %v1699
        %v1944 = vpop.f32.mrf.mxu0
        %v1945 = vadd.f32 %v1916, %v1944
        %1946 = vmatmul.f32.gmra.mxu0 %v1702
        %v1947 = vpop.f32.mrf.mxu0
        %v1948 = vadd.f32 %v1919, %v1947
        %1949 = vdwg.mxu0
        %1950 = vmatpush.msra.mxu0 %v1859
        %1951 = vmatpush.msra.mxu0 %v1857
        %1952 = vmatpush.msra.mxu0 %v1855
        %1953 = vmatpush.msra.mxu0 %v1853
        %1954 = vmatpush.msra.mxu0 %v1851
        %1955 = vmatpush.msra.mxu0 %v1849
        %1956 = vmatpush.msra.mxu0 %v1847
        %1957 = vmatpush.msra.mxu0 %v1845
        %1958 = vmatpush.msra.mxu0 %v1843
        %1959 = vmatpush.msra.mxu0 %v1841
        %1960 = vmatpush.msra.mxu0 %v1839
        %1961 = vmatpush.msra.mxu0 %v1837
        %1962 = vmatpush.msra.mxu0 %v1835
        %1963 = vmatpush.msra.mxu0 %v1833
        %1964 = vmatpush.msra.mxu0 %v1831
        %1965 = vmatpush.msra.mxu0 %v1829
        %1966 = vmatmul.f32.gmra.mxu0 %v1664
        %v1967 = vpop.f32.mrf.mxu0
        %v1968 = vadd.f32 0.0, %v1967
        %1969 = vmatmul.f32.gmra.mxu0 %v1667
        %v1970 = vpop.f32.mrf.mxu0
        %v1971 = vadd.f32 0.0, %v1970
        %1972 = vmatmul.f32.gmra.mxu0 %v1670
        %v1973 = vpop.f32.mrf.mxu0
        %v1974 = vadd.f32 0.0, %v1973
        %1975 = vmatmul.f32.gmra.mxu0 %v1673
        %v1976 = vpop.f32.mrf.mxu0
        %v1977 = vadd.f32 0.0, %v1976
        %1978 = vdwg.mxu0
        %1979 = vmatpush.msra.mxu0 %v1891
        %1980 = vmatpush.msra.mxu0 %v1889
        %1981 = vmatpush.msra.mxu0 %v1887
        %1982 = vmatpush.msra.mxu0 %v1885
        %1983 = vmatpush.msra.mxu0 %v1883
        %1984 = vmatpush.msra.mxu0 %v1881
        %1985 = vmatpush.msra.mxu0 %v1879
        %1986 = vmatpush.msra.mxu0 %v1877
        %1987 = vmatpush.msra.mxu0 %v1875
        %1988 = vmatpush.msra.mxu0 %v1873
        %1989 = vmatpush.msra.mxu0 %v1871
        %1990 = vmatpush.msra.mxu0 %v1869
        %1991 = vmatpush.msra.mxu0 %v1867
        %1992 = vmatpush.msra.mxu0 %v1865
        %1993 = vmatpush.msra.mxu0 %v1863
        %1994 = vmatpush.msra.mxu0 %v1861
        %1995 = vmatmul.f32.gmra.mxu0 %v1693
        %v1996 = vpop.f32.mrf.mxu0
        %v1997 = vadd.f32 %v1968, %v1996
        %1998 = vmatmul.f32.gmra.mxu0 %v1696
        %v1999 = vpop.f32.mrf.mxu0
        %v2000 = vadd.f32 %v1971, %v1999
        %2001 = vmatmul.f32.gmra.mxu0 %v1699
        %v2002 = vpop.f32.mrf.mxu0
        %v2003 = vadd.f32 %v1974, %v2002
        %2004 = vmatmul.f32.gmra.mxu0 %v1702
        %v2005 = vpop.f32.mrf.mxu0
        %v2006 = vadd.f32 %v1977, %v2005
        %2007 = vdwg.mxu0
        %2008 = vmatpush.msra.mxu0 %v1793
        %2009 = vmatpush.msra.mxu0 %v1791
        %2010 = vmatpush.msra.mxu0 %v1789
        %2011 = vmatpush.msra.mxu0 %v1787
        %2012 = vmatpush.msra.mxu0 %v1785
        %2013 = vmatpush.msra.mxu0 %v1783
        %2014 = vmatpush.msra.mxu0 %v1781
        %2015 = vmatpush.msra.mxu0 %v1779
        %2016 = vmatpush.msra.mxu0 %v1777
        %2017 = vmatpush.msra.mxu0 %v1775
        %2018 = vmatpush.msra.mxu0 %v1773
        %2019 = vmatpush.msra.mxu0 %v1771
        %2020 = vmatpush.msra.mxu0 %v1769
        %2021 = vmatpush.msra.mxu0 %v1767
        %2022 = vmatpush.msra.mxu0 %v1765
        %2023 = vmatpush.msra.mxu0 %v1763
        %2024 = vmatmul.f32.gmra.mxu0 %v1606
        %v2025 = vpop.f32.mrf.mxu0
        %v2026 = vadd.f32 %v1939, %v2025
        %2027 = vmatmul.f32.gmra.mxu0 %v1609
        %v2028 = vpop.f32.mrf.mxu0
        %v2029 = vadd.f32 %v1942, %v2028
        %2030 = vmatmul.f32.gmra.mxu0 %v1612
        %v2031 = vpop.f32.mrf.mxu0
        %v2032 = vadd.f32 %v1945, %v2031
        %2033 = vmatmul.f32.gmra.mxu0 %v1615
        %v2034 = vpop.f32.mrf.mxu0
        %v2035 = vadd.f32 %v1948, %v2034
        %2036 = vdwg.mxu0
        %2037 = vmatpush.msra.mxu0 %v1825
        %2038 = vmatpush.msra.mxu0 %v1823
        %2039 = vmatpush.msra.mxu0 %v1821
        %2040 = vmatpush.msra.mxu0 %v1819
        %2041 = vmatpush.msra.mxu0 %v1817
        %2042 = vmatpush.msra.mxu0 %v1815
        %2043 = vmatpush.msra.mxu0 %v1813
        %2044 = vmatpush.msra.mxu0 %v1811
        %2045 = vmatpush.msra.mxu0 %v1809
        %2046 = vmatpush.msra.mxu0 %v1807
        %2047 = vmatpush.msra.mxu0 %v1805
        %2048 = vmatpush.msra.mxu0 %v1803
        %2049 = vmatpush.msra.mxu0 %v1801
        %2050 = vmatpush.msra.mxu0 %v1799
        %2051 = vmatpush.msra.mxu0 %v1797
        %2052 = vmatpush.msra.mxu0 %v1795
        %2053 = vmatmul.f32.gmra.mxu0 %v1635
        %v2054 = vpop.f32.mrf.mxu0
        %v2055 = vadd.f32 %v2026, %v2054
        %2056 = vmatmul.f32.gmra.mxu0 %v1638
        %v2057 = vpop.f32.mrf.mxu0
        %v2058 = vadd.f32 %v2029, %v2057
        %2059 = vmatmul.f32.gmra.mxu0 %v1641
        %v2060 = vpop.f32.mrf.mxu0
        %v2061 = vadd.f32 %v2032, %v2060
        %2062 = vmatmul.f32.gmra.mxu0 %v1644
        %v2063 = vpop.f32.mrf.mxu0
        %v2064 = vadd.f32 %v2035, %v2063
        %2065 = vdwg.mxu0
        %2066 = vmatpush.msra.mxu0 %v1794
        %2067 = vmatpush.msra.mxu0 %v1792
        %2068 = vmatpush.msra.mxu0 %v1790
        %2069 = vmatpush.msra.mxu0 %v1788
        %2070 = vmatpush.msra.mxu0 %v1786
        %2071 = vmatpush.msra.mxu0 %v1784
        %2072 = vmatpush.msra.mxu0 %v1782
        %2073 = vmatpush.msra.mxu0 %v1780
        %2074 = vmatpush.msra.mxu0 %v1778
        %2075 = vmatpush.msra.mxu0 %v1776
        %2076 = vmatpush.msra.mxu0 %v1774
        %2077 = vmatpush.msra.mxu0 %v1772
        %2078 = vmatpush.msra.mxu0 %v1770
        %2079 = vmatpush.msra.mxu0 %v1768
        %2080 = vmatpush.msra.mxu0 %v1766
        %2081 = vmatpush.msra.mxu0 %v1764
        %2082 = vmatmul.f32.gmra.mxu0 %v1606
        %v2083 = vpop.f32.mrf.mxu0
        %v2084 = vadd.f32 %v1997, %v2083
        %2085 = vmatmul.f32.gmra.mxu0 %v1609
        %v2086 = vpop.f32.mrf.mxu0
        %v2087 = vadd.f32 %v2000, %v2086
        %2088 = vmatmul.f32.gmra.mxu0 %v1612
        %v2089 = vpop.f32.mrf.mxu0
        %v2090 = vadd.f32 %v2003, %v2089
        %2091 = vmatmul.f32.gmra.mxu0 %v1615
        %v2092 = vpop.f32.mrf.mxu0
        %v2093 = vadd.f32 %v2006, %v2092
        %2094 = vdwg.mxu0
        %2095 = vmatpush.msra.mxu0 %v1826
        %2096 = vmatpush.msra.mxu0 %v1824
        %2097 = vmatpush.msra.mxu0 %v1822
        %2098 = vmatpush.msra.mxu0 %v1820
        %2099 = vmatpush.msra.mxu0 %v1818
        %2100 = vmatpush.msra.mxu0 %v1816
        %2101 = vmatpush.msra.mxu0 %v1814
        %2102 = vmatpush.msra.mxu0 %v1812
        %2103 = vmatpush.msra.mxu0 %v1810
        %2104 = vmatpush.msra.mxu0 %v1808
        %2105 = vmatpush.msra.mxu0 %v1806
        %2106 = vmatpush.msra.mxu0 %v1804
        %2107 = vmatpush.msra.mxu0 %v1802
        %2108 = vmatpush.msra.mxu0 %v1800
        %2109 = vmatpush.msra.mxu0 %v1798
        %2110 = vmatpush.msra.mxu0 %v1796
        %2111 = vmatmul.f32.gmra.mxu0 %v1635
        %v2112 = vpop.f32.mrf.mxu0
        %v2113 = vadd.f32 %v2084, %v2112
        %2114 = vmatmul.f32.gmra.mxu0 %v1638
        %v2115 = vpop.f32.mrf.mxu0
        %v2116 = vadd.f32 %v2087, %v2115
        %2117 = vmatmul.f32.gmra.mxu0 %v1641
        %v2118 = vpop.f32.mrf.mxu0
        %v2119 = vadd.f32 %v2090, %v2118
        %2120 = vmatmul.f32.gmra.mxu0 %v1644
        %v2121 = vpop.f32.mrf.mxu0
        %v2122 = vadd.f32 %v2093, %v2121
        %2123 = vdwg.mxu0
        %s2124 = scalar_lea.vmem [#allocation7], 2560
        %v2125 = vld [vmem:[%s2124] sm:$0xff]
        %v2126 = vld [vmem:[%s2124 + $0x8] sm:$0xff]
        %v2127 = vld [vmem:[%s2124 + $0x10] sm:$0xff]
        %v2128 = vld [vmem:[%s2124 + $0x18] sm:$0xff]
        %v2129 = vld [vmem:[%s2124 + $0x20] sm:$0xff]
        %v2130 = vld [vmem:[%s2124 + $0x28] sm:$0xff]
        %v2131 = vld [vmem:[%s2124 + $0x30] sm:$0xff]
        %v2132 = vld [vmem:[%s2124 + $0x38] sm:$0xff]
        %v2133 = vld [vmem:[%s2124 + $0x40] sm:$0xff]
        %v2134 = vld [vmem:[%s2124 + $0x48] sm:$0xff]
        %v2135 = vld [vmem:[%s2124 + $0x50] sm:$0xff]
        %v2136 = vld [vmem:[%s2124 + $0x58] sm:$0xff]
        %v2137 = vld [vmem:[%s2124 + $0x60] sm:$0xff]
        %v2138 = vld [vmem:[%s2124 + $0x68] sm:$0xff]
        %v2139 = vld [vmem:[%s2124 + $0x70] sm:$0xff]
        %v2140 = vld [vmem:[%s2124 + $0x78] sm:$0xff]
        %v2141 = vld [vmem:[%s2124 + $0x80] sm:$0xff]
        %v2142 = vld [vmem:[%s2124 + $0x88] sm:$0xff]
        %v2143 = vld [vmem:[%s2124 + $0x90] sm:$0xff]
        %v2144 = vld [vmem:[%s2124 + $0x98] sm:$0xff]
        %v2145 = vld [vmem:[%s2124 + $0xa0] sm:$0xff]
        %v2146 = vld [vmem:[%s2124 + $0xa8] sm:$0xff]
        %v2147 = vld [vmem:[%s2124 + $0xb0] sm:$0xff]
        %v2148 = vld [vmem:[%s2124 + $0xb8] sm:$0xff]
        %v2149 = vld [vmem:[%s2124 + $0xc0] sm:$0xff]
        %v2150 = vld [vmem:[%s2124 + $0xc8] sm:$0xff]
        %v2151 = vld [vmem:[%s2124 + $0xd0] sm:$0xff]
        %v2152 = vld [vmem:[%s2124 + $0xd8] sm:$0xff]
        %v2153 = vld [vmem:[%s2124 + $0xe0] sm:$0xff]
        %v2154 = vld [vmem:[%s2124 + $0xe8] sm:$0xff]
        %v2155 = vld [vmem:[%s2124 + $0xf0] sm:$0xff]
        %v2156 = vld [vmem:[%s2124 + $0xf8] sm:$0xff]
        %v2157 = vld [vmem:[%s2124 + $0x100] sm:$0xff]
        %v2158 = vld [vmem:[%s2124 + $0x108] sm:$0xff]
        %v2159 = vld [vmem:[%s2124 + $0x110] sm:$0xff]
        %v2160 = vld [vmem:[%s2124 + $0x118] sm:$0xff]
        %v2161 = vld [vmem:[%s2124 + $0x120] sm:$0xff]
        %v2162 = vld [vmem:[%s2124 + $0x128] sm:$0xff]
        %v2163 = vld [vmem:[%s2124 + $0x130] sm:$0xff]
        %v2164 = vld [vmem:[%s2124 + $0x138] sm:$0xff]
        %v2165 = vld [vmem:[%s2124 + $0x140] sm:$0xff]
        %v2166 = vld [vmem:[%s2124 + $0x148] sm:$0xff]
        %v2167 = vld [vmem:[%s2124 + $0x150] sm:$0xff]
        %v2168 = vld [vmem:[%s2124 + $0x158] sm:$0xff]
        %v2169 = vld [vmem:[%s2124 + $0x160] sm:$0xff]
        %v2170 = vld [vmem:[%s2124 + $0x168] sm:$0xff]
        %v2171 = vld [vmem:[%s2124 + $0x170] sm:$0xff]
        %v2172 = vld [vmem:[%s2124 + $0x178] sm:$0xff]
        %v2173 = vld [vmem:[%s2124 + $0x180] sm:$0xff]
        %v2174 = vld [vmem:[%s2124 + $0x188] sm:$0xff]
        %v2175 = vld [vmem:[%s2124 + $0x190] sm:$0xff]
        %v2176 = vld [vmem:[%s2124 + $0x198] sm:$0xff]
        %v2177 = vld [vmem:[%s2124 + $0x1a0] sm:$0xff]
        %v2178 = vld [vmem:[%s2124 + $0x1a8] sm:$0xff]
        %v2179 = vld [vmem:[%s2124 + $0x1b0] sm:$0xff]
        %v2180 = vld [vmem:[%s2124 + $0x1b8] sm:$0xff]
        %v2181 = vld [vmem:[%s2124 + $0x1c0] sm:$0xff]
        %v2182 = vld [vmem:[%s2124 + $0x1c8] sm:$0xff]
        %v2183 = vld [vmem:[%s2124 + $0x1d0] sm:$0xff]
        %v2184 = vld [vmem:[%s2124 + $0x1d8] sm:$0xff]
        %v2185 = vld [vmem:[%s2124 + $0x1e0] sm:$0xff]
        %v2186 = vld [vmem:[%s2124 + $0x1e8] sm:$0xff]
        %v2187 = vld [vmem:[%s2124 + $0x1f0] sm:$0xff]
        %v2188 = vld [vmem:[%s2124 + $0x1f8] sm:$0xff]
        %2189 = vmatpush.msra.mxu0 %v2155
        %2190 = vmatpush.msra.mxu0 %v2153
        %2191 = vmatpush.msra.mxu0 %v2151
        %2192 = vmatpush.msra.mxu0 %v2149
        %2193 = vmatpush.msra.mxu0 %v2147
        %2194 = vmatpush.msra.mxu0 %v2145
        %2195 = vmatpush.msra.mxu0 %v2143
        %2196 = vmatpush.msra.mxu0 %v2141
        %2197 = vmatpush.msra.mxu0 %v2139
        %2198 = vmatpush.msra.mxu0 %v2137
        %2199 = vmatpush.msra.mxu0 %v2135
        %2200 = vmatpush.msra.mxu0 %v2133
        %2201 = vmatpush.msra.mxu0 %v2131
        %2202 = vmatpush.msra.mxu0 %v2129
        %2203 = vmatpush.msra.mxu0 %v2127
        %2204 = vmatpush.msra.mxu0 %v2125
        %2205 = vmatmul.f32.gmra.mxu0 %v1722
        %v2206 = vpop.f32.mrf.mxu0
        %v2207 = vadd.f32 0.0, %v2206
        %2208 = vmatmul.f32.gmra.mxu0 %v1725
        %v2209 = vpop.f32.mrf.mxu0
        %v2210 = vadd.f32 0.0, %v2209
        %2211 = vmatmul.f32.gmra.mxu0 %v1728
        %v2212 = vpop.f32.mrf.mxu0
        %v2213 = vadd.f32 0.0, %v2212
        %2214 = vmatmul.f32.gmra.mxu0 %v1731
        %v2215 = vpop.f32.mrf.mxu0
        %v2216 = vadd.f32 0.0, %v2215
        %2217 = vdwg.mxu0
        %2218 = vmatpush.msra.mxu0 %v2187
        %2219 = vmatpush.msra.mxu0 %v2185
        %2220 = vmatpush.msra.mxu0 %v2183
        %2221 = vmatpush.msra.mxu0 %v2181
        %2222 = vmatpush.msra.mxu0 %v2179
        %2223 = vmatpush.msra.mxu0 %v2177
        %2224 = vmatpush.msra.mxu0 %v2175
        %2225 = vmatpush.msra.mxu0 %v2173
        %2226 = vmatpush.msra.mxu0 %v2171
        %2227 = vmatpush.msra.mxu0 %v2169
        %2228 = vmatpush.msra.mxu0 %v2167
        %2229 = vmatpush.msra.mxu0 %v2165
        %2230 = vmatpush.msra.mxu0 %v2163
        %2231 = vmatpush.msra.mxu0 %v2161
        %2232 = vmatpush.msra.mxu0 %v2159
        %2233 = vmatpush.msra.mxu0 %v2157
        %2234 = vmatmul.f32.gmra.mxu0 %v1751
        %v2235 = vpop.f32.mrf.mxu0
        %v2236 = vadd.f32 %v2207, %v2235
        %2237 = vmatmul.f32.gmra.mxu0 %v1754
        %v2238 = vpop.f32.mrf.mxu0
        %v2239 = vadd.f32 %v2210, %v2238
        %2240 = vmatmul.f32.gmra.mxu0 %v1757
        %v2241 = vpop.f32.mrf.mxu0
        %v2242 = vadd.f32 %v2213, %v2241
        %2243 = vmatmul.f32.gmra.mxu0 %v1760
        %v2244 = vpop.f32.mrf.mxu0
        %v2245 = vadd.f32 %v2216, %v2244
        %2246 = vdwg.mxu0
        %2247 = vmatpush.msra.mxu0 %v2156
        %2248 = vmatpush.msra.mxu0 %v2154
        %2249 = vmatpush.msra.mxu0 %v2152
        %2250 = vmatpush.msra.mxu0 %v2150
        %2251 = vmatpush.msra.mxu0 %v2148
        %2252 = vmatpush.msra.mxu0 %v2146
        %2253 = vmatpush.msra.mxu0 %v2144
        %2254 = vmatpush.msra.mxu0 %v2142
        %2255 = vmatpush.msra.mxu0 %v2140
        %2256 = vmatpush.msra.mxu0 %v2138
        %2257 = vmatpush.msra.mxu0 %v2136
        %2258 = vmatpush.msra.mxu0 %v2134
        %2259 = vmatpush.msra.mxu0 %v2132
        %2260 = vmatpush.msra.mxu0 %v2130
        %2261 = vmatpush.msra.mxu0 %v2128
        %2262 = vmatpush.msra.mxu0 %v2126
        %2263 = vmatmul.f32.gmra.mxu0 %v1722
        %v2264 = vpop.f32.mrf.mxu0
        %v2265 = vadd.f32 0.0, %v2264
        %2266 = vmatmul.f32.gmra.mxu0 %v1725
        %v2267 = vpop.f32.mrf.mxu0
        %v2268 = vadd.f32 0.0, %v2267
        %2269 = vmatmul.f32.gmra.mxu0 %v1728
        %v2270 = vpop.f32.mrf.mxu0
        %v2271 = vadd.f32 0.0, %v2270
        %2272 = vmatmul.f32.gmra.mxu0 %v1731
        %v2273 = vpop.f32.mrf.mxu0
        %v2274 = vadd.f32 0.0, %v2273
        %2275 = vdwg.mxu0
        %2276 = vmatpush.msra.mxu0 %v2188
        %2277 = vmatpush.msra.mxu0 %v2186
        %2278 = vmatpush.msra.mxu0 %v2184
        %2279 = vmatpush.msra.mxu0 %v2182
        %2280 = vmatpush.msra.mxu0 %v2180
        %2281 = vmatpush.msra.mxu0 %v2178
        %2282 = vmatpush.msra.mxu0 %v2176
        %2283 = vmatpush.msra.mxu0 %v2174
        %2284 = vmatpush.msra.mxu0 %v2172
        %2285 = vmatpush.msra.mxu0 %v2170
        %2286 = vmatpush.msra.mxu0 %v2168
        %2287 = vmatpush.msra.mxu0 %v2166
        %2288 = vmatpush.msra.mxu0 %v2164
        %2289 = vmatpush.msra.mxu0 %v2162
        %2290 = vmatpush.msra.mxu0 %v2160
        %2291 = vmatpush.msra.mxu0 %v2158
        %2292 = vmatmul.f32.gmra.mxu0 %v1751
        %v2293 = vpop.f32.mrf.mxu0
        %v2294 = vadd.f32 %v2265, %v2293
        %2295 = vmatmul.f32.gmra.mxu0 %v1754
        %v2296 = vpop.f32.mrf.mxu0
        %v2297 = vadd.f32 %v2268, %v2296
        %2298 = vmatmul.f32.gmra.mxu0 %v1757
        %v2299 = vpop.f32.mrf.mxu0
        %v2300 = vadd.f32 %v2271, %v2299
        %2301 = vmatmul.f32.gmra.mxu0 %v1760
        %v2302 = vpop.f32.mrf.mxu0
        %v2303 = vadd.f32 %v2274, %v2302
        %2304 = vdwg.mxu0
        %v2305 = vadd.f32 %v2055, %v2236
        %v2306 = vadd.f32 %v2113, %v2294
        %v2307 = vadd.f32 %v2058, %v2239
        %v2308 = vadd.f32 %v2116, %v2297
        %v2309 = vadd.f32 %v2061, %v2242
        %v2310 = vadd.f32 %v2119, %v2300
        %v2311 = vadd.f32 %v2064, %v2245
        %v2312 = vadd.f32 %v2122, %v2303
        %v2314 = vperm.slane %v1587, 0
        %v2315 = vperm.slane %v1587, 1
        %v2318 = vmul.f32 %v2314, %v2305
        %v2319 = vmul.f32 %v2315, %v2306
        %v2320 = vmul.f32 %v2314, %v2307
        %v2321 = vmul.f32 %v2315, %v2308
        %v2322 = vmul.f32 %v2314, %v2309
        %v2323 = vmul.f32 %v2315, %v2310
        %v2324 = vmul.f32 %v2314, %v2311
        %v2325 = vmul.f32 %v2315, %v2312
        %s2326 = scalar_lea.vmem [#allocation18], 3
        %v2327 = vld [vmem:[%s2326] ss:$8 sm:$0x3]
        %v2329 = vperm.slane %v2327, 0
        %v2330 = vperm.slane %v2327, 1
        %v2333 = vadd.f32 %v2318, %v2329
        %v2334 = vadd.f32 %v2319, %v2330
        %v2335 = vadd.f32 %v2320, %v2329
        %v2336 = vadd.f32 %v2321, %v2330
        %v2337 = vadd.f32 %v2322, %v2329
        %v2338 = vadd.f32 %v2323, %v2330
        %v2339 = vadd.f32 %v2324, %v2329
        %v2340 = vadd.f32 %v2325, %v2330
        %s2341 = scalar_lea.vmem [#allocation18], 4
        %v2342 = vld [vmem:[%s2341] ss:$8 sm:$0x3]
        %v2343 = vld [vmem:[#allocation12] sm:$0xff]
        %v2344 = vld [vmem:[#allocation12 + $0x8] sm:$0xff]
        %v2345 = vld [vmem:[#allocation12 + $0x10] sm:$0xff]
        %v2346 = vld [vmem:[#allocation12 + $0x18] sm:$0xff]
        %v2347 = vld [vmem:[#allocation12 + $0x20] sm:$0xff]
        %v2348 = vld [vmem:[#allocation12 + $0x28] sm:$0xff]
        %v2349 = vld [vmem:[#allocation12 + $0x30] sm:$0xff]
        %v2350 = vld [vmem:[#allocation12 + $0x38] sm:$0xff]
        %v2351 = vld [vmem:[#allocation12 + $0x40] sm:$0xff]
        %v2352 = vld [vmem:[#allocation12 + $0x48] sm:$0xff]
        %v2353 = vld [vmem:[#allocation12 + $0x50] sm:$0xff]
        %v2354 = vld [vmem:[#allocation12 + $0x58] sm:$0xff]
        %v2355 = vld [vmem:[#allocation12 + $0x60] sm:$0xff]
        %v2356 = vld [vmem:[#allocation12 + $0x68] sm:$0xff]
        %v2357 = vld [vmem:[#allocation12 + $0x70] sm:$0xff]
        %v2358 = vld [vmem:[#allocation12 + $0x78] sm:$0xff]
        %v2359 = vld [vmem:[#allocation12 + $0x80] sm:$0xff]
        %v2360 = vld [vmem:[#allocation12 + $0x88] sm:$0xff]
        %v2361 = vld [vmem:[#allocation12 + $0x90] sm:$0xff]
        %v2362 = vld [vmem:[#allocation12 + $0x98] sm:$0xff]
        %v2363 = vld [vmem:[#allocation12 + $0xa0] sm:$0xff]
        %v2364 = vld [vmem:[#allocation12 + $0xa8] sm:$0xff]
        %v2365 = vld [vmem:[#allocation12 + $0xb0] sm:$0xff]
        %v2366 = vld [vmem:[#allocation12 + $0xb8] sm:$0xff]
        %v2367 = vld [vmem:[#allocation12 + $0xc0] sm:$0xff]
        %v2368 = vld [vmem:[#allocation12 + $0xc8] sm:$0xff]
        %v2369 = vld [vmem:[#allocation12 + $0xd0] sm:$0xff]
        %v2370 = vld [vmem:[#allocation12 + $0xd8] sm:$0xff]
        %v2371 = vld [vmem:[#allocation12 + $0xe0] sm:$0xff]
        %v2372 = vld [vmem:[#allocation12 + $0xe8] sm:$0xff]
        %v2373 = vld [vmem:[#allocation12 + $0xf0] sm:$0xff]
        %v2374 = vld [vmem:[#allocation12 + $0xf8] sm:$0xff]
        %v2375 = vld [vmem:[#allocation12 + $0x100] sm:$0xff]
        %v2376 = vld [vmem:[#allocation12 + $0x108] sm:$0xff]
        %v2377 = vld [vmem:[#allocation12 + $0x110] sm:$0xff]
        %v2378 = vld [vmem:[#allocation12 + $0x118] sm:$0xff]
        %v2379 = vld [vmem:[#allocation12 + $0x120] sm:$0xff]
        %v2380 = vld [vmem:[#allocation12 + $0x128] sm:$0xff]
        %v2381 = vld [vmem:[#allocation12 + $0x130] sm:$0xff]
        %v2382 = vld [vmem:[#allocation12 + $0x138] sm:$0xff]
        %v2383 = vld [vmem:[#allocation12 + $0x140] sm:$0xff]
        %v2384 = vld [vmem:[#allocation12 + $0x148] sm:$0xff]
        %v2385 = vld [vmem:[#allocation12 + $0x150] sm:$0xff]
        %v2386 = vld [vmem:[#allocation12 + $0x158] sm:$0xff]
        %v2387 = vld [vmem:[#allocation12 + $0x160] sm:$0xff]
        %v2388 = vld [vmem:[#allocation12 + $0x168] sm:$0xff]
        %v2389 = vld [vmem:[#allocation12 + $0x170] sm:$0xff]
        %v2390 = vld [vmem:[#allocation12 + $0x178] sm:$0xff]
        %v2391 = vld [vmem:[#allocation12 + $0x180] sm:$0xff]
        %v2392 = vld [vmem:[#allocation12 + $0x188] sm:$0xff]
        %v2393 = vld [vmem:[#allocation12 + $0x190] sm:$0xff]
        %v2394 = vld [vmem:[#allocation12 + $0x198] sm:$0xff]
        %v2395 = vld [vmem:[#allocation12 + $0x1a0] sm:$0xff]
        %v2396 = vld [vmem:[#allocation12 + $0x1a8] sm:$0xff]
        %v2397 = vld [vmem:[#allocation12 + $0x1b0] sm:$0xff]
        %v2398 = vld [vmem:[#allocation12 + $0x1b8] sm:$0xff]
        %v2399 = vld [vmem:[#allocation12 + $0x1c0] sm:$0xff]
        %v2400 = vld [vmem:[#allocation12 + $0x1c8] sm:$0xff]
        %v2401 = vld [vmem:[#allocation12 + $0x1d0] sm:$0xff]
        %v2402 = vld [vmem:[#allocation12 + $0x1d8] sm:$0xff]
        %v2403 = vld [vmem:[#allocation12 + $0x1e0] sm:$0xff]
        %v2404 = vld [vmem:[#allocation12 + $0x1e8] sm:$0xff]
        %v2405 = vld [vmem:[#allocation12 + $0x1f0] sm:$0xff]
        %v2406 = vld [vmem:[#allocation12 + $0x1f8] sm:$0xff]
        %2407 = vmatpush.msra.mxu0 %v2373
        %2408 = vmatpush.msra.mxu0 %v2371
        %2409 = vmatpush.msra.mxu0 %v2369
        %2410 = vmatpush.msra.mxu0 %v2367
        %2411 = vmatpush.msra.mxu0 %v2365
        %2412 = vmatpush.msra.mxu0 %v2363
        %2413 = vmatpush.msra.mxu0 %v2361
        %2414 = vmatpush.msra.mxu0 %v2359
        %2415 = vmatpush.msra.mxu0 %v2357
        %2416 = vmatpush.msra.mxu0 %v2355
        %2417 = vmatpush.msra.mxu0 %v2353
        %2418 = vmatpush.msra.mxu0 %v2351
        %2419 = vmatpush.msra.mxu0 %v2349
        %2420 = vmatpush.msra.mxu0 %v2347
        %2421 = vmatpush.msra.mxu0 %v2345
        %2422 = vmatpush.msra.mxu0 %v2343
        %2423 = vmatmul.f32.gmra.mxu0 %v2333
        %v2424 = vpop.f32.mrf.mxu0
        %v2425 = vadd.f32 0.0, %v2424
        %2426 = vmatmul.f32.gmra.mxu0 %v2335
        %v2427 = vpop.f32.mrf.mxu0
        %v2428 = vadd.f32 0.0, %v2427
        %2429 = vmatmul.f32.gmra.mxu0 %v2337
        %v2430 = vpop.f32.mrf.mxu0
        %v2431 = vadd.f32 0.0, %v2430
        %2432 = vmatmul.f32.gmra.mxu0 %v2339
        %v2433 = vpop.f32.mrf.mxu0
        %v2434 = vadd.f32 0.0, %v2433
        %2435 = vdwg.mxu0
        %2436 = vmatpush.msra.mxu0 %v2405
        %2437 = vmatpush.msra.mxu0 %v2403
        %2438 = vmatpush.msra.mxu0 %v2401
        %2439 = vmatpush.msra.mxu0 %v2399
        %2440 = vmatpush.msra.mxu0 %v2397
        %2441 = vmatpush.msra.mxu0 %v2395
        %2442 = vmatpush.msra.mxu0 %v2393
        %2443 = vmatpush.msra.mxu0 %v2391
        %2444 = vmatpush.msra.mxu0 %v2389
        %2445 = vmatpush.msra.mxu0 %v2387
        %2446 = vmatpush.msra.mxu0 %v2385
        %2447 = vmatpush.msra.mxu0 %v2383
        %2448 = vmatpush.msra.mxu0 %v2381
        %2449 = vmatpush.msra.mxu0 %v2379
        %2450 = vmatpush.msra.mxu0 %v2377
        %2451 = vmatpush.msra.mxu0 %v2375
        %2452 = vmatmul.f32.gmra.mxu0 %v2334
        %v2453 = vpop.f32.mrf.mxu0
        %v2454 = vadd.f32 %v2425, %v2453
        %2455 = vmatmul.f32.gmra.mxu0 %v2336
        %v2456 = vpop.f32.mrf.mxu0
        %v2457 = vadd.f32 %v2428, %v2456
        %2458 = vmatmul.f32.gmra.mxu0 %v2338
        %v2459 = vpop.f32.mrf.mxu0
        %v2460 = vadd.f32 %v2431, %v2459
        %2461 = vmatmul.f32.gmra.mxu0 %v2340
        %v2462 = vpop.f32.mrf.mxu0
        %v2463 = vadd.f32 %v2434, %v2462
        %2464 = vdwg.mxu0
        %2465 = vmatpush.msra.mxu0 %v2374
        %2466 = vmatpush.msra.mxu0 %v2372
        %2467 = vmatpush.msra.mxu0 %v2370
        %2468 = vmatpush.msra.mxu0 %v2368
        %2469 = vmatpush.msra.mxu0 %v2366
        %2470 = vmatpush.msra.mxu0 %v2364
        %2471 = vmatpush.msra.mxu0 %v2362
        %2472 = vmatpush.msra.mxu0 %v2360
        %2473 = vmatpush.msra.mxu0 %v2358
        %2474 = vmatpush.msra.mxu0 %v2356
        %2475 = vmatpush.msra.mxu0 %v2354
        %2476 = vmatpush.msra.mxu0 %v2352
        %2477 = vmatpush.msra.mxu0 %v2350
        %2478 = vmatpush.msra.mxu0 %v2348
        %2479 = vmatpush.msra.mxu0 %v2346
        %2480 = vmatpush.msra.mxu0 %v2344
        %2481 = vmatmul.f32.gmra.mxu0 %v2333
        %v2482 = vpop.f32.mrf.mxu0
        %v2483 = vadd.f32 0.0, %v2482
        %2484 = vmatmul.f32.gmra.mxu0 %v2335
        %v2485 = vpop.f32.mrf.mxu0
        %v2486 = vadd.f32 0.0, %v2485
        %2487 = vmatmul.f32.gmra.mxu0 %v2337
        %v2488 = vpop.f32.mrf.mxu0
        %v2489 = vadd.f32 0.0, %v2488
        %2490 = vmatmul.f32.gmra.mxu0 %v2339
        %v2491 = vpop.f32.mrf.mxu0
        %v2492 = vadd.f32 0.0, %v2491
        %2493 = vdwg.mxu0
        %2494 = vmatpush.msra.mxu0 %v2406
        %2495 = vmatpush.msra.mxu0 %v2404
        %2496 = vmatpush.msra.mxu0 %v2402
        %2497 = vmatpush.msra.mxu0 %v2400
        %2498 = vmatpush.msra.mxu0 %v2398
        %2499 = vmatpush.msra.mxu0 %v2396
        %2500 = vmatpush.msra.mxu0 %v2394
        %2501 = vmatpush.msra.mxu0 %v2392
        %2502 = vmatpush.msra.mxu0 %v2390
        %2503 = vmatpush.msra.mxu0 %v2388
        %2504 = vmatpush.msra.mxu0 %v2386
        %2505 = vmatpush.msra.mxu0 %v2384
        %2506 = vmatpush.msra.mxu0 %v2382
        %2507 = vmatpush.msra.mxu0 %v2380
        %2508 = vmatpush.msra.mxu0 %v2378
        %2509 = vmatpush.msra.mxu0 %v2376
        %2510 = vmatmul.f32.gmra.mxu0 %v2334
        %v2511 = vpop.f32.mrf.mxu0
        %v2512 = vadd.f32 %v2483, %v2511
        %2513 = vmatmul.f32.gmra.mxu0 %v2336
        %v2514 = vpop.f32.mrf.mxu0
        %v2515 = vadd.f32 %v2486, %v2514
        %2516 = vmatmul.f32.gmra.mxu0 %v2338
        %v2517 = vpop.f32.mrf.mxu0
        %v2518 = vadd.f32 %v2489, %v2517
        %2519 = vmatmul.f32.gmra.mxu0 %v2340
        %v2520 = vpop.f32.mrf.mxu0
        %v2521 = vadd.f32 %v2492, %v2520
        %2522 = vdwg.mxu0
        %v2524 = vperm.slane %v2342, 0
        %v2525 = vperm.slane %v2342, 1
        %v2528 = vmul.f32 %v2524, %v2454
        %v2529 = vmul.f32 %v2525, %v2512
        %v2530 = vmul.f32 %v2524, %v2457
        %v2531 = vmul.f32 %v2525, %v2515
        %v2532 = vmul.f32 %v2524, %v2460
        %v2533 = vmul.f32 %v2525, %v2518
        %v2534 = vmul.f32 %v2524, %v2463
        %v2535 = vmul.f32 %v2525, %v2521
        %s2536 = scalar_lea.vmem [#allocation18], 5
        %v2537 = vld [vmem:[%s2536] ss:$8 sm:$0x3]
        %v2539 = vperm.slane %v2537, 0
        %v2540 = vperm.slane %v2537, 1
        %v2543 = vadd.f32 %v2528, %v2539
        %v2544 = vadd.f32 %v2529, %v2540
        %v2545 = vadd.f32 %v2530, %v2539
        %v2546 = vadd.f32 %v2531, %v2540
        %v2547 = vadd.f32 %v2532, %v2539
        %v2548 = vadd.f32 %v2533, %v2540
        %v2549 = vadd.f32 %v2534, %v2539
        %v2550 = vadd.f32 %v2535, %v2540
        %v2551 = vmax.f32 %v2543, 0.0
        %v2552 = vmax.f32 %v2544, 0.0
        %v2553 = vmax.f32 %v2545, 0.0
        %v2554 = vmax.f32 %v2546, 0.0
        %v2555 = vmax.f32 %v2547, 0.0
        %v2556 = vmax.f32 %v2548, 0.0
        %v2557 = vmax.f32 %v2549, 0.0
        %v2558 = vmax.f32 %v2550, 0.0
        %v2559 = vld [vmem:[#allocation19] sm:$0x1]
        %v2560 = vld [vmem:[#allocation6] sm:$0xff]
        %v2561 = vld [vmem:[#allocation6 + $0x8] sm:$0xff]
        %v2563 = vsel %vm787, %v2560, 0
        %v2566 = vsel %vm787, %v2561, 0
        %2568 = vmatpush.msra.mxu0 0.0
        %2569 = vmatpush.msra.mxu0 0.0
        %2570 = vmatpush.msra.mxu0 0.0
        %2571 = vmatpush.msra.mxu0 0.0
        %2572 = vmatpush.msra.mxu0 0.0
        %2573 = vmatpush.msra.mxu0 0.0
        %2574 = vmatpush.msra.mxu0 0.0
        %2575 = vmatpush.msra.mxu0 0.0
        %2576 = vmatpush.msra.mxu0 0.0
        %2577 = vmatpush.msra.mxu0 0.0
        %2578 = vmatpush.msra.mxu0 0.0
        %2579 = vmatpush.msra.mxu0 0.0
        %2580 = vmatpush.msra.mxu0 %v779
        %2581 = vmatpush.msra.mxu0 %v777
        %2582 = vmatpush.msra.mxu0 %v775
        %2583 = vmatpush.msra.mxu0 %v773
        %2584 = vmatmul.f32.gmra.mxu0 %v2563
        %v2585 = vpop.f32.mrf.mxu0
        %v2586 = vadd.f32 0.0, %v2585
        %2587 = vmatmul.f32.gmra.mxu0 %v2566
        %v2588 = vpop.f32.mrf.mxu0
        %v2589 = vadd.f32 0.0, %v2588
        %2590 = vdwg.mxu0
        %2591 = vmatpush.msra.mxu0 0.0
        %2592 = vmatpush.msra.mxu0 0.0
        %2593 = vmatpush.msra.mxu0 0.0
        %2594 = vmatpush.msra.mxu0 0.0
        %2595 = vmatpush.msra.mxu0 0.0
        %2596 = vmatpush.msra.mxu0 0.0
        %2597 = vmatpush.msra.mxu0 0.0
        %2598 = vmatpush.msra.mxu0 0.0
        %2599 = vmatpush.msra.mxu0 0.0
        %2600 = vmatpush.msra.mxu0 0.0
        %2601 = vmatpush.msra.mxu0 0.0
        %2602 = vmatpush.msra.mxu0 0.0
        %2603 = vmatpush.msra.mxu0 %v780
        %2604 = vmatpush.msra.mxu0 %v778
        %2605 = vmatpush.msra.mxu0 %v776
        %2606 = vmatpush.msra.mxu0 %v774
        %2607 = vmatmul.f32.gmra.mxu0 %v2563
        %v2608 = vpop.f32.mrf.mxu0
        %v2609 = vadd.f32 0.0, %v2608
        %2610 = vmatmul.f32.gmra.mxu0 %v2566
        %v2611 = vpop.f32.mrf.mxu0
        %v2612 = vadd.f32 0.0, %v2611
        %2613 = vdwg.mxu0
        %s2614 = scalar_lea.vmem [#allocation6], 16
        %v2615 = vld [vmem:[%s2614] sm:$0xff]
        %v2616 = vld [vmem:[%s2614 + $0x8] sm:$0xff]
        %v2618 = vsel %vm787, %v2615, 0
        %v2621 = vsel %vm787, %v2616, 0
        %2623 = vmatpush.msra.mxu0 0.0
        %2624 = vmatpush.msra.mxu0 0.0
        %2625 = vmatpush.msra.mxu0 0.0
        %2626 = vmatpush.msra.mxu0 0.0
        %2627 = vmatpush.msra.mxu0 0.0
        %2628 = vmatpush.msra.mxu0 0.0
        %2629 = vmatpush.msra.mxu0 0.0
        %2630 = vmatpush.msra.mxu0 0.0
        %2631 = vmatpush.msra.mxu0 0.0
        %2632 = vmatpush.msra.mxu0 0.0
        %2633 = vmatpush.msra.mxu0 0.0
        %2634 = vmatpush.msra.mxu0 0.0
        %2635 = vmatpush.msra.mxu0 %v779
        %2636 = vmatpush.msra.mxu0 %v777
        %2637 = vmatpush.msra.mxu0 %v775
        %2638 = vmatpush.msra.mxu0 %v773
        %2639 = vmatmul.f32.gmra.mxu0 %v2618
        %v2640 = vpop.f32.mrf.mxu0
        %v2641 = vadd.f32 0.0, %v2640
        %2642 = vmatmul.f32.gmra.mxu0 %v2621
        %v2643 = vpop.f32.mrf.mxu0
        %v2644 = vadd.f32 0.0, %v2643
        %2645 = vdwg.mxu0
        %2646 = vmatpush.msra.mxu0 0.0
        %2647 = vmatpush.msra.mxu0 0.0
        %2648 = vmatpush.msra.mxu0 0.0
        %2649 = vmatpush.msra.mxu0 0.0
        %2650 = vmatpush.msra.mxu0 0.0
        %2651 = vmatpush.msra.mxu0 0.0
        %2652 = vmatpush.msra.mxu0 0.0
        %2653 = vmatpush.msra.mxu0 0.0
        %2654 = vmatpush.msra.mxu0 0.0
        %2655 = vmatpush.msra.mxu0 0.0
        %2656 = vmatpush.msra.mxu0 0.0
        %2657 = vmatpush.msra.mxu0 0.0
        %2658 = vmatpush.msra.mxu0 %v780
        %2659 = vmatpush.msra.mxu0 %v778
        %2660 = vmatpush.msra.mxu0 %v776
        %2661 = vmatpush.msra.mxu0 %v774
        %2662 = vmatmul.f32.gmra.mxu0 %v2618
        %v2663 = vpop.f32.mrf.mxu0
        %v2664 = vadd.f32 0.0, %v2663
        %2665 = vmatmul.f32.gmra.mxu0 %v2621
        %v2666 = vpop.f32.mrf.mxu0
        %v2667 = vadd.f32 0.0, %v2666
        %2668 = vdwg.mxu0
        %s2669 = scalar_lea.vmem [#allocation6], 32
        %v2670 = vld [vmem:[%s2669] sm:$0xff]
        %v2671 = vld [vmem:[%s2669 + $0x8] sm:$0xff]
        %v2673 = vsel %vm787, %v2670, 0
        %v2676 = vsel %vm787, %v2671, 0
        %2678 = vmatpush.msra.mxu0 0.0
        %2679 = vmatpush.msra.mxu0 0.0
        %2680 = vmatpush.msra.mxu0 0.0
        %2681 = vmatpush.msra.mxu0 0.0
        %2682 = vmatpush.msra.mxu0 0.0
        %2683 = vmatpush.msra.mxu0 0.0
        %2684 = vmatpush.msra.mxu0 0.0
        %2685 = vmatpush.msra.mxu0 0.0
        %2686 = vmatpush.msra.mxu0 0.0
        %2687 = vmatpush.msra.mxu0 0.0
        %2688 = vmatpush.msra.mxu0 0.0
        %2689 = vmatpush.msra.mxu0 0.0
        %2690 = vmatpush.msra.mxu0 %v779
        %2691 = vmatpush.msra.mxu0 %v777
        %2692 = vmatpush.msra.mxu0 %v775
        %2693 = vmatpush.msra.mxu0 %v773
        %2694 = vmatmul.f32.gmra.mxu0 %v2673
        %v2695 = vpop.f32.mrf.mxu0
        %v2696 = vadd.f32 0.0, %v2695
        %2697 = vmatmul.f32.gmra.mxu0 %v2676
        %v2698 = vpop.f32.mrf.mxu0
        %v2699 = vadd.f32 0.0, %v2698
        %2700 = vdwg.mxu0
        %2701 = vmatpush.msra.mxu0 0.0
        %2702 = vmatpush.msra.mxu0 0.0
        %2703 = vmatpush.msra.mxu0 0.0
        %2704 = vmatpush.msra.mxu0 0.0
        %2705 = vmatpush.msra.mxu0 0.0
        %2706 = vmatpush.msra.mxu0 0.0
        %2707 = vmatpush.msra.mxu0 0.0
        %2708 = vmatpush.msra.mxu0 0.0
        %2709 = vmatpush.msra.mxu0 0.0
        %2710 = vmatpush.msra.mxu0 0.0
        %2711 = vmatpush.msra.mxu0 0.0
        %2712 = vmatpush.msra.mxu0 0.0
        %2713 = vmatpush.msra.mxu0 %v780
        %2714 = vmatpush.msra.mxu0 %v778
        %2715 = vmatpush.msra.mxu0 %v776
        %2716 = vmatpush.msra.mxu0 %v774
        %2717 = vmatmul.f32.gmra.mxu0 %v2673
        %v2718 = vpop.f32.mrf.mxu0
        %v2719 = vadd.f32 0.0, %v2718
        %2720 = vmatmul.f32.gmra.mxu0 %v2676
        %v2721 = vpop.f32.mrf.mxu0
        %v2722 = vadd.f32 0.0, %v2721
        %2723 = vdwg.mxu0
        %v2724 = vld [vmem:[#allocation10] sm:$0xff]
        %v2725 = vld [vmem:[#allocation10 + $0x8] sm:$0xff]
        %v2726 = vld [vmem:[#allocation10 + $0x10] sm:$0xff]
        %v2727 = vld [vmem:[#allocation10 + $0x18] sm:$0xff]
        %v2728 = vld [vmem:[#allocation10 + $0x20] sm:$0xff]
        %v2729 = vld [vmem:[#allocation10 + $0x28] sm:$0xff]
        %v2730 = vld [vmem:[#allocation10 + $0x30] sm:$0xff]
        %v2731 = vld [vmem:[#allocation10 + $0x38] sm:$0xff]
        %v2732 = vld [vmem:[#allocation10 + $0x40] sm:$0xff]
        %v2733 = vld [vmem:[#allocation10 + $0x48] sm:$0xff]
        %v2734 = vld [vmem:[#allocation10 + $0x50] sm:$0xff]
        %v2735 = vld [vmem:[#allocation10 + $0x58] sm:$0xff]
        %v2736 = vld [vmem:[#allocation10 + $0x60] sm:$0xff]
        %v2737 = vld [vmem:[#allocation10 + $0x68] sm:$0xff]
        %v2738 = vld [vmem:[#allocation10 + $0x70] sm:$0xff]
        %v2739 = vld [vmem:[#allocation10 + $0x78] sm:$0xff]
        %v2740 = vld [vmem:[#allocation10 + $0x80] sm:$0xff]
        %v2741 = vld [vmem:[#allocation10 + $0x88] sm:$0xff]
        %v2742 = vld [vmem:[#allocation10 + $0x90] sm:$0xff]
        %v2743 = vld [vmem:[#allocation10 + $0x98] sm:$0xff]
        %v2744 = vld [vmem:[#allocation10 + $0xa0] sm:$0xff]
        %v2745 = vld [vmem:[#allocation10 + $0xa8] sm:$0xff]
        %v2746 = vld [vmem:[#allocation10 + $0xb0] sm:$0xff]
        %v2747 = vld [vmem:[#allocation10 + $0xb8] sm:$0xff]
        %v2748 = vld [vmem:[#allocation10 + $0xc0] sm:$0xff]
        %v2749 = vld [vmem:[#allocation10 + $0xc8] sm:$0xff]
        %v2750 = vld [vmem:[#allocation10 + $0xd0] sm:$0xff]
        %v2751 = vld [vmem:[#allocation10 + $0xd8] sm:$0xff]
        %v2752 = vld [vmem:[#allocation10 + $0xe0] sm:$0xff]
        %v2753 = vld [vmem:[#allocation10 + $0xe8] sm:$0xff]
        %v2754 = vld [vmem:[#allocation10 + $0xf0] sm:$0xff]
        %v2755 = vld [vmem:[#allocation10 + $0xf8] sm:$0xff]
        %s2756 = scalar_lea.vmem [#allocation10], 256
        %v2757 = vld [vmem:[%s2756] sm:$0xff]
        %v2758 = vld [vmem:[%s2756 + $0x8] sm:$0xff]
        %v2759 = vld [vmem:[%s2756 + $0x10] sm:$0xff]
        %v2760 = vld [vmem:[%s2756 + $0x18] sm:$0xff]
        %v2761 = vld [vmem:[%s2756 + $0x20] sm:$0xff]
        %v2762 = vld [vmem:[%s2756 + $0x28] sm:$0xff]
        %v2763 = vld [vmem:[%s2756 + $0x30] sm:$0xff]
        %v2764 = vld [vmem:[%s2756 + $0x38] sm:$0xff]
        %v2765 = vld [vmem:[%s2756 + $0x40] sm:$0xff]
        %v2766 = vld [vmem:[%s2756 + $0x48] sm:$0xff]
        %v2767 = vld [vmem:[%s2756 + $0x50] sm:$0xff]
        %v2768 = vld [vmem:[%s2756 + $0x58] sm:$0xff]
        %v2769 = vld [vmem:[%s2756 + $0x60] sm:$0xff]
        %v2770 = vld [vmem:[%s2756 + $0x68] sm:$0xff]
        %v2771 = vld [vmem:[%s2756 + $0x70] sm:$0xff]
        %v2772 = vld [vmem:[%s2756 + $0x78] sm:$0xff]
        %v2773 = vld [vmem:[%s2756 + $0x80] sm:$0xff]
        %v2774 = vld [vmem:[%s2756 + $0x88] sm:$0xff]
        %v2775 = vld [vmem:[%s2756 + $0x90] sm:$0xff]
        %v2776 = vld [vmem:[%s2756 + $0x98] sm:$0xff]
        %v2777 = vld [vmem:[%s2756 + $0xa0] sm:$0xff]
        %v2778 = vld [vmem:[%s2756 + $0xa8] sm:$0xff]
        %v2779 = vld [vmem:[%s2756 + $0xb0] sm:$0xff]
        %v2780 = vld [vmem:[%s2756 + $0xb8] sm:$0xff]
        %v2781 = vld [vmem:[%s2756 + $0xc0] sm:$0xff]
        %v2782 = vld [vmem:[%s2756 + $0xc8] sm:$0xff]
        %v2783 = vld [vmem:[%s2756 + $0xd0] sm:$0xff]
        %v2784 = vld [vmem:[%s2756 + $0xd8] sm:$0xff]
        %v2785 = vld [vmem:[%s2756 + $0xe0] sm:$0xff]
        %v2786 = vld [vmem:[%s2756 + $0xe8] sm:$0xff]
        %v2787 = vld [vmem:[%s2756 + $0xf0] sm:$0xff]
        %v2788 = vld [vmem:[%s2756 + $0xf8] sm:$0xff]
        %2789 = vmatpush.msra.mxu0 %v2772
        %2790 = vmatpush.msra.mxu0 %v2771
        %2791 = vmatpush.msra.mxu0 %v2770
        %2792 = vmatpush.msra.mxu0 %v2769
        %2793 = vmatpush.msra.mxu0 %v2768
        %2794 = vmatpush.msra.mxu0 %v2767
        %2795 = vmatpush.msra.mxu0 %v2766
        %2796 = vmatpush.msra.mxu0 %v2765
        %2797 = vmatpush.msra.mxu0 %v2764
        %2798 = vmatpush.msra.mxu0 %v2763
        %2799 = vmatpush.msra.mxu0 %v2762
        %2800 = vmatpush.msra.mxu0 %v2761
        %2801 = vmatpush.msra.mxu0 %v2760
        %2802 = vmatpush.msra.mxu0 %v2759
        %2803 = vmatpush.msra.mxu0 %v2758
        %2804 = vmatpush.msra.mxu0 %v2757
        %2805 = vmatmul.f32.gmra.mxu0 %v2641
        %v2806 = vpop.f32.mrf.mxu0
        %v2807 = vadd.f32 0.0, %v2806
        %2808 = vmatmul.f32.gmra.mxu0 %v2644
        %v2809 = vpop.f32.mrf.mxu0
        %v2810 = vadd.f32 0.0, %v2809
        %2811 = vdwg.mxu0
        %2812 = vmatpush.msra.mxu0 %v2788
        %2813 = vmatpush.msra.mxu0 %v2787
        %2814 = vmatpush.msra.mxu0 %v2786
        %2815 = vmatpush.msra.mxu0 %v2785
        %2816 = vmatpush.msra.mxu0 %v2784
        %2817 = vmatpush.msra.mxu0 %v2783
        %2818 = vmatpush.msra.mxu0 %v2782
        %2819 = vmatpush.msra.mxu0 %v2781
        %2820 = vmatpush.msra.mxu0 %v2780
        %2821 = vmatpush.msra.mxu0 %v2779
        %2822 = vmatpush.msra.mxu0 %v2778
        %2823 = vmatpush.msra.mxu0 %v2777
        %2824 = vmatpush.msra.mxu0 %v2776
        %2825 = vmatpush.msra.mxu0 %v2775
        %2826 = vmatpush.msra.mxu0 %v2774
        %2827 = vmatpush.msra.mxu0 %v2773
        %2828 = vmatmul.f32.gmra.mxu0 %v2664
        %v2829 = vpop.f32.mrf.mxu0
        %v2830 = vadd.f32 %v2807, %v2829
        %2831 = vmatmul.f32.gmra.mxu0 %v2667
        %v2832 = vpop.f32.mrf.mxu0
        %v2833 = vadd.f32 %v2810, %v2832
        %2834 = vdwg.mxu0
        %2835 = vmatpush.msra.mxu0 %v2739
        %2836 = vmatpush.msra.mxu0 %v2738
        %2837 = vmatpush.msra.mxu0 %v2737
        %2838 = vmatpush.msra.mxu0 %v2736
        %2839 = vmatpush.msra.mxu0 %v2735
        %2840 = vmatpush.msra.mxu0 %v2734
        %2841 = vmatpush.msra.mxu0 %v2733
        %2842 = vmatpush.msra.mxu0 %v2732
        %2843 = vmatpush.msra.mxu0 %v2731
        %2844 = vmatpush.msra.mxu0 %v2730
        %2845 = vmatpush.msra.mxu0 %v2729
        %2846 = vmatpush.msra.mxu0 %v2728
        %2847 = vmatpush.msra.mxu0 %v2727
        %2848 = vmatpush.msra.mxu0 %v2726
        %2849 = vmatpush.msra.mxu0 %v2725
        %2850 = vmatpush.msra.mxu0 %v2724
        %2851 = vmatmul.f32.gmra.mxu0 %v2586
        %v2852 = vpop.f32.mrf.mxu0
        %v2853 = vadd.f32 %v2830, %v2852
        %2854 = vmatmul.f32.gmra.mxu0 %v2589
        %v2855 = vpop.f32.mrf.mxu0
        %v2856 = vadd.f32 %v2833, %v2855
        %2857 = vdwg.mxu0
        %2858 = vmatpush.msra.mxu0 %v2755
        %2859 = vmatpush.msra.mxu0 %v2754
        %2860 = vmatpush.msra.mxu0 %v2753
        %2861 = vmatpush.msra.mxu0 %v2752
        %2862 = vmatpush.msra.mxu0 %v2751
        %2863 = vmatpush.msra.mxu0 %v2750
        %2864 = vmatpush.msra.mxu0 %v2749
        %2865 = vmatpush.msra.mxu0 %v2748
        %2866 = vmatpush.msra.mxu0 %v2747
        %2867 = vmatpush.msra.mxu0 %v2746
        %2868 = vmatpush.msra.mxu0 %v2745
        %2869 = vmatpush.msra.mxu0 %v2744
        %2870 = vmatpush.msra.mxu0 %v2743
        %2871 = vmatpush.msra.mxu0 %v2742
        %2872 = vmatpush.msra.mxu0 %v2741
        %2873 = vmatpush.msra.mxu0 %v2740
        %2874 = vmatmul.f32.gmra.mxu0 %v2609
        %v2875 = vpop.f32.mrf.mxu0
        %v2876 = vadd.f32 %v2853, %v2875
        %2877 = vmatmul.f32.gmra.mxu0 %v2612
        %v2878 = vpop.f32.mrf.mxu0
        %v2879 = vadd.f32 %v2856, %v2878
        %2880 = vdwg.mxu0
        %s2881 = scalar_lea.vmem [#allocation10], 512
        %v2882 = vld [vmem:[%s2881] sm:$0xff]
        %v2883 = vld [vmem:[%s2881 + $0x8] sm:$0xff]
        %v2884 = vld [vmem:[%s2881 + $0x10] sm:$0xff]
        %v2885 = vld [vmem:[%s2881 + $0x18] sm:$0xff]
        %v2886 = vld [vmem:[%s2881 + $0x20] sm:$0xff]
        %v2887 = vld [vmem:[%s2881 + $0x28] sm:$0xff]
        %v2888 = vld [vmem:[%s2881 + $0x30] sm:$0xff]
        %v2889 = vld [vmem:[%s2881 + $0x38] sm:$0xff]
        %v2890 = vld [vmem:[%s2881 + $0x40] sm:$0xff]
        %v2891 = vld [vmem:[%s2881 + $0x48] sm:$0xff]
        %v2892 = vld [vmem:[%s2881 + $0x50] sm:$0xff]
        %v2893 = vld [vmem:[%s2881 + $0x58] sm:$0xff]
        %v2894 = vld [vmem:[%s2881 + $0x60] sm:$0xff]
        %v2895 = vld [vmem:[%s2881 + $0x68] sm:$0xff]
        %v2896 = vld [vmem:[%s2881 + $0x70] sm:$0xff]
        %v2897 = vld [vmem:[%s2881 + $0x78] sm:$0xff]
        %v2898 = vld [vmem:[%s2881 + $0x80] sm:$0xff]
        %v2899 = vld [vmem:[%s2881 + $0x88] sm:$0xff]
        %v2900 = vld [vmem:[%s2881 + $0x90] sm:$0xff]
        %v2901 = vld [vmem:[%s2881 + $0x98] sm:$0xff]
        %v2902 = vld [vmem:[%s2881 + $0xa0] sm:$0xff]
        %v2903 = vld [vmem:[%s2881 + $0xa8] sm:$0xff]
        %v2904 = vld [vmem:[%s2881 + $0xb0] sm:$0xff]
        %v2905 = vld [vmem:[%s2881 + $0xb8] sm:$0xff]
        %v2906 = vld [vmem:[%s2881 + $0xc0] sm:$0xff]
        %v2907 = vld [vmem:[%s2881 + $0xc8] sm:$0xff]
        %v2908 = vld [vmem:[%s2881 + $0xd0] sm:$0xff]
        %v2909 = vld [vmem:[%s2881 + $0xd8] sm:$0xff]
        %v2910 = vld [vmem:[%s2881 + $0xe0] sm:$0xff]
        %v2911 = vld [vmem:[%s2881 + $0xe8] sm:$0xff]
        %v2912 = vld [vmem:[%s2881 + $0xf0] sm:$0xff]
        %v2913 = vld [vmem:[%s2881 + $0xf8] sm:$0xff]
        %2914 = vmatpush.msra.mxu0 %v2897
        %2915 = vmatpush.msra.mxu0 %v2896
        %2916 = vmatpush.msra.mxu0 %v2895
        %2917 = vmatpush.msra.mxu0 %v2894
        %2918 = vmatpush.msra.mxu0 %v2893
        %2919 = vmatpush.msra.mxu0 %v2892
        %2920 = vmatpush.msra.mxu0 %v2891
        %2921 = vmatpush.msra.mxu0 %v2890
        %2922 = vmatpush.msra.mxu0 %v2889
        %2923 = vmatpush.msra.mxu0 %v2888
        %2924 = vmatpush.msra.mxu0 %v2887
        %2925 = vmatpush.msra.mxu0 %v2886
        %2926 = vmatpush.msra.mxu0 %v2885
        %2927 = vmatpush.msra.mxu0 %v2884
        %2928 = vmatpush.msra.mxu0 %v2883
        %2929 = vmatpush.msra.mxu0 %v2882
        %2930 = vmatmul.f32.gmra.mxu0 %v2696
        %v2931 = vpop.f32.mrf.mxu0
        %v2932 = vadd.f32 0.0, %v2931
        %2933 = vmatmul.f32.gmra.mxu0 %v2699
        %v2934 = vpop.f32.mrf.mxu0
        %v2935 = vadd.f32 0.0, %v2934
        %2936 = vdwg.mxu0
        %2937 = vmatpush.msra.mxu0 %v2913
        %2938 = vmatpush.msra.mxu0 %v2912
        %2939 = vmatpush.msra.mxu0 %v2911
        %2940 = vmatpush.msra.mxu0 %v2910
        %2941 = vmatpush.msra.mxu0 %v2909
        %2942 = vmatpush.msra.mxu0 %v2908
        %2943 = vmatpush.msra.mxu0 %v2907
        %2944 = vmatpush.msra.mxu0 %v2906
        %2945 = vmatpush.msra.mxu0 %v2905
        %2946 = vmatpush.msra.mxu0 %v2904
        %2947 = vmatpush.msra.mxu0 %v2903
        %2948 = vmatpush.msra.mxu0 %v2902
        %2949 = vmatpush.msra.mxu0 %v2901
        %2950 = vmatpush.msra.mxu0 %v2900
        %2951 = vmatpush.msra.mxu0 %v2899
        %2952 = vmatpush.msra.mxu0 %v2898
        %2953 = vmatmul.f32.gmra.mxu0 %v2719
        %v2954 = vpop.f32.mrf.mxu0
        %v2955 = vadd.f32 %v2932, %v2954
        %2956 = vmatmul.f32.gmra.mxu0 %v2722
        %v2957 = vpop.f32.mrf.mxu0
        %v2958 = vadd.f32 %v2935, %v2957
        %2959 = vdwg.mxu0
        %v2960 = vadd.f32 %v2876, %v2955
        %v2961 = vadd.f32 %v2879, %v2958
        %v2962 = vperm.slane %v2559, 0
        %v2963 = vmul.f32 %v2962, %v2960
        %v2964 = vmul.f32 %v2962, %v2961
        %v2965 = vld [vmem:[#allocation19 + $0x1] sm:$0x1]
        %v2966 = vperm.slane %v2965, 0
        %v2967 = vadd.f32 %v2963, %v2966
        %v2968 = vadd.f32 %v2964, %v2966
        %v2969 = vld [vmem:[#allocation15] sm:$0xff]
        %vm2970 = vcmask 130048
        %v2972 = vsel %vm2970, %v2969, 0
        %2974 = vmatpush.msra.mxu0 0.0
        %2975 = vmatpush.msra.mxu0 0.0
        %2976 = vmatpush.msra.mxu0 0.0
        %2977 = vmatpush.msra.mxu0 0.0
        %2978 = vmatpush.msra.mxu0 0.0
        %2979 = vmatpush.msra.mxu0 0.0
        %2980 = vmatpush.msra.mxu0 0.0
        %2981 = vmatpush.msra.mxu0 0.0
        %2982 = vmatpush.msra.mxu0 0.0
        %2983 = vmatpush.msra.mxu0 0.0
        %2984 = vmatpush.msra.mxu0 0.0
        %2985 = vmatpush.msra.mxu0 0.0
        %2986 = vmatpush.msra.mxu0 0.0
        %2987 = vmatpush.msra.mxu0 0.0
        %2988 = vmatpush.msra.mxu0 %v2968
        %2989 = vmatpush.msra.mxu0 %v2967
        %2990 = vmatmul.f32.gmra.mxu0 %v2972
        %v2991 = vpop.f32.mrf.mxu0
        %v2992 = vadd.f32 0.0, %v2991
        %2993 = vdwg.mxu0
        %v2994 = vld [vmem:[%s11] sm:$0xff]
        %v2995 = vld [vmem:[%s11 + $0x8] sm:$0xff]
        %v2996 = vld [vmem:[%s11 + $0x10] sm:$0xff]
        %v2997 = vld [vmem:[%s11 + $0x18] sm:$0xff]
        %v2998 = vld [vmem:[%s11 + $0x20] sm:$0xff]
        %v2999 = vld [vmem:[%s11 + $0x28] sm:$0xff]
        %v3000 = vld [vmem:[%s11 + $0x30] sm:$0xff]
        %v3001 = vld [vmem:[%s11 + $0x38] sm:$0xff]
        %v3002 = vld [vmem:[%s11 + $0x40] sm:$0xff]
        %v3003 = vld [vmem:[%s11 + $0x48] sm:$0xff]
        %v3004 = vld [vmem:[%s11 + $0x50] sm:$0xff]
        %v3005 = vld [vmem:[%s11 + $0x58] sm:$0xff]
        %v3006 = vld [vmem:[%s11 + $0x60] sm:$0xff]
        %v3007 = vld [vmem:[%s11 + $0x68] sm:$0xff]
        %v3008 = vld [vmem:[%s11 + $0x70] sm:$0xff]
        %v3009 = vld [vmem:[%s11 + $0x78] sm:$0xff]
        %3010 = vmatpush.msra.mxu0 %v3009
        %3011 = vmatpush.msra.mxu0 %v3008
        %3012 = vmatpush.msra.mxu0 %v3007
        %3013 = vmatpush.msra.mxu0 %v3006
        %3014 = vmatpush.msra.mxu0 %v3005
        %3015 = vmatpush.msra.mxu0 %v3004
        %3016 = vmatpush.msra.mxu0 %v3003
        %3017 = vmatpush.msra.mxu0 %v3002
        %3018 = vmatpush.msra.mxu0 %v3001
        %3019 = vmatpush.msra.mxu0 %v3000
        %3020 = vmatpush.msra.mxu0 %v2999
        %3021 = vmatpush.msra.mxu0 %v2998
        %3022 = vmatpush.msra.mxu0 %v2997
        %3023 = vmatpush.msra.mxu0 %v2996
        %3024 = vmatpush.msra.mxu0 %v2995
        %3025 = vmatpush.msra.mxu0 %v2994
        %3026 = vmatmul.f32.gmra.mxu0 %v2992
        %v3027 = vpop.f32.mrf.mxu0
        %v3028 = vadd.f32 0.0, %v3027
        %3029 = vdwg.mxu0
        %v3030 = vld [vmem:[#allocation4] sm:$0xff]
        %vm3031 = vcmask 64512
        %v3033 = vsel %vm3031, %v3030, 0
        %3035 = vmatpush.msra.mxu0 0.0
        %3036 = vmatpush.msra.mxu0 0.0
        %3037 = vmatpush.msra.mxu0 0.0
        %3038 = vmatpush.msra.mxu0 0.0
        %3039 = vmatpush.msra.mxu0 0.0
        %3040 = vmatpush.msra.mxu0 0.0
        %3041 = vmatpush.msra.mxu0 0.0
        %3042 = vmatpush.msra.mxu0 0.0
        %3043 = vmatpush.msra.mxu0 0.0
        %3044 = vmatpush.msra.mxu0 0.0
        %3045 = vmatpush.msra.mxu0 0.0
        %3046 = vmatpush.msra.mxu0 0.0
        %3047 = vmatpush.msra.mxu0 0.0
        %3048 = vmatpush.msra.mxu0 0.0
        %3049 = vmatpush.msra.mxu0 0.0
        %3050 = vmatpush.msra.mxu0 %v781
        %3051 = vmatmul.f32.gmra.mxu0 %v3033
        %v3052 = vpop.f32.mrf.mxu0
        %v3053 = vadd.f32 0.0, %v3052
        %3054 = vdwg.mxu0
        %s3055 = scalar_lea.vmem [#allocation4], 8
        %v3056 = vld [vmem:[%s3055] sm:$0xff]
        %v3058 = vsel %vm3031, %v3056, 0
        %3060 = vmatpush.msra.mxu0 0.0
        %3061 = vmatpush.msra.mxu0 0.0
        %3062 = vmatpush.msra.mxu0 0.0
        %3063 = vmatpush.msra.mxu0 0.0
        %3064 = vmatpush.msra.mxu0 0.0
        %3065 = vmatpush.msra.mxu0 0.0
        %3066 = vmatpush.msra.mxu0 0.0
        %3067 = vmatpush.msra.mxu0 0.0
        %3068 = vmatpush.msra.mxu0 0.0
        %3069 = vmatpush.msra.mxu0 0.0
        %3070 = vmatpush.msra.mxu0 0.0
        %3071 = vmatpush.msra.mxu0 0.0
        %3072 = vmatpush.msra.mxu0 0.0
        %3073 = vmatpush.msra.mxu0 0.0
        %3074 = vmatpush.msra.mxu0 0.0
        %3075 = vmatpush.msra.mxu0 %v781
        %3076 = vmatmul.f32.gmra.mxu0 %v3058
        %v3077 = vpop.f32.mrf.mxu0
        %v3078 = vadd.f32 0.0, %v3077
        %3079 = vdwg.mxu0
        %s3080 = scalar_lea.vmem [#allocation4], 16
        %v3081 = vld [vmem:[%s3080] sm:$0xff]
        %v3083 = vsel %vm3031, %v3081, 0
        %3085 = vmatpush.msra.mxu0 0.0
        %3086 = vmatpush.msra.mxu0 0.0
        %3087 = vmatpush.msra.mxu0 0.0
        %3088 = vmatpush.msra.mxu0 0.0
        %3089 = vmatpush.msra.mxu0 0.0
        %3090 = vmatpush.msra.mxu0 0.0
        %3091 = vmatpush.msra.mxu0 0.0
        %3092 = vmatpush.msra.mxu0 0.0
        %3093 = vmatpush.msra.mxu0 0.0
        %3094 = vmatpush.msra.mxu0 0.0
        %3095 = vmatpush.msra.mxu0 0.0
        %3096 = vmatpush.msra.mxu0 0.0
        %3097 = vmatpush.msra.mxu0 0.0
        %3098 = vmatpush.msra.mxu0 0.0
        %3099 = vmatpush.msra.mxu0 0.0
        %3100 = vmatpush.msra.mxu0 %v781
        %3101 = vmatmul.f32.gmra.mxu0 %v3083
        %v3102 = vpop.f32.mrf.mxu0
        %v3103 = vadd.f32 0.0, %v3102
        %3104 = vdwg.mxu0
        %v3105 = vld [vmem:[#allocation21] sm:$0x1]
        %v3106 = vld [vmem:[#allocation9] sm:$0xff]
        %v3107 = vld [vmem:[#allocation9 + $0x8] sm:$0xff]
        %v3108 = vld [vmem:[#allocation9 + $0x10] sm:$0xff]
        %v3109 = vld [vmem:[#allocation9 + $0x18] sm:$0xff]
        %v3110 = vld [vmem:[#allocation9 + $0x20] sm:$0xff]
        %v3111 = vld [vmem:[#allocation9 + $0x28] sm:$0xff]
        %v3112 = vld [vmem:[#allocation9 + $0x30] sm:$0xff]
        %v3113 = vld [vmem:[#allocation9 + $0x38] sm:$0xff]
        %s3114 = scalar_lea.vmem [#allocation9], 64
        %v3115 = vld [vmem:[%s3114] sm:$0xff]
        %v3116 = vld [vmem:[%s3114 + $0x8] sm:$0xff]
        %v3117 = vld [vmem:[%s3114 + $0x10] sm:$0xff]
        %v3118 = vld [vmem:[%s3114 + $0x18] sm:$0xff]
        %v3119 = vld [vmem:[%s3114 + $0x20] sm:$0xff]
        %v3120 = vld [vmem:[%s3114 + $0x28] sm:$0xff]
        %v3121 = vld [vmem:[%s3114 + $0x30] sm:$0xff]
        %v3122 = vld [vmem:[%s3114 + $0x38] sm:$0xff]
        %vm3123 = vcmask 523264
        %v3125 = vsel %vm3123, %v3078, 0
        %3127 = vmatpush.msra.mxu0 0.0
        %3128 = vmatpush.msra.mxu0 0.0
        %3129 = vmatpush.msra.mxu0 0.0
        %3130 = vmatpush.msra.mxu0 0.0
        %3131 = vmatpush.msra.mxu0 0.0
        %3132 = vmatpush.msra.mxu0 0.0
        %3133 = vmatpush.msra.mxu0 0.0
        %3134 = vmatpush.msra.mxu0 0.0
        %3135 = vmatpush.msra.mxu0 %v3122
        %3136 = vmatpush.msra.mxu0 %v3121
        %3137 = vmatpush.msra.mxu0 %v3120
        %3138 = vmatpush.msra.mxu0 %v3119
        %3139 = vmatpush.msra.mxu0 %v3118
        %3140 = vmatpush.msra.mxu0 %v3117
        %3141 = vmatpush.msra.mxu0 %v3116
        %3142 = vmatpush.msra.mxu0 %v3115
        %3143 = vmatmul.f32.gmra.mxu0 %v3125
        %v3144 = vpop.f32.mrf.mxu0
        %v3145 = vadd.f32 0.0, %v3144
        %3146 = vdwg.mxu0
        %v3148 = vsel %vm3123, %v3053, 0
        %3150 = vmatpush.msra.mxu0 0.0
        %3151 = vmatpush.msra.mxu0 0.0
        %3152 = vmatpush.msra.mxu0 0.0
        %3153 = vmatpush.msra.mxu0 0.0
        %3154 = vmatpush.msra.mxu0 0.0
        %3155 = vmatpush.msra.mxu0 0.0
        %3156 = vmatpush.msra.mxu0 0.0
        %3157 = vmatpush.msra.mxu0 0.0
        %3158 = vmatpush.msra.mxu0 %v3113
        %3159 = vmatpush.msra.mxu0 %v3112
        %3160 = vmatpush.msra.mxu0 %v3111
        %3161 = vmatpush.msra.mxu0 %v3110
        %3162 = vmatpush.msra.mxu0 %v3109
        %3163 = vmatpush.msra.mxu0 %v3108
        %3164 = vmatpush.msra.mxu0 %v3107
        %3165 = vmatpush.msra.mxu0 %v3106
        %3166 = vmatmul.f32.gmra.mxu0 %v3148
        %v3167 = vpop.f32.mrf.mxu0
        %v3168 = vadd.f32 %v3145, %v3167
        %3169 = vdwg.mxu0
        %s3170 = scalar_lea.vmem [#allocation9], 128
        %v3171 = vld [vmem:[%s3170] sm:$0xff]
        %v3172 = vld [vmem:[%s3170 + $0x8] sm:$0xff]
        %v3173 = vld [vmem:[%s3170 + $0x10] sm:$0xff]
        %v3174 = vld [vmem:[%s3170 + $0x18] sm:$0xff]
        %v3175 = vld [vmem:[%s3170 + $0x20] sm:$0xff]
        %v3176 = vld [vmem:[%s3170 + $0x28] sm:$0xff]
        %v3177 = vld [vmem:[%s3170 + $0x30] sm:$0xff]
        %v3178 = vld [vmem:[%s3170 + $0x38] sm:$0xff]
        %v3180 = vsel %vm3123, %v3103, 0
        %3182 = vmatpush.msra.mxu0 0.0
        %3183 = vmatpush.msra.mxu0 0.0
        %3184 = vmatpush.msra.mxu0 0.0
        %3185 = vmatpush.msra.mxu0 0.0
        %3186 = vmatpush.msra.mxu0 0.0
        %3187 = vmatpush.msra.mxu0 0.0
        %3188 = vmatpush.msra.mxu0 0.0
        %3189 = vmatpush.msra.mxu0 0.0
        %3190 = vmatpush.msra.mxu0 %v3178
        %3191 = vmatpush.msra.mxu0 %v3177
        %3192 = vmatpush.msra.mxu0 %v3176
        %3193 = vmatpush.msra.mxu0 %v3175
        %3194 = vmatpush.msra.mxu0 %v3174
        %3195 = vmatpush.msra.mxu0 %v3173
        %3196 = vmatpush.msra.mxu0 %v3172
        %3197 = vmatpush.msra.mxu0 %v3171
        %3198 = vmatmul.f32.gmra.mxu0 %v3180
        %v3199 = vpop.f32.mrf.mxu0
        %v3200 = vadd.f32 0.0, %v3199
        %3201 = vdwg.mxu0
        %v3202 = vadd.f32 %v3168, %v3200
        %v3203 = vperm.slane %v3105, 0
        %v3204 = vmul.f32 %v3203, %v3202
        %v3205 = vld [vmem:[#allocation21 + $0x1] sm:$0x1]
        %v3206 = vperm.slane %v3205, 0
        %v3207 = vadd.f32 %v3204, %v3206
        %v3208 = vsub.f32 0.0, %v3207
        %v3209 = vmul.f32 %v3208, 1.442695
        %v3210 = vpow.pop %v3209
        %v3211 = vadd.f32 %v3210, 1.0
        %v3212 = vrcp.pop %v3211
        %v3213 = vld [vmem:[#allocation21 + $0x2] sm:$0x1]
        %s3214 = scalar_lea.vmem [#allocation9], 192
        %v3215 = vld [vmem:[%s3214] sm:$0xff]
        %v3216 = vld [vmem:[%s3214 + $0x8] sm:$0xff]
        %v3217 = vld [vmem:[%s3214 + $0x10] sm:$0xff]
        %v3218 = vld [vmem:[%s3214 + $0x18] sm:$0xff]
        %v3219 = vld [vmem:[%s3214 + $0x20] sm:$0xff]
        %v3220 = vld [vmem:[%s3214 + $0x28] sm:$0xff]
        %v3221 = vld [vmem:[%s3214 + $0x30] sm:$0xff]
        %v3222 = vld [vmem:[%s3214 + $0x38] sm:$0xff]
        %s3223 = scalar_lea.vmem [#allocation9], 256
        %v3224 = vld [vmem:[%s3223] sm:$0xff]
        %v3225 = vld [vmem:[%s3223 + $0x8] sm:$0xff]
        %v3226 = vld [vmem:[%s3223 + $0x10] sm:$0xff]
        %v3227 = vld [vmem:[%s3223 + $0x18] sm:$0xff]
        %v3228 = vld [vmem:[%s3223 + $0x20] sm:$0xff]
        %v3229 = vld [vmem:[%s3223 + $0x28] sm:$0xff]
        %v3230 = vld [vmem:[%s3223 + $0x30] sm:$0xff]
        %v3231 = vld [vmem:[%s3223 + $0x38] sm:$0xff]
        %3232 = vmatpush.msra.mxu0 0.0
        %3233 = vmatpush.msra.mxu0 0.0
        %3234 = vmatpush.msra.mxu0 0.0
        %3235 = vmatpush.msra.mxu0 0.0
        %3236 = vmatpush.msra.mxu0 0.0
        %3237 = vmatpush.msra.mxu0 0.0
        %3238 = vmatpush.msra.mxu0 0.0
        %3239 = vmatpush.msra.mxu0 0.0
        %3240 = vmatpush.msra.mxu0 %v3231
        %3241 = vmatpush.msra.mxu0 %v3230
        %3242 = vmatpush.msra.mxu0 %v3229
        %3243 = vmatpush.msra.mxu0 %v3228
        %3244 = vmatpush.msra.mxu0 %v3227
        %3245 = vmatpush.msra.mxu0 %v3226
        %3246 = vmatpush.msra.mxu0 %v3225
        %3247 = vmatpush.msra.mxu0 %v3224
        %3248 = vmatmul.f32.gmra.mxu0 %v3125
        %v3249 = vpop.f32.mrf.mxu0
        %v3250 = vadd.f32 0.0, %v3249
        %3251 = vdwg.mxu0
        %3252 = vmatpush.msra.mxu0 0.0
        %3253 = vmatpush.msra.mxu0 0.0
        %3254 = vmatpush.msra.mxu0 0.0
        %3255 = vmatpush.msra.mxu0 0.0
        %3256 = vmatpush.msra.mxu0 0.0
        %3257 = vmatpush.msra.mxu0 0.0
        %3258 = vmatpush.msra.mxu0 0.0
        %3259 = vmatpush.msra.mxu0 0.0
        %3260 = vmatpush.msra.mxu0 %v3222
        %3261 = vmatpush.msra.mxu0 %v3221
        %3262 = vmatpush.msra.mxu0 %v3220
        %3263 = vmatpush.msra.mxu0 %v3219
        %3264 = vmatpush.msra.mxu0 %v3218
        %3265 = vmatpush.msra.mxu0 %v3217
        %3266 = vmatpush.msra.mxu0 %v3216
        %3267 = vmatpush.msra.mxu0 %v3215
        %3268 = vmatmul.f32.gmra.mxu0 %v3148
        %v3269 = vpop.f32.mrf.mxu0
        %v3270 = vadd.f32 %v3250, %v3269
        %3271 = vdwg.mxu0
        %s3272 = scalar_lea.vmem [#allocation9], 320
        %v3273 = vld [vmem:[%s3272] sm:$0xff]
        %v3274 = vld [vmem:[%s3272 + $0x8] sm:$0xff]
        %v3275 = vld [vmem:[%s3272 + $0x10] sm:$0xff]
        %v3276 = vld [vmem:[%s3272 + $0x18] sm:$0xff]
        %v3277 = vld [vmem:[%s3272 + $0x20] sm:$0xff]
        %v3278 = vld [vmem:[%s3272 + $0x28] sm:$0xff]
        %v3279 = vld [vmem:[%s3272 + $0x30] sm:$0xff]
        %v3280 = vld [vmem:[%s3272 + $0x38] sm:$0xff]
        %3281 = vmatpush.msra.mxu0 0.0
        %3282 = vmatpush.msra.mxu0 0.0
        %3283 = vmatpush.msra.mxu0 0.0
        %3284 = vmatpush.msra.mxu0 0.0
        %3285 = vmatpush.msra.mxu0 0.0
        %3286 = vmatpush.msra.mxu0 0.0
        %3287 = vmatpush.msra.mxu0 0.0
        %3288 = vmatpush.msra.mxu0 0.0
        %3289 = vmatpush.msra.mxu0 %v3280
        %3290 = vmatpush.msra.mxu0 %v3279
        %3291 = vmatpush.msra.mxu0 %v3278
        %3292 = vmatpush.msra.mxu0 %v3277
        %3293 = vmatpush.msra.mxu0 %v3276
        %3294 = vmatpush.msra.mxu0 %v3275
        %3295 = vmatpush.msra.mxu0 %v3274
        %3296 = vmatpush.msra.mxu0 %v3273
        %3297 = vmatmul.f32.gmra.mxu0 %v3180
        %v3298 = vpop.f32.mrf.mxu0
        %v3299 = vadd.f32 0.0, %v3298
        %3300 = vdwg.mxu0
        %v3301 = vadd.f32 %v3270, %v3299
        %v3302 = vperm.slane %v3213, 0
        %v3303 = vmul.f32 %v3302, %v3301
        %v3304 = vld [vmem:[#allocation21 + $0x3] sm:$0x1]
        %v3305 = vperm.slane %v3304, 0
        %v3306 = vadd.f32 %v3303, %v3305
        %v3307 = vld [vmem:[#allocation13] sm:$0xff]
        %v3308 = vld [vmem:[#allocation13 + $0x8] sm:$0xff]
        %v3309 = vld [vmem:[#allocation13 + $0x10] sm:$0xff]
        %v3310 = vld [vmem:[#allocation13 + $0x18] sm:$0xff]
        %v3311 = vld [vmem:[#allocation13 + $0x20] sm:$0xff]
        %v3312 = vld [vmem:[#allocation13 + $0x28] sm:$0xff]
        %v3313 = vld [vmem:[#allocation13 + $0x30] sm:$0xff]
        %v3314 = vld [vmem:[#allocation13 + $0x38] sm:$0xff]
        %v3315 = vld [vmem:[#allocation21 + $0x4] sm:$0x1]
        %v3316 = vperm.slane %v3315, 0
        %v3318 = vsel %vm3123, %v3306, 0
        %3320 = vmatpush.msra.mxu0 0.0
        %3321 = vmatpush.msra.mxu0 0.0
        %3322 = vmatpush.msra.mxu0 0.0
        %3323 = vmatpush.msra.mxu0 0.0
        %3324 = vmatpush.msra.mxu0 0.0
        %3325 = vmatpush.msra.mxu0 0.0
        %3326 = vmatpush.msra.mxu0 0.0
        %3327 = vmatpush.msra.mxu0 0.0
        %3328 = vmatpush.msra.mxu0 %v3314
        %3329 = vmatpush.msra.mxu0 %v3313
        %3330 = vmatpush.msra.mxu0 %v3312
        %3331 = vmatpush.msra.mxu0 %v3311
        %3332 = vmatpush.msra.mxu0 %v3310
        %3333 = vmatpush.msra.mxu0 %v3309
        %3334 = vmatpush.msra.mxu0 %v3308
        %3335 = vmatpush.msra.mxu0 %v3307
        %3336 = vmatmul.f32.gmra.mxu0 %v3318
        %v3337 = vpop.f32.mrf.mxu0
        %v3338 = vadd.f32 %v3316, %v3337
        %3339 = vdwg.mxu0
        %v3340 = vsub.f32 0.0, %v3338
        %v3341 = vmul.f32 %v3340, 1.442695
        %v3342 = vpow.pop %v3341
        %v3343 = vadd.f32 %v3342, 1.0
        %v3344 = vrcp.pop %v3343
        %v3345 = vmul.f32 %v3028, %v3344
        %v3346 = vld [vmem:[%s12] sm:$0xff]
        %v3347 = vld [vmem:[%s12 + $0x8] sm:$0xff]
        %v3348 = vld [vmem:[%s12 + $0x10] sm:$0xff]
        %v3349 = vld [vmem:[%s12 + $0x18] sm:$0xff]
        %v3351 = vsel %vm3031, %v3346, 0
        %v3354 = vsel %vm3031, %v3347, 0
        %v3357 = vsel %vm3031, %v3348, 0
        %v3360 = vsel %vm3031, %v3349, 0
        %3362 = vmatpush.msra.mxu0 0.0
        %3363 = vmatpush.msra.mxu0 0.0
        %3364 = vmatpush.msra.mxu0 0.0
        %3365 = vmatpush.msra.mxu0 0.0
        %3366 = vmatpush.msra.mxu0 0.0
        %3367 = vmatpush.msra.mxu0 0.0
        %3368 = vmatpush.msra.mxu0 0.0
        %3369 = vmatpush.msra.mxu0 0.0
        %3370 = vmatpush.msra.mxu0 0.0
        %3371 = vmatpush.msra.mxu0 0.0
        %3372 = vmatpush.msra.mxu0 0.0
        %3373 = vmatpush.msra.mxu0 0.0
        %3374 = vmatpush.msra.mxu0 0.0
        %3375 = vmatpush.msra.mxu0 0.0
        %3376 = vmatpush.msra.mxu0 0.0
        %3377 = vmatpush.msra.mxu0 %v3212
        %3378 = vmatmul.f32.gmra.mxu0 %v3351
        %v3379 = vpop.f32.mrf.mxu0
        %v3380 = vadd.f32 0.0, %v3379
        %3381 = vmatmul.f32.gmra.mxu0 %v3354
        %v3382 = vpop.f32.mrf.mxu0
        %v3383 = vadd.f32 0.0, %v3382
        %3384 = vmatmul.f32.gmra.mxu0 %v3357
        %v3385 = vpop.f32.mrf.mxu0
        %v3386 = vadd.f32 0.0, %v3385
        %3387 = vmatmul.f32.gmra.mxu0 %v3360
        %v3388 = vpop.f32.mrf.mxu0
        %v3389 = vadd.f32 0.0, %v3388
        %3390 = vdwg.mxu0
        %v3391 = vld [vmem:[#allocation16] sm:$0xff]
        %v3392 = vld [vmem:[#allocation16 + $0x8] sm:$0xff]
        %v3393 = vld [vmem:[#allocation16 + $0x10] sm:$0xff]
        %v3394 = vld [vmem:[#allocation16 + $0x18] sm:$0xff]
        %v3395 = vld [vmem:[#allocation16 + $0x20] sm:$0xff]
        %v3396 = vld [vmem:[#allocation16 + $0x28] sm:$0xff]
        %v3397 = vld [vmem:[#allocation16 + $0x30] sm:$0xff]
        %v3398 = vld [vmem:[#allocation16 + $0x38] sm:$0xff]
        %v3399 = vld [vmem:[#allocation16 + $0x40] sm:$0xff]
        %v3400 = vld [vmem:[#allocation16 + $0x48] sm:$0xff]
        %v3401 = vld [vmem:[#allocation16 + $0x50] sm:$0xff]
        %v3402 = vld [vmem:[#allocation16 + $0x58] sm:$0xff]
        %v3403 = vld [vmem:[#allocation16 + $0x60] sm:$0xff]
        %v3404 = vld [vmem:[#allocation16 + $0x68] sm:$0xff]
        %v3405 = vld [vmem:[#allocation16 + $0x70] sm:$0xff]
        %v3406 = vld [vmem:[#allocation16 + $0x78] sm:$0xff]
        %v3408 = vsel %vm3123, %v3380, 0
        %v3411 = vsel %vm3123, %v3383, 0
        %v3414 = vsel %vm3123, %v3386, 0
        %v3417 = vsel %vm3123, %v3389, 0
        %3419 = vmatpush.msra.mxu0 0.0
        %3420 = vmatpush.msra.mxu0 0.0
        %3421 = vmatpush.msra.mxu0 0.0
        %3422 = vmatpush.msra.mxu0 0.0
        %3423 = vmatpush.msra.mxu0 0.0
        %3424 = vmatpush.msra.mxu0 0.0
        %3425 = vmatpush.msra.mxu0 0.0
        %3426 = vmatpush.msra.mxu0 0.0
        %3427 = vmatpush.msra.mxu0 %v3405
        %3428 = vmatpush.msra.mxu0 %v3403
        %3429 = vmatpush.msra.mxu0 %v3401
        %3430 = vmatpush.msra.mxu0 %v3399
        %3431 = vmatpush.msra.mxu0 %v3397
        %3432 = vmatpush.msra.mxu0 %v3395
        %3433 = vmatpush.msra.mxu0 %v3393
        %3434 = vmatpush.msra.mxu0 %v3391
        %3435 = vmatmul.f32.gmra.mxu0 %v3408
        %v3436 = vpop.f32.mrf.mxu0
        %v3437 = vadd.f32 0.0, %v3436
        %3438 = vmatmul.f32.gmra.mxu0 %v3411
        %v3439 = vpop.f32.mrf.mxu0
        %v3440 = vadd.f32 0.0, %v3439
        %3441 = vmatmul.f32.gmra.mxu0 %v3414
        %v3442 = vpop.f32.mrf.mxu0
        %v3443 = vadd.f32 0.0, %v3442
        %3444 = vmatmul.f32.gmra.mxu0 %v3417
        %v3445 = vpop.f32.mrf.mxu0
        %v3446 = vadd.f32 0.0, %v3445
        %3447 = vdwg.mxu0
        %3448 = vmatpush.msra.mxu0 0.0
        %3449 = vmatpush.msra.mxu0 0.0
        %3450 = vmatpush.msra.mxu0 0.0
        %3451 = vmatpush.msra.mxu0 0.0
        %3452 = vmatpush.msra.mxu0 0.0
        %3453 = vmatpush.msra.mxu0 0.0
        %3454 = vmatpush.msra.mxu0 0.0
        %3455 = vmatpush.msra.mxu0 0.0
        %3456 = vmatpush.msra.mxu0 %v3406
        %3457 = vmatpush.msra.mxu0 %v3404
        %3458 = vmatpush.msra.mxu0 %v3402
        %3459 = vmatpush.msra.mxu0 %v3400
        %3460 = vmatpush.msra.mxu0 %v3398
        %3461 = vmatpush.msra.mxu0 %v3396
        %3462 = vmatpush.msra.mxu0 %v3394
        %3463 = vmatpush.msra.mxu0 %v3392
        %3464 = vmatmul.f32.gmra.mxu0 %v3408
        %v3465 = vpop.f32.mrf.mxu0
        %v3466 = vadd.f32 0.0, %v3465
        %3467 = vmatmul.f32.gmra.mxu0 %v3411
        %v3468 = vpop.f32.mrf.mxu0
        %v3469 = vadd.f32 0.0, %v3468
        %3470 = vmatmul.f32.gmra.mxu0 %v3414
        %v3471 = vpop.f32.mrf.mxu0
        %v3472 = vadd.f32 0.0, %v3471
        %3473 = vmatmul.f32.gmra.mxu0 %v3417
        %v3474 = vpop.f32.mrf.mxu0
        %v3475 = vadd.f32 0.0, %v3474
        %3476 = vdwg.mxu0
        %3477 = vmatpush.msra.mxu0 0.0
        %3478 = vmatpush.msra.mxu0 0.0
        %3479 = vmatpush.msra.mxu0 0.0
        %3480 = vmatpush.msra.mxu0 0.0
        %3481 = vmatpush.msra.mxu0 0.0
        %3482 = vmatpush.msra.mxu0 0.0
        %3483 = vmatpush.msra.mxu0 0.0
        %3484 = vmatpush.msra.mxu0 0.0
        %3485 = vmatpush.msra.mxu0 0.0
        %3486 = vmatpush.msra.mxu0 0.0
        %3487 = vmatpush.msra.mxu0 0.0
        %3488 = vmatpush.msra.mxu0 0.0
        %3489 = vmatpush.msra.mxu0 0.0
        %3490 = vmatpush.msra.mxu0 0.0
        %3491 = vmatpush.msra.mxu0 0.0
        %3492 = vmatpush.msra.mxu0 %v3345
        %3493 = vmatmul.f32.gmra.mxu0 %v3351
        %v3494 = vpop.f32.mrf.mxu0
        %v3495 = vadd.f32 0.0, %v3494
        %3496 = vmatmul.f32.gmra.mxu0 %v3354
        %v3497 = vpop.f32.mrf.mxu0
        %v3498 = vadd.f32 0.0, %v3497
        %3499 = vmatmul.f32.gmra.mxu0 %v3357
        %v3500 = vpop.f32.mrf.mxu0
        %v3501 = vadd.f32 0.0, %v3500
        %3502 = vmatmul.f32.gmra.mxu0 %v3360
        %v3503 = vpop.f32.mrf.mxu0
        %v3504 = vadd.f32 0.0, %v3503
        %3505 = vdwg.mxu0
        %v3507 = vsel %vm3123, %v3495, 0
        %v3510 = vsel %vm3123, %v3498, 0
        %v3513 = vsel %vm3123, %v3501, 0
        %v3516 = vsel %vm3123, %v3504, 0
        %3518 = vmatpush.msra.mxu0 0.0
        %3519 = vmatpush.msra.mxu0 0.0
        %3520 = vmatpush.msra.mxu0 0.0
        %3521 = vmatpush.msra.mxu0 0.0
        %3522 = vmatpush.msra.mxu0 0.0
        %3523 = vmatpush.msra.mxu0 0.0
        %3524 = vmatpush.msra.mxu0 0.0
        %3525 = vmatpush.msra.mxu0 0.0
        %3526 = vmatpush.msra.mxu0 %v3405
        %3527 = vmatpush.msra.mxu0 %v3403
        %3528 = vmatpush.msra.mxu0 %v3401
        %3529 = vmatpush.msra.mxu0 %v3399
        %3530 = vmatpush.msra.mxu0 %v3397
        %3531 = vmatpush.msra.mxu0 %v3395
        %3532 = vmatpush.msra.mxu0 %v3393
        %3533 = vmatpush.msra.mxu0 %v3391
        %3534 = vmatmul.f32.gmra.mxu0 %v3507
        %v3535 = vpop.f32.mrf.mxu0
        %v3536 = vadd.f32 0.0, %v3535
        %3537 = vmatmul.f32.gmra.mxu0 %v3510
        %v3538 = vpop.f32.mrf.mxu0
        %v3539 = vadd.f32 0.0, %v3538
        %3540 = vmatmul.f32.gmra.mxu0 %v3513
        %v3541 = vpop.f32.mrf.mxu0
        %v3542 = vadd.f32 0.0, %v3541
        %3543 = vmatmul.f32.gmra.mxu0 %v3516
        %v3544 = vpop.f32.mrf.mxu0
        %v3545 = vadd.f32 0.0, %v3544
        %3546 = vdwg.mxu0
        %3547 = vmatpush.msra.mxu0 0.0
        %3548 = vmatpush.msra.mxu0 0.0
        %3549 = vmatpush.msra.mxu0 0.0
        %3550 = vmatpush.msra.mxu0 0.0
        %3551 = vmatpush.msra.mxu0 0.0
        %3552 = vmatpush.msra.mxu0 0.0
        %3553 = vmatpush.msra.mxu0 0.0
        %3554 = vmatpush.msra.mxu0 0.0
        %3555 = vmatpush.msra.mxu0 %v3406
        %3556 = vmatpush.msra.mxu0 %v3404
        %3557 = vmatpush.msra.mxu0 %v3402
        %3558 = vmatpush.msra.mxu0 %v3400
        %3559 = vmatpush.msra.mxu0 %v3398
        %3560 = vmatpush.msra.mxu0 %v3396
        %3561 = vmatpush.msra.mxu0 %v3394
        %3562 = vmatpush.msra.mxu0 %v3392
        %3563 = vmatmul.f32.gmra.mxu0 %v3507
        %v3564 = vpop.f32.mrf.mxu0
        %v3565 = vadd.f32 0.0, %v3564
        %3566 = vmatmul.f32.gmra.mxu0 %v3510
        %v3567 = vpop.f32.mrf.mxu0
        %v3568 = vadd.f32 0.0, %v3567
        %3569 = vmatmul.f32.gmra.mxu0 %v3513
        %v3570 = vpop.f32.mrf.mxu0
        %v3571 = vadd.f32 0.0, %v3570
        %3572 = vmatmul.f32.gmra.mxu0 %v3516
        %v3573 = vpop.f32.mrf.mxu0
        %v3574 = vadd.f32 0.0, %v3573
        %3575 = vdwg.mxu0
        %v3576 = vmul.f32 %v2551, %v3437
        %v3577 = vmul.f32 %v2552, %v3466
        %v3578 = vmul.f32 %v2553, %v3440
        %v3579 = vmul.f32 %v2554, %v3469
        %v3580 = vmul.f32 %v2555, %v3443
        %v3581 = vmul.f32 %v2556, %v3472
        %v3582 = vmul.f32 %v2557, %v3446
        %v3583 = vmul.f32 %v2558, %v3475
        %v3584 = vadd.f32 %v3576, %v3536
        %v3585 = vadd.f32 %v3577, %v3565
        %v3586 = vadd.f32 %v3578, %v3539
        %v3587 = vadd.f32 %v3579, %v3568
        %v3588 = vadd.f32 %v3580, %v3542
        %v3589 = vadd.f32 %v3581, %v3571
        %v3590 = vadd.f32 %v3582, %v3545
        %v3591 = vadd.f32 %v3583, %v3574
        %s3592 = scalar_lea.vmem [#allocation18], 6
        %v3593 = vld [vmem:[%s3592] ss:$8 sm:$0x3]
        %3594 = vmatpush.msra.mxu0 0.0
        %3595 = vmatpush.msra.mxu0 0.0
        %3596 = vmatpush.msra.mxu0 0.0
        %3597 = vmatpush.msra.mxu0 0.0
        %3598 = vmatpush.msra.mxu0 0.0
        %3599 = vmatpush.msra.mxu0 0.0
        %3600 = vmatpush.msra.mxu0 0.0
        %3601 = vmatpush.msra.mxu0 0.0
        %3602 = vmatpush.msra.mxu0 0.0
        %3603 = vmatpush.msra.mxu0 0.0
        %3604 = vmatpush.msra.mxu0 0.0
        %3605 = vmatpush.msra.mxu0 0.0
        %3606 = vmatpush.msra.mxu0 %v3590
        %3607 = vmatpush.msra.mxu0 %v3588
        %3608 = vmatpush.msra.mxu0 %v3586
        %3609 = vmatpush.msra.mxu0 %v3584
        %3610 = vmatmul.f32.gmra.mxu0 %v789
        %v3611 = vpop.f32.mrf.mxu0
        %v3612 = vadd.f32 0.0, %v3611
        %3613 = vmatmul.f32.gmra.mxu0 %v792
        %v3614 = vpop.f32.mrf.mxu0
        %v3615 = vadd.f32 0.0, %v3614
        %3616 = vmatmul.f32.gmra.mxu0 %v795
        %v3617 = vpop.f32.mrf.mxu0
        %v3618 = vadd.f32 0.0, %v3617
        %3619 = vmatmul.f32.gmra.mxu0 %v798
        %v3620 = vpop.f32.mrf.mxu0
        %v3621 = vadd.f32 0.0, %v3620
        %3622 = vdwg.mxu0
        %3623 = vmatpush.msra.mxu0 0.0
        %3624 = vmatpush.msra.mxu0 0.0
        %3625 = vmatpush.msra.mxu0 0.0
        %3626 = vmatpush.msra.mxu0 0.0
        %3627 = vmatpush.msra.mxu0 0.0
        %3628 = vmatpush.msra.mxu0 0.0
        %3629 = vmatpush.msra.mxu0 0.0
        %3630 = vmatpush.msra.mxu0 0.0
        %3631 = vmatpush.msra.mxu0 0.0
        %3632 = vmatpush.msra.mxu0 0.0
        %3633 = vmatpush.msra.mxu0 0.0
        %3634 = vmatpush.msra.mxu0 0.0
        %3635 = vmatpush.msra.mxu0 %v3591
        %3636 = vmatpush.msra.mxu0 %v3589
        %3637 = vmatpush.msra.mxu0 %v3587
        %3638 = vmatpush.msra.mxu0 %v3585
        %3639 = vmatmul.f32.gmra.mxu0 %v789
        %v3640 = vpop.f32.mrf.mxu0
        %v3641 = vadd.f32 0.0, %v3640
        %3642 = vmatmul.f32.gmra.mxu0 %v792
        %v3643 = vpop.f32.mrf.mxu0
        %v3644 = vadd.f32 0.0, %v3643
        %3645 = vmatmul.f32.gmra.mxu0 %v795
        %v3646 = vpop.f32.mrf.mxu0
        %v3647 = vadd.f32 0.0, %v3646
        %3648 = vmatmul.f32.gmra.mxu0 %v798
        %v3649 = vpop.f32.mrf.mxu0
        %v3650 = vadd.f32 0.0, %v3649
        %3651 = vdwg.mxu0
        %3652 = vmatpush.msra.mxu0 0.0
        %3653 = vmatpush.msra.mxu0 0.0
        %3654 = vmatpush.msra.mxu0 0.0
        %3655 = vmatpush.msra.mxu0 0.0
        %3656 = vmatpush.msra.mxu0 0.0
        %3657 = vmatpush.msra.mxu0 0.0
        %3658 = vmatpush.msra.mxu0 0.0
        %3659 = vmatpush.msra.mxu0 0.0
        %3660 = vmatpush.msra.mxu0 0.0
        %3661 = vmatpush.msra.mxu0 0.0
        %3662 = vmatpush.msra.mxu0 0.0
        %3663 = vmatpush.msra.mxu0 0.0
        %3664 = vmatpush.msra.mxu0 %v3590
        %3665 = vmatpush.msra.mxu0 %v3588
        %3666 = vmatpush.msra.mxu0 %v3586
        %3667 = vmatpush.msra.mxu0 %v3584
        %3668 = vmatmul.f32.gmra.mxu0 %v864
        %v3669 = vpop.f32.mrf.mxu0
        %v3670 = vadd.f32 0.0, %v3669
        %3671 = vmatmul.f32.gmra.mxu0 %v867
        %v3672 = vpop.f32.mrf.mxu0
        %v3673 = vadd.f32 0.0, %v3672
        %3674 = vmatmul.f32.gmra.mxu0 %v870
        %v3675 = vpop.f32.mrf.mxu0
        %v3676 = vadd.f32 0.0, %v3675
        %3677 = vmatmul.f32.gmra.mxu0 %v873
        %v3678 = vpop.f32.mrf.mxu0
        %v3679 = vadd.f32 0.0, %v3678
        %3680 = vdwg.mxu0
        %3681 = vmatpush.msra.mxu0 0.0
        %3682 = vmatpush.msra.mxu0 0.0
        %3683 = vmatpush.msra.mxu0 0.0
        %3684 = vmatpush.msra.mxu0 0.0
        %3685 = vmatpush.msra.mxu0 0.0
        %3686 = vmatpush.msra.mxu0 0.0
        %3687 = vmatpush.msra.mxu0 0.0
        %3688 = vmatpush.msra.mxu0 0.0
        %3689 = vmatpush.msra.mxu0 0.0
        %3690 = vmatpush.msra.mxu0 0.0
        %3691 = vmatpush.msra.mxu0 0.0
        %3692 = vmatpush.msra.mxu0 0.0
        %3693 = vmatpush.msra.mxu0 %v3591
        %3694 = vmatpush.msra.mxu0 %v3589
        %3695 = vmatpush.msra.mxu0 %v3587
        %3696 = vmatpush.msra.mxu0 %v3585
        %3697 = vmatmul.f32.gmra.mxu0 %v864
        %v3698 = vpop.f32.mrf.mxu0
        %v3699 = vadd.f32 0.0, %v3698
        %3700 = vmatmul.f32.gmra.mxu0 %v867
        %v3701 = vpop.f32.mrf.mxu0
        %v3702 = vadd.f32 0.0, %v3701
        %3703 = vmatmul.f32.gmra.mxu0 %v870
        %v3704 = vpop.f32.mrf.mxu0
        %v3705 = vadd.f32 0.0, %v3704
        %3706 = vmatmul.f32.gmra.mxu0 %v873
        %v3707 = vpop.f32.mrf.mxu0
        %v3708 = vadd.f32 0.0, %v3707
        %3709 = vdwg.mxu0
        %3710 = vmatpush.msra.mxu0 0.0
        %3711 = vmatpush.msra.mxu0 0.0
        %3712 = vmatpush.msra.mxu0 0.0
        %3713 = vmatpush.msra.mxu0 0.0
        %3714 = vmatpush.msra.mxu0 0.0
        %3715 = vmatpush.msra.mxu0 0.0
        %3716 = vmatpush.msra.mxu0 0.0
        %3717 = vmatpush.msra.mxu0 0.0
        %3718 = vmatpush.msra.mxu0 0.0
        %3719 = vmatpush.msra.mxu0 0.0
        %3720 = vmatpush.msra.mxu0 0.0
        %3721 = vmatpush.msra.mxu0 0.0
        %3722 = vmatpush.msra.mxu0 %v3590
        %3723 = vmatpush.msra.mxu0 %v3588
        %3724 = vmatpush.msra.mxu0 %v3586
        %3725 = vmatpush.msra.mxu0 %v3584
        %3726 = vmatmul.f32.gmra.mxu0 %v939
        %v3727 = vpop.f32.mrf.mxu0
        %v3728 = vadd.f32 0.0, %v3727
        %3729 = vmatmul.f32.gmra.mxu0 %v942
        %v3730 = vpop.f32.mrf.mxu0
        %v3731 = vadd.f32 0.0, %v3730
        %3732 = vmatmul.f32.gmra.mxu0 %v945
        %v3733 = vpop.f32.mrf.mxu0
        %v3734 = vadd.f32 0.0, %v3733
        %3735 = vmatmul.f32.gmra.mxu0 %v948
        %v3736 = vpop.f32.mrf.mxu0
        %v3737 = vadd.f32 0.0, %v3736
        %3738 = vdwg.mxu0
        %3739 = vmatpush.msra.mxu0 0.0
        %3740 = vmatpush.msra.mxu0 0.0
        %3741 = vmatpush.msra.mxu0 0.0
        %3742 = vmatpush.msra.mxu0 0.0
        %3743 = vmatpush.msra.mxu0 0.0
        %3744 = vmatpush.msra.mxu0 0.0
        %3745 = vmatpush.msra.mxu0 0.0
        %3746 = vmatpush.msra.mxu0 0.0
        %3747 = vmatpush.msra.mxu0 0.0
        %3748 = vmatpush.msra.mxu0 0.0
        %3749 = vmatpush.msra.mxu0 0.0
        %3750 = vmatpush.msra.mxu0 0.0
        %3751 = vmatpush.msra.mxu0 %v3591
        %3752 = vmatpush.msra.mxu0 %v3589
        %3753 = vmatpush.msra.mxu0 %v3587
        %3754 = vmatpush.msra.mxu0 %v3585
        %3755 = vmatmul.f32.gmra.mxu0 %v939
        %v3756 = vpop.f32.mrf.mxu0
        %v3757 = vadd.f32 0.0, %v3756
        %3758 = vmatmul.f32.gmra.mxu0 %v942
        %v3759 = vpop.f32.mrf.mxu0
        %v3760 = vadd.f32 0.0, %v3759
        %3761 = vmatmul.f32.gmra.mxu0 %v945
        %v3762 = vpop.f32.mrf.mxu0
        %v3763 = vadd.f32 0.0, %v3762
        %3764 = vmatmul.f32.gmra.mxu0 %v948
        %v3765 = vpop.f32.mrf.mxu0
        %v3766 = vadd.f32 0.0, %v3765
        %3767 = vdwg.mxu0
        %s3768 = scalar_lea.vmem [#allocation7], 3072
        %v3769 = vld [vmem:[%s3768] sm:$0xff]
        %v3770 = vld [vmem:[%s3768 + $0x8] sm:$0xff]
        %v3771 = vld [vmem:[%s3768 + $0x10] sm:$0xff]
        %v3772 = vld [vmem:[%s3768 + $0x18] sm:$0xff]
        %v3773 = vld [vmem:[%s3768 + $0x20] sm:$0xff]
        %v3774 = vld [vmem:[%s3768 + $0x28] sm:$0xff]
        %v3775 = vld [vmem:[%s3768 + $0x30] sm:$0xff]
        %v3776 = vld [vmem:[%s3768 + $0x38] sm:$0xff]
        %v3777 = vld [vmem:[%s3768 + $0x40] sm:$0xff]
        %v3778 = vld [vmem:[%s3768 + $0x48] sm:$0xff]
        %v3779 = vld [vmem:[%s3768 + $0x50] sm:$0xff]
        %v3780 = vld [vmem:[%s3768 + $0x58] sm:$0xff]
        %v3781 = vld [vmem:[%s3768 + $0x60] sm:$0xff]
        %v3782 = vld [vmem:[%s3768 + $0x68] sm:$0xff]
        %v3783 = vld [vmem:[%s3768 + $0x70] sm:$0xff]
        %v3784 = vld [vmem:[%s3768 + $0x78] sm:$0xff]
        %v3785 = vld [vmem:[%s3768 + $0x80] sm:$0xff]
        %v3786 = vld [vmem:[%s3768 + $0x88] sm:$0xff]
        %v3787 = vld [vmem:[%s3768 + $0x90] sm:$0xff]
        %v3788 = vld [vmem:[%s3768 + $0x98] sm:$0xff]
        %v3789 = vld [vmem:[%s3768 + $0xa0] sm:$0xff]
        %v3790 = vld [vmem:[%s3768 + $0xa8] sm:$0xff]
        %v3791 = vld [vmem:[%s3768 + $0xb0] sm:$0xff]
        %v3792 = vld [vmem:[%s3768 + $0xb8] sm:$0xff]
        %v3793 = vld [vmem:[%s3768 + $0xc0] sm:$0xff]
        %v3794 = vld [vmem:[%s3768 + $0xc8] sm:$0xff]
        %v3795 = vld [vmem:[%s3768 + $0xd0] sm:$0xff]
        %v3796 = vld [vmem:[%s3768 + $0xd8] sm:$0xff]
        %v3797 = vld [vmem:[%s3768 + $0xe0] sm:$0xff]
        %v3798 = vld [vmem:[%s3768 + $0xe8] sm:$0xff]
        %v3799 = vld [vmem:[%s3768 + $0xf0] sm:$0xff]
        %v3800 = vld [vmem:[%s3768 + $0xf8] sm:$0xff]
        %v3801 = vld [vmem:[%s3768 + $0x100] sm:$0xff]
        %v3802 = vld [vmem:[%s3768 + $0x108] sm:$0xff]
        %v3803 = vld [vmem:[%s3768 + $0x110] sm:$0xff]
        %v3804 = vld [vmem:[%s3768 + $0x118] sm:$0xff]
        %v3805 = vld [vmem:[%s3768 + $0x120] sm:$0xff]
        %v3806 = vld [vmem:[%s3768 + $0x128] sm:$0xff]
        %v3807 = vld [vmem:[%s3768 + $0x130] sm:$0xff]
        %v3808 = vld [vmem:[%s3768 + $0x138] sm:$0xff]
        %v3809 = vld [vmem:[%s3768 + $0x140] sm:$0xff]
        %v3810 = vld [vmem:[%s3768 + $0x148] sm:$0xff]
        %v3811 = vld [vmem:[%s3768 + $0x150] sm:$0xff]
        %v3812 = vld [vmem:[%s3768 + $0x158] sm:$0xff]
        %v3813 = vld [vmem:[%s3768 + $0x160] sm:$0xff]
        %v3814 = vld [vmem:[%s3768 + $0x168] sm:$0xff]
        %v3815 = vld [vmem:[%s3768 + $0x170] sm:$0xff]
        %v3816 = vld [vmem:[%s3768 + $0x178] sm:$0xff]
        %v3817 = vld [vmem:[%s3768 + $0x180] sm:$0xff]
        %v3818 = vld [vmem:[%s3768 + $0x188] sm:$0xff]
        %v3819 = vld [vmem:[%s3768 + $0x190] sm:$0xff]
        %v3820 = vld [vmem:[%s3768 + $0x198] sm:$0xff]
        %v3821 = vld [vmem:[%s3768 + $0x1a0] sm:$0xff]
        %v3822 = vld [vmem:[%s3768 + $0x1a8] sm:$0xff]
        %v3823 = vld [vmem:[%s3768 + $0x1b0] sm:$0xff]
        %v3824 = vld [vmem:[%s3768 + $0x1b8] sm:$0xff]
        %v3825 = vld [vmem:[%s3768 + $0x1c0] sm:$0xff]
        %v3826 = vld [vmem:[%s3768 + $0x1c8] sm:$0xff]
        %v3827 = vld [vmem:[%s3768 + $0x1d0] sm:$0xff]
        %v3828 = vld [vmem:[%s3768 + $0x1d8] sm:$0xff]
        %v3829 = vld [vmem:[%s3768 + $0x1e0] sm:$0xff]
        %v3830 = vld [vmem:[%s3768 + $0x1e8] sm:$0xff]
        %v3831 = vld [vmem:[%s3768 + $0x1f0] sm:$0xff]
        %v3832 = vld [vmem:[%s3768 + $0x1f8] sm:$0xff]
        %s3833 = scalar_lea.vmem [#allocation7], 3584
        %v3834 = vld [vmem:[%s3833] sm:$0xff]
        %v3835 = vld [vmem:[%s3833 + $0x8] sm:$0xff]
        %v3836 = vld [vmem:[%s3833 + $0x10] sm:$0xff]
        %v3837 = vld [vmem:[%s3833 + $0x18] sm:$0xff]
        %v3838 = vld [vmem:[%s3833 + $0x20] sm:$0xff]
        %v3839 = vld [vmem:[%s3833 + $0x28] sm:$0xff]
        %v3840 = vld [vmem:[%s3833 + $0x30] sm:$0xff]
        %v3841 = vld [vmem:[%s3833 + $0x38] sm:$0xff]
        %v3842 = vld [vmem:[%s3833 + $0x40] sm:$0xff]
        %v3843 = vld [vmem:[%s3833 + $0x48] sm:$0xff]
        %v3844 = vld [vmem:[%s3833 + $0x50] sm:$0xff]
        %v3845 = vld [vmem:[%s3833 + $0x58] sm:$0xff]
        %v3846 = vld [vmem:[%s3833 + $0x60] sm:$0xff]
        %v3847 = vld [vmem:[%s3833 + $0x68] sm:$0xff]
        %v3848 = vld [vmem:[%s3833 + $0x70] sm:$0xff]
        %v3849 = vld [vmem:[%s3833 + $0x78] sm:$0xff]
        %v3850 = vld [vmem:[%s3833 + $0x80] sm:$0xff]
        %v3851 = vld [vmem:[%s3833 + $0x88] sm:$0xff]
        %v3852 = vld [vmem:[%s3833 + $0x90] sm:$0xff]
        %v3853 = vld [vmem:[%s3833 + $0x98] sm:$0xff]
        %v3854 = vld [vmem:[%s3833 + $0xa0] sm:$0xff]
        %v3855 = vld [vmem:[%s3833 + $0xa8] sm:$0xff]
        %v3856 = vld [vmem:[%s3833 + $0xb0] sm:$0xff]
        %v3857 = vld [vmem:[%s3833 + $0xb8] sm:$0xff]
        %v3858 = vld [vmem:[%s3833 + $0xc0] sm:$0xff]
        %v3859 = vld [vmem:[%s3833 + $0xc8] sm:$0xff]
        %v3860 = vld [vmem:[%s3833 + $0xd0] sm:$0xff]
        %v3861 = vld [vmem:[%s3833 + $0xd8] sm:$0xff]
        %v3862 = vld [vmem:[%s3833 + $0xe0] sm:$0xff]
        %v3863 = vld [vmem:[%s3833 + $0xe8] sm:$0xff]
        %v3864 = vld [vmem:[%s3833 + $0xf0] sm:$0xff]
        %v3865 = vld [vmem:[%s3833 + $0xf8] sm:$0xff]
        %v3866 = vld [vmem:[%s3833 + $0x100] sm:$0xff]
        %v3867 = vld [vmem:[%s3833 + $0x108] sm:$0xff]
        %v3868 = vld [vmem:[%s3833 + $0x110] sm:$0xff]
        %v3869 = vld [vmem:[%s3833 + $0x118] sm:$0xff]
        %v3870 = vld [vmem:[%s3833 + $0x120] sm:$0xff]
        %v3871 = vld [vmem:[%s3833 + $0x128] sm:$0xff]
        %v3872 = vld [vmem:[%s3833 + $0x130] sm:$0xff]
        %v3873 = vld [vmem:[%s3833 + $0x138] sm:$0xff]
        %v3874 = vld [vmem:[%s3833 + $0x140] sm:$0xff]
        %v3875 = vld [vmem:[%s3833 + $0x148] sm:$0xff]
        %v3876 = vld [vmem:[%s3833 + $0x150] sm:$0xff]
        %v3877 = vld [vmem:[%s3833 + $0x158] sm:$0xff]
        %v3878 = vld [vmem:[%s3833 + $0x160] sm:$0xff]
        %v3879 = vld [vmem:[%s3833 + $0x168] sm:$0xff]
        %v3880 = vld [vmem:[%s3833 + $0x170] sm:$0xff]
        %v3881 = vld [vmem:[%s3833 + $0x178] sm:$0xff]
        %v3882 = vld [vmem:[%s3833 + $0x180] sm:$0xff]
        %v3883 = vld [vmem:[%s3833 + $0x188] sm:$0xff]
        %v3884 = vld [vmem:[%s3833 + $0x190] sm:$0xff]
        %v3885 = vld [vmem:[%s3833 + $0x198] sm:$0xff]
        %v3886 = vld [vmem:[%s3833 + $0x1a0] sm:$0xff]
        %v3887 = vld [vmem:[%s3833 + $0x1a8] sm:$0xff]
        %v3888 = vld [vmem:[%s3833 + $0x1b0] sm:$0xff]
        %v3889 = vld [vmem:[%s3833 + $0x1b8] sm:$0xff]
        %v3890 = vld [vmem:[%s3833 + $0x1c0] sm:$0xff]
        %v3891 = vld [vmem:[%s3833 + $0x1c8] sm:$0xff]
        %v3892 = vld [vmem:[%s3833 + $0x1d0] sm:$0xff]
        %v3893 = vld [vmem:[%s3833 + $0x1d8] sm:$0xff]
        %v3894 = vld [vmem:[%s3833 + $0x1e0] sm:$0xff]
        %v3895 = vld [vmem:[%s3833 + $0x1e8] sm:$0xff]
        %v3896 = vld [vmem:[%s3833 + $0x1f0] sm:$0xff]
        %v3897 = vld [vmem:[%s3833 + $0x1f8] sm:$0xff]
        %3898 = vmatpush.msra.mxu0 %v3864
        %3899 = vmatpush.msra.mxu0 %v3862
        %3900 = vmatpush.msra.mxu0 %v3860
        %3901 = vmatpush.msra.mxu0 %v3858
        %3902 = vmatpush.msra.mxu0 %v3856
        %3903 = vmatpush.msra.mxu0 %v3854
        %3904 = vmatpush.msra.mxu0 %v3852
        %3905 = vmatpush.msra.mxu0 %v3850
        %3906 = vmatpush.msra.mxu0 %v3848
        %3907 = vmatpush.msra.mxu0 %v3846
        %3908 = vmatpush.msra.mxu0 %v3844
        %3909 = vmatpush.msra.mxu0 %v3842
        %3910 = vmatpush.msra.mxu0 %v3840
        %3911 = vmatpush.msra.mxu0 %v3838
        %3912 = vmatpush.msra.mxu0 %v3836
        %3913 = vmatpush.msra.mxu0 %v3834
        %3914 = vmatmul.f32.gmra.mxu0 %v3670
        %v3915 = vpop.f32.mrf.mxu0
        %v3916 = vadd.f32 0.0, %v3915
        %3917 = vmatmul.f32.gmra.mxu0 %v3673
        %v3918 = vpop.f32.mrf.mxu0
        %v3919 = vadd.f32 0.0, %v3918
        %3920 = vmatmul.f32.gmra.mxu0 %v3676
        %v3921 = vpop.f32.mrf.mxu0
        %v3922 = vadd.f32 0.0, %v3921
        %3923 = vmatmul.f32.gmra.mxu0 %v3679
        %v3924 = vpop.f32.mrf.mxu0
        %v3925 = vadd.f32 0.0, %v3924
        %3926 = vdwg.mxu0
        %3927 = vmatpush.msra.mxu0 %v3896
        %3928 = vmatpush.msra.mxu0 %v3894
        %3929 = vmatpush.msra.mxu0 %v3892
        %3930 = vmatpush.msra.mxu0 %v3890
        %3931 = vmatpush.msra.mxu0 %v3888
        %3932 = vmatpush.msra.mxu0 %v3886
        %3933 = vmatpush.msra.mxu0 %v3884
        %3934 = vmatpush.msra.mxu0 %v3882
        %3935 = vmatpush.msra.mxu0 %v3880
        %3936 = vmatpush.msra.mxu0 %v3878
        %3937 = vmatpush.msra.mxu0 %v3876
        %3938 = vmatpush.msra.mxu0 %v3874
        %3939 = vmatpush.msra.mxu0 %v3872
        %3940 = vmatpush.msra.mxu0 %v3870
        %3941 = vmatpush.msra.mxu0 %v3868
        %3942 = vmatpush.msra.mxu0 %v3866
        %3943 = vmatmul.f32.gmra.mxu0 %v3699
        %v3944 = vpop.f32.mrf.mxu0
        %v3945 = vadd.f32 %v3916, %v3944
        %3946 = vmatmul.f32.gmra.mxu0 %v3702
        %v3947 = vpop.f32.mrf.mxu0
        %v3948 = vadd.f32 %v3919, %v3947
        %3949 = vmatmul.f32.gmra.mxu0 %v3705
        %v3950 = vpop.f32.mrf.mxu0
        %v3951 = vadd.f32 %v3922, %v3950
        %3952 = vmatmul.f32.gmra.mxu0 %v3708
        %v3953 = vpop.f32.mrf.mxu0
        %v3954 = vadd.f32 %v3925, %v3953
        %3955 = vdwg.mxu0
        %3956 = vmatpush.msra.mxu0 %v3865
        %3957 = vmatpush.msra.mxu0 %v3863
        %3958 = vmatpush.msra.mxu0 %v3861
        %3959 = vmatpush.msra.mxu0 %v3859
        %3960 = vmatpush.msra.mxu0 %v3857
        %3961 = vmatpush.msra.mxu0 %v3855
        %3962 = vmatpush.msra.mxu0 %v3853
        %3963 = vmatpush.msra.mxu0 %v3851
        %3964 = vmatpush.msra.mxu0 %v3849
        %3965 = vmatpush.msra.mxu0 %v3847
        %3966 = vmatpush.msra.mxu0 %v3845
        %3967 = vmatpush.msra.mxu0 %v3843
        %3968 = vmatpush.msra.mxu0 %v3841
        %3969 = vmatpush.msra.mxu0 %v3839
        %3970 = vmatpush.msra.mxu0 %v3837
        %3971 = vmatpush.msra.mxu0 %v3835
        %3972 = vmatmul.f32.gmra.mxu0 %v3670
        %v3973 = vpop.f32.mrf.mxu0
        %v3974 = vadd.f32 0.0, %v3973
        %3975 = vmatmul.f32.gmra.mxu0 %v3673
        %v3976 = vpop.f32.mrf.mxu0
        %v3977 = vadd.f32 0.0, %v3976
        %3978 = vmatmul.f32.gmra.mxu0 %v3676
        %v3979 = vpop.f32.mrf.mxu0
        %v3980 = vadd.f32 0.0, %v3979
        %3981 = vmatmul.f32.gmra.mxu0 %v3679
        %v3982 = vpop.f32.mrf.mxu0
        %v3983 = vadd.f32 0.0, %v3982
        %3984 = vdwg.mxu0
        %3985 = vmatpush.msra.mxu0 %v3897
        %3986 = vmatpush.msra.mxu0 %v3895
        %3987 = vmatpush.msra.mxu0 %v3893
        %3988 = vmatpush.msra.mxu0 %v3891
        %3989 = vmatpush.msra.mxu0 %v3889
        %3990 = vmatpush.msra.mxu0 %v3887
        %3991 = vmatpush.msra.mxu0 %v3885
        %3992 = vmatpush.msra.mxu0 %v3883
        %3993 = vmatpush.msra.mxu0 %v3881
        %3994 = vmatpush.msra.mxu0 %v3879
        %3995 = vmatpush.msra.mxu0 %v3877
        %3996 = vmatpush.msra.mxu0 %v3875
        %3997 = vmatpush.msra.mxu0 %v3873
        %3998 = vmatpush.msra.mxu0 %v3871
        %3999 = vmatpush.msra.mxu0 %v3869
        %4000 = vmatpush.msra.mxu0 %v3867
        %4001 = vmatmul.f32.gmra.mxu0 %v3699
        %v4002 = vpop.f32.mrf.mxu0
        %v4003 = vadd.f32 %v3974, %v4002
        %4004 = vmatmul.f32.gmra.mxu0 %v3702
        %v4005 = vpop.f32.mrf.mxu0
        %v4006 = vadd.f32 %v3977, %v4005
        %4007 = vmatmul.f32.gmra.mxu0 %v3705
        %v4008 = vpop.f32.mrf.mxu0
        %v4009 = vadd.f32 %v3980, %v4008
        %4010 = vmatmul.f32.gmra.mxu0 %v3708
        %v4011 = vpop.f32.mrf.mxu0
        %v4012 = vadd.f32 %v3983, %v4011
        %4013 = vdwg.mxu0
        %4014 = vmatpush.msra.mxu0 %v3799
        %4015 = vmatpush.msra.mxu0 %v3797
        %4016 = vmatpush.msra.mxu0 %v3795
        %4017 = vmatpush.msra.mxu0 %v3793
        %4018 = vmatpush.msra.mxu0 %v3791
        %4019 = vmatpush.msra.mxu0 %v3789
        %4020 = vmatpush.msra.mxu0 %v3787
        %4021 = vmatpush.msra.mxu0 %v3785
        %4022 = vmatpush.msra.mxu0 %v3783
        %4023 = vmatpush.msra.mxu0 %v3781
        %4024 = vmatpush.msra.mxu0 %v3779
        %4025 = vmatpush.msra.mxu0 %v3777
        %4026 = vmatpush.msra.mxu0 %v3775
        %4027 = vmatpush.msra.mxu0 %v3773
        %4028 = vmatpush.msra.mxu0 %v3771
        %4029 = vmatpush.msra.mxu0 %v3769
        %4030 = vmatmul.f32.gmra.mxu0 %v3612
        %v4031 = vpop.f32.mrf.mxu0
        %v4032 = vadd.f32 %v3945, %v4031
        %4033 = vmatmul.f32.gmra.mxu0 %v3615
        %v4034 = vpop.f32.mrf.mxu0
        %v4035 = vadd.f32 %v3948, %v4034
        %4036 = vmatmul.f32.gmra.mxu0 %v3618
        %v4037 = vpop.f32.mrf.mxu0
        %v4038 = vadd.f32 %v3951, %v4037
        %4039 = vmatmul.f32.gmra.mxu0 %v3621
        %v4040 = vpop.f32.mrf.mxu0
        %v4041 = vadd.f32 %v3954, %v4040
        %4042 = vdwg.mxu0
        %4043 = vmatpush.msra.mxu0 %v3831
        %4044 = vmatpush.msra.mxu0 %v3829
        %4045 = vmatpush.msra.mxu0 %v3827
        %4046 = vmatpush.msra.mxu0 %v3825
        %4047 = vmatpush.msra.mxu0 %v3823
        %4048 = vmatpush.msra.mxu0 %v3821
        %4049 = vmatpush.msra.mxu0 %v3819
        %4050 = vmatpush.msra.mxu0 %v3817
        %4051 = vmatpush.msra.mxu0 %v3815
        %4052 = vmatpush.msra.mxu0 %v3813
        %4053 = vmatpush.msra.mxu0 %v3811
        %4054 = vmatpush.msra.mxu0 %v3809
        %4055 = vmatpush.msra.mxu0 %v3807
        %4056 = vmatpush.msra.mxu0 %v3805
        %4057 = vmatpush.msra.mxu0 %v3803
        %4058 = vmatpush.msra.mxu0 %v3801
        %4059 = vmatmul.f32.gmra.mxu0 %v3641
        %v4060 = vpop.f32.mrf.mxu0
        %v4061 = vadd.f32 %v4032, %v4060
        %4062 = vmatmul.f32.gmra.mxu0 %v3644
        %v4063 = vpop.f32.mrf.mxu0
        %v4064 = vadd.f32 %v4035, %v4063
        %4065 = vmatmul.f32.gmra.mxu0 %v3647
        %v4066 = vpop.f32.mrf.mxu0
        %v4067 = vadd.f32 %v4038, %v4066
        %4068 = vmatmul.f32.gmra.mxu0 %v3650
        %v4069 = vpop.f32.mrf.mxu0
        %v4070 = vadd.f32 %v4041, %v4069
        %4071 = vdwg.mxu0
        %4072 = vmatpush.msra.mxu0 %v3800
        %4073 = vmatpush.msra.mxu0 %v3798
        %4074 = vmatpush.msra.mxu0 %v3796
        %4075 = vmatpush.msra.mxu0 %v3794
        %4076 = vmatpush.msra.mxu0 %v3792
        %4077 = vmatpush.msra.mxu0 %v3790
        %4078 = vmatpush.msra.mxu0 %v3788
        %4079 = vmatpush.msra.mxu0 %v3786
        %4080 = vmatpush.msra.mxu0 %v3784
        %4081 = vmatpush.msra.mxu0 %v3782
        %4082 = vmatpush.msra.mxu0 %v3780
        %4083 = vmatpush.msra.mxu0 %v3778
        %4084 = vmatpush.msra.mxu0 %v3776
        %4085 = vmatpush.msra.mxu0 %v3774
        %4086 = vmatpush.msra.mxu0 %v3772
        %4087 = vmatpush.msra.mxu0 %v3770
        %4088 = vmatmul.f32.gmra.mxu0 %v3612
        %v4089 = vpop.f32.mrf.mxu0
        %v4090 = vadd.f32 %v4003, %v4089
        %4091 = vmatmul.f32.gmra.mxu0 %v3615
        %v4092 = vpop.f32.mrf.mxu0
        %v4093 = vadd.f32 %v4006, %v4092
        %4094 = vmatmul.f32.gmra.mxu0 %v3618
        %v4095 = vpop.f32.mrf.mxu0
        %v4096 = vadd.f32 %v4009, %v4095
        %4097 = vmatmul.f32.gmra.mxu0 %v3621
        %v4098 = vpop.f32.mrf.mxu0
        %v4099 = vadd.f32 %v4012, %v4098
        %4100 = vdwg.mxu0
        %4101 = vmatpush.msra.mxu0 %v3832
        %4102 = vmatpush.msra.mxu0 %v3830
        %4103 = vmatpush.msra.mxu0 %v3828
        %4104 = vmatpush.msra.mxu0 %v3826
        %4105 = vmatpush.msra.mxu0 %v3824
        %4106 = vmatpush.msra.mxu0 %v3822
        %4107 = vmatpush.msra.mxu0 %v3820
        %4108 = vmatpush.msra.mxu0 %v3818
        %4109 = vmatpush.msra.mxu0 %v3816
        %4110 = vmatpush.msra.mxu0 %v3814
        %4111 = vmatpush.msra.mxu0 %v3812
        %4112 = vmatpush.msra.mxu0 %v3810
        %4113 = vmatpush.msra.mxu0 %v3808
        %4114 = vmatpush.msra.mxu0 %v3806
        %4115 = vmatpush.msra.mxu0 %v3804
        %4116 = vmatpush.msra.mxu0 %v3802
        %4117 = vmatmul.f32.gmra.mxu0 %v3641
        %v4118 = vpop.f32.mrf.mxu0
        %v4119 = vadd.f32 %v4090, %v4118
        %4120 = vmatmul.f32.gmra.mxu0 %v3644
        %v4121 = vpop.f32.mrf.mxu0
        %v4122 = vadd.f32 %v4093, %v4121
        %4123 = vmatmul.f32.gmra.mxu0 %v3647
        %v4124 = vpop.f32.mrf.mxu0
        %v4125 = vadd.f32 %v4096, %v4124
        %4126 = vmatmul.f32.gmra.mxu0 %v3650
        %v4127 = vpop.f32.mrf.mxu0
        %v4128 = vadd.f32 %v4099, %v4127
        %4129 = vdwg.mxu0
        %s4130 = scalar_lea.vmem [#allocation7], 4096
        %v4131 = vld [vmem:[%s4130] sm:$0xff]
        %v4132 = vld [vmem:[%s4130 + $0x8] sm:$0xff]
        %v4133 = vld [vmem:[%s4130 + $0x10] sm:$0xff]
        %v4134 = vld [vmem:[%s4130 + $0x18] sm:$0xff]
        %v4135 = vld [vmem:[%s4130 + $0x20] sm:$0xff]
        %v4136 = vld [vmem:[%s4130 + $0x28] sm:$0xff]
        %v4137 = vld [vmem:[%s4130 + $0x30] sm:$0xff]
        %v4138 = vld [vmem:[%s4130 + $0x38] sm:$0xff]
        %v4139 = vld [vmem:[%s4130 + $0x40] sm:$0xff]
        %v4140 = vld [vmem:[%s4130 + $0x48] sm:$0xff]
        %v4141 = vld [vmem:[%s4130 + $0x50] sm:$0xff]
        %v4142 = vld [vmem:[%s4130 + $0x58] sm:$0xff]
        %v4143 = vld [vmem:[%s4130 + $0x60] sm:$0xff]
        %v4144 = vld [vmem:[%s4130 + $0x68] sm:$0xff]
        %v4145 = vld [vmem:[%s4130 + $0x70] sm:$0xff]
        %v4146 = vld [vmem:[%s4130 + $0x78] sm:$0xff]
        %v4147 = vld [vmem:[%s4130 + $0x80] sm:$0xff]
        %v4148 = vld [vmem:[%s4130 + $0x88] sm:$0xff]
        %v4149 = vld [vmem:[%s4130 + $0x90] sm:$0xff]
        %v4150 = vld [vmem:[%s4130 + $0x98] sm:$0xff]
        %v4151 = vld [vmem:[%s4130 + $0xa0] sm:$0xff]
        %v4152 = vld [vmem:[%s4130 + $0xa8] sm:$0xff]
        %v4153 = vld [vmem:[%s4130 + $0xb0] sm:$0xff]
        %v4154 = vld [vmem:[%s4130 + $0xb8] sm:$0xff]
        %v4155 = vld [vmem:[%s4130 + $0xc0] sm:$0xff]
        %v4156 = vld [vmem:[%s4130 + $0xc8] sm:$0xff]
        %v4157 = vld [vmem:[%s4130 + $0xd0] sm:$0xff]
        %v4158 = vld [vmem:[%s4130 + $0xd8] sm:$0xff]
        %v4159 = vld [vmem:[%s4130 + $0xe0] sm:$0xff]
        %v4160 = vld [vmem:[%s4130 + $0xe8] sm:$0xff]
        %v4161 = vld [vmem:[%s4130 + $0xf0] sm:$0xff]
        %v4162 = vld [vmem:[%s4130 + $0xf8] sm:$0xff]
        %v4163 = vld [vmem:[%s4130 + $0x100] sm:$0xff]
        %v4164 = vld [vmem:[%s4130 + $0x108] sm:$0xff]
        %v4165 = vld [vmem:[%s4130 + $0x110] sm:$0xff]
        %v4166 = vld [vmem:[%s4130 + $0x118] sm:$0xff]
        %v4167 = vld [vmem:[%s4130 + $0x120] sm:$0xff]
        %v4168 = vld [vmem:[%s4130 + $0x128] sm:$0xff]
        %v4169 = vld [vmem:[%s4130 + $0x130] sm:$0xff]
        %v4170 = vld [vmem:[%s4130 + $0x138] sm:$0xff]
        %v4171 = vld [vmem:[%s4130 + $0x140] sm:$0xff]
        %v4172 = vld [vmem:[%s4130 + $0x148] sm:$0xff]
        %v4173 = vld [vmem:[%s4130 + $0x150] sm:$0xff]
        %v4174 = vld [vmem:[%s4130 + $0x158] sm:$0xff]
        %v4175 = vld [vmem:[%s4130 + $0x160] sm:$0xff]
        %v4176 = vld [vmem:[%s4130 + $0x168] sm:$0xff]
        %v4177 = vld [vmem:[%s4130 + $0x170] sm:$0xff]
        %v4178 = vld [vmem:[%s4130 + $0x178] sm:$0xff]
        %v4179 = vld [vmem:[%s4130 + $0x180] sm:$0xff]
        %v4180 = vld [vmem:[%s4130 + $0x188] sm:$0xff]
        %v4181 = vld [vmem:[%s4130 + $0x190] sm:$0xff]
        %v4182 = vld [vmem:[%s4130 + $0x198] sm:$0xff]
        %v4183 = vld [vmem:[%s4130 + $0x1a0] sm:$0xff]
        %v4184 = vld [vmem:[%s4130 + $0x1a8] sm:$0xff]
        %v4185 = vld [vmem:[%s4130 + $0x1b0] sm:$0xff]
        %v4186 = vld [vmem:[%s4130 + $0x1b8] sm:$0xff]
        %v4187 = vld [vmem:[%s4130 + $0x1c0] sm:$0xff]
        %v4188 = vld [vmem:[%s4130 + $0x1c8] sm:$0xff]
        %v4189 = vld [vmem:[%s4130 + $0x1d0] sm:$0xff]
        %v4190 = vld [vmem:[%s4130 + $0x1d8] sm:$0xff]
        %v4191 = vld [vmem:[%s4130 + $0x1e0] sm:$0xff]
        %v4192 = vld [vmem:[%s4130 + $0x1e8] sm:$0xff]
        %v4193 = vld [vmem:[%s4130 + $0x1f0] sm:$0xff]
        %v4194 = vld [vmem:[%s4130 + $0x1f8] sm:$0xff]
        %4195 = vmatpush.msra.mxu0 %v4161
        %4196 = vmatpush.msra.mxu0 %v4159
        %4197 = vmatpush.msra.mxu0 %v4157
        %4198 = vmatpush.msra.mxu0 %v4155
        %4199 = vmatpush.msra.mxu0 %v4153
        %4200 = vmatpush.msra.mxu0 %v4151
        %4201 = vmatpush.msra.mxu0 %v4149
        %4202 = vmatpush.msra.mxu0 %v4147
        %4203 = vmatpush.msra.mxu0 %v4145
        %4204 = vmatpush.msra.mxu0 %v4143
        %4205 = vmatpush.msra.mxu0 %v4141
        %4206 = vmatpush.msra.mxu0 %v4139
        %4207 = vmatpush.msra.mxu0 %v4137
        %4208 = vmatpush.msra.mxu0 %v4135
        %4209 = vmatpush.msra.mxu0 %v4133
        %4210 = vmatpush.msra.mxu0 %v4131
        %4211 = vmatmul.f32.gmra.mxu0 %v3728
        %v4212 = vpop.f32.mrf.mxu0
        %v4213 = vadd.f32 0.0, %v4212
        %4214 = vmatmul.f32.gmra.mxu0 %v3731
        %v4215 = vpop.f32.mrf.mxu0
        %v4216 = vadd.f32 0.0, %v4215
        %4217 = vmatmul.f32.gmra.mxu0 %v3734
        %v4218 = vpop.f32.mrf.mxu0
        %v4219 = vadd.f32 0.0, %v4218
        %4220 = vmatmul.f32.gmra.mxu0 %v3737
        %v4221 = vpop.f32.mrf.mxu0
        %v4222 = vadd.f32 0.0, %v4221
        %4223 = vdwg.mxu0
        %4224 = vmatpush.msra.mxu0 %v4193
        %4225 = vmatpush.msra.mxu0 %v4191
        %4226 = vmatpush.msra.mxu0 %v4189
        %4227 = vmatpush.msra.mxu0 %v4187
        %4228 = vmatpush.msra.mxu0 %v4185
        %4229 = vmatpush.msra.mxu0 %v4183
        %4230 = vmatpush.msra.mxu0 %v4181
        %4231 = vmatpush.msra.mxu0 %v4179
        %4232 = vmatpush.msra.mxu0 %v4177
        %4233 = vmatpush.msra.mxu0 %v4175
        %4234 = vmatpush.msra.mxu0 %v4173
        %4235 = vmatpush.msra.mxu0 %v4171
        %4236 = vmatpush.msra.mxu0 %v4169
        %4237 = vmatpush.msra.mxu0 %v4167
        %4238 = vmatpush.msra.mxu0 %v4165
        %4239 = vmatpush.msra.mxu0 %v4163
        %4240 = vmatmul.f32.gmra.mxu0 %v3757
        %v4241 = vpop.f32.mrf.mxu0
        %v4242 = vadd.f32 %v4213, %v4241
        %4243 = vmatmul.f32.gmra.mxu0 %v3760
        %v4244 = vpop.f32.mrf.mxu0
        %v4245 = vadd.f32 %v4216, %v4244
        %4246 = vmatmul.f32.gmra.mxu0 %v3763
        %v4247 = vpop.f32.mrf.mxu0
        %v4248 = vadd.f32 %v4219, %v4247
        %4249 = vmatmul.f32.gmra.mxu0 %v3766
        %v4250 = vpop.f32.mrf.mxu0
        %v4251 = vadd.f32 %v4222, %v4250
        %4252 = vdwg.mxu0
        %4253 = vmatpush.msra.mxu0 %v4162
        %4254 = vmatpush.msra.mxu0 %v4160
        %4255 = vmatpush.msra.mxu0 %v4158
        %4256 = vmatpush.msra.mxu0 %v4156
        %4257 = vmatpush.msra.mxu0 %v4154
        %4258 = vmatpush.msra.mxu0 %v4152
        %4259 = vmatpush.msra.mxu0 %v4150
        %4260 = vmatpush.msra.mxu0 %v4148
        %4261 = vmatpush.msra.mxu0 %v4146
        %4262 = vmatpush.msra.mxu0 %v4144
        %4263 = vmatpush.msra.mxu0 %v4142
        %4264 = vmatpush.msra.mxu0 %v4140
        %4265 = vmatpush.msra.mxu0 %v4138
        %4266 = vmatpush.msra.mxu0 %v4136
        %4267 = vmatpush.msra.mxu0 %v4134
        %4268 = vmatpush.msra.mxu0 %v4132
        %4269 = vmatmul.f32.gmra.mxu0 %v3728
        %v4270 = vpop.f32.mrf.mxu0
        %v4271 = vadd.f32 0.0, %v4270
        %4272 = vmatmul.f32.gmra.mxu0 %v3731
        %v4273 = vpop.f32.mrf.mxu0
        %v4274 = vadd.f32 0.0, %v4273
        %4275 = vmatmul.f32.gmra.mxu0 %v3734
        %v4276 = vpop.f32.mrf.mxu0
        %v4277 = vadd.f32 0.0, %v4276
        %4278 = vmatmul.f32.gmra.mxu0 %v3737
        %v4279 = vpop.f32.mrf.mxu0
        %v4280 = vadd.f32 0.0, %v4279
        %4281 = vdwg.mxu0
        %4282 = vmatpush.msra.mxu0 %v4194
        %4283 = vmatpush.msra.mxu0 %v4192
        %4284 = vmatpush.msra.mxu0 %v4190
        %4285 = vmatpush.msra.mxu0 %v4188
        %4286 = vmatpush.msra.mxu0 %v4186
        %4287 = vmatpush.msra.mxu0 %v4184
        %4288 = vmatpush.msra.mxu0 %v4182
        %4289 = vmatpush.msra.mxu0 %v4180
        %4290 = vmatpush.msra.mxu0 %v4178
        %4291 = vmatpush.msra.mxu0 %v4176
        %4292 = vmatpush.msra.mxu0 %v4174
        %4293 = vmatpush.msra.mxu0 %v4172
        %4294 = vmatpush.msra.mxu0 %v4170
        %4295 = vmatpush.msra.mxu0 %v4168
        %4296 = vmatpush.msra.mxu0 %v4166
        %4297 = vmatpush.msra.mxu0 %v4164
        %4298 = vmatmul.f32.gmra.mxu0 %v3757
        %v4299 = vpop.f32.mrf.mxu0
        %v4300 = vadd.f32 %v4271, %v4299
        %4301 = vmatmul.f32.gmra.mxu0 %v3760
        %v4302 = vpop.f32.mrf.mxu0
        %v4303 = vadd.f32 %v4274, %v4302
        %4304 = vmatmul.f32.gmra.mxu0 %v3763
        %v4305 = vpop.f32.mrf.mxu0
        %v4306 = vadd.f32 %v4277, %v4305
        %4307 = vmatmul.f32.gmra.mxu0 %v3766
        %v4308 = vpop.f32.mrf.mxu0
        %v4309 = vadd.f32 %v4280, %v4308
        %4310 = vdwg.mxu0
        %v4311 = vadd.f32 %v4061, %v4242
        %v4312 = vadd.f32 %v4119, %v4300
        %v4313 = vadd.f32 %v4064, %v4245
        %v4314 = vadd.f32 %v4122, %v4303
        %v4315 = vadd.f32 %v4067, %v4248
        %v4316 = vadd.f32 %v4125, %v4306
        %v4317 = vadd.f32 %v4070, %v4251
        %v4318 = vadd.f32 %v4128, %v4309
        %v4320 = vperm.slane %v3593, 0
        %v4321 = vperm.slane %v3593, 1
        %v4324 = vmul.f32 %v4320, %v4311
        %v4325 = vmul.f32 %v4321, %v4312
        %v4326 = vmul.f32 %v4320, %v4313
        %v4327 = vmul.f32 %v4321, %v4314
        %v4328 = vmul.f32 %v4320, %v4315
        %v4329 = vmul.f32 %v4321, %v4316
        %v4330 = vmul.f32 %v4320, %v4317
        %v4331 = vmul.f32 %v4321, %v4318
        %s4332 = scalar_lea.vmem [#allocation18], 7
        %v4333 = vld [vmem:[%s4332] ss:$8 sm:$0x3]
        %v4335 = vperm.slane %v4333, 0
        %v4336 = vperm.slane %v4333, 1
        %v4339 = vadd.f32 %v4324, %v4335
        %v4340 = vadd.f32 %v4325, %v4336
        %v4341 = vadd.f32 %v4326, %v4335
        %v4342 = vadd.f32 %v4327, %v4336
        %v4343 = vadd.f32 %v4328, %v4335
        %v4344 = vadd.f32 %v4329, %v4336
        %v4345 = vadd.f32 %v4330, %v4335
        %v4346 = vadd.f32 %v4331, %v4336
        %v4347 = vmax.f32 %v4339, 0.0
        %v4348 = vmax.f32 %v4340, 0.0
        %v4349 = vmax.f32 %v4341, 0.0
        %v4350 = vmax.f32 %v4342, 0.0
        %v4351 = vmax.f32 %v4343, 0.0
        %v4352 = vmax.f32 %v4344, 0.0
        %v4353 = vmax.f32 %v4345, 0.0
        %v4354 = vmax.f32 %v4346, 0.0
        %4355 = vst [vmem:[%s772] sm:$0xff] %v4347
        %4356 = vst [vmem:[%s772 + $0x8] sm:$0xff] %v4348
        %4357 = vst [vmem:[%s772 + $0x10] sm:$0xff] %v4349
        %4358 = vst [vmem:[%s772 + $0x18] sm:$0xff] %v4350
        %4359 = vst [vmem:[%s772 + $0x20] sm:$0xff] %v4351
        %4360 = vst [vmem:[%s772 + $0x28] sm:$0xff] %v4352
        %4361 = vst [vmem:[%s772 + $0x30] sm:$0xff] %v4353
        %4362 = vst [vmem:[%s772 + $0x38] sm:$0xff] %v4354
        %p4363 = scmp.lt.s32.totalorder %s35, 1
        %s4364 = scalar_select %p4363, %s35, 1
        %s4365 = smul.addr %s4364, 8
        %s4366 = smul.addr %s4365, 8
        %s4367 = scalar_lea.vmem %s17, %s4366
        // Predicated region
        $region141: #{cross_agg_layer.1} parent=87 // pred_check
          %p4368 = pneg %p420
        $region142: #{cross_agg_layer.1} parent=87 // pred_check_branch
          %4370 = sbr.rel (%p4368) target = $region144
        $region143: #{cross_agg_layer.1} parent=87 // pred_region
          _
        $region144: #{cross_agg_layer.1} parent=87 // pred_fallthru
          _
      $region88: #{cross_agg_layer.1} parent=5 // pred_fallthru
        _
      %p4371 = scmp.le.s32.totalorder 2, %s30
      // Predicated region
      $region145: #{cross_agg_layer.1} parent=5 // pred_check
        %p4372 = pneg %p4371
      $region146: #{cross_agg_layer.1} parent=5 // pred_check_branch
        %4374 = sbr.rel (%p4372) target = $region148
      $region147: #{cross_agg_layer.1} parent=5 // pred_region
        %s4375 = ssub.s32 %s30, 2
        // Predicated region
        $region149: #{cross_agg_layer.1} parent=147 // pred_check
          %p4376 = pneg %p426
        $region150: #{cross_agg_layer.1} parent=147 // pred_check_branch
          %4378 = sbr.rel (%p4376) target = $region152
        $region151: #{cross_agg_layer.1} parent=147 // pred_region
          %p4379 = scmp.lt.s32.totalorder %s36, 1
          %s4380 = scalar_select %p4379, %s36, 1
          %s4381 = smul.addr %s4380, 8
          %s4382 = smul.addr %s4381, 8
          %s4383 = scalar_lea.vmem %s17, %s4382
        $region152: #{cross_agg_layer.1} parent=147 // pred_fallthru
          _
      $region148: #{cross_agg_layer.1} parent=5 // pred_fallthru
        _
    $region6: #{cross_agg_layer.1} parent=1 // loop_footer
      %s34 = sadd.s32 1, %s30
    $region7: #{cross_agg_layer.1} parent=1 // loop_footer_branch
      %29 = sbr.rel target = $region3
    $region8: #{cross_agg_layer.1} parent=1 // loop_exit
      _
    %4384 = vsyncpa [#allocation3], 1
    %s4385 = scalar_lea.sflag [#allocation3], 1
    %4386 = vsyncpa %s4385, 1
    %4387 = vsyncpa [#allocation5], 1
    %4388 = vsyncpa [#allocation8], 1
    %4389 = vsyncpa [#allocation11], 1
    %4390 = vsyncpa [#allocation14], 1
    %4391 = vsyncpa [#allocation17], 1
    %4392 = vsyncpa [#allocation20], 1

</llo_original>
